<compile_context>
chip_gen: v7x
topology: tpu7x:2x2x1
jax: 0.10.0
libtpu: 0.0.40
codegen_flags: <defaults>
</compile_context>

<pallas_src>
import functools
import numpy as np
import jax
import jax.numpy as jnp
from jax.experimental import pallas as pl
from jax.experimental.pallas import tpu as pltpu


# ---------------------------------------------------------------------------
# Parameter construction (deterministic, synthetic init mirroring weights_init)
# ---------------------------------------------------------------------------
def _xavier_uniform(key, in_dim, out_dim):
    limit = float(np.sqrt(6.0 / (in_dim + out_dim)))
    # stored as (in, out) == W^T of the PyTorch nn.Linear weight
    return jax.random.uniform(key, (in_dim, out_dim), jnp.float32, -limit, limit)


def _linear(key, in_dim, out_dim):
    w = _xavier_uniform(key, in_dim, out_dim)
    b = jnp.zeros((1, out_dim), jnp.float32)          # bias filled with 0 (weights_init)
    return w, b


def _bn(key, dim, eps=1e-5):
    gamma = 1.0 + 0.02 * jax.random.normal(key, (dim,), jnp.float32)  # N(1.0, 0.02)
    beta = jnp.zeros((dim,), jnp.float32)
    running_mean = jnp.zeros((dim,), jnp.float32)
    running_var = jnp.ones((dim,), jnp.float32)
    scale = gamma / jnp.sqrt(running_var + eps)
    shift = beta - running_mean * scale
    return scale, shift


def _fold(w, b, scale, shift):
    """Fold eval-mode BatchNorm1d into the preceding Linear."""
    return w * scale[None, :], (b * scale[None, :] + shift[None, :])


def build_params(L, p, z_dim, seed=0):
    key = jax.random.PRNGKey(seed)
    ks = jax.random.split(key, 32)
    ki = iter(range(32))

    def nk():
        return ks[next(ki)]

    # encoder_z
    w1, b1 = _fold(*_linear(nk(), L, 32 * p), *_bn(nk(), 32 * p))
    w2, b2 = _fold(*_linear(nk(), 32 * p, 16 * p), *_bn(nk(), 16 * p))
    w3, b3 = _fold(*_linear(nk(), 16 * p, 4 * p), *_bn(nk(), 4 * p))
    w4, b4 = _linear(nk(), 4 * p, z_dim)
    w5, b5 = _linear(nk(), 4 * p, z_dim)
    # encoder_a
    w9, b9 = _fold(*_linear(nk(), L, 32 * p), *_bn(nk(), 32 * p))
    w10, b10 = _fold(*_linear(nk(), 32 * p, 16 * p), *_bn(nk(), 16 * p))
    w11, b11 = _fold(*_linear(nk(), 16 * p, 4 * p), *_bn(nk(), 4 * p))
    w12, b12 = _fold(*_linear(nk(), 4 * p, 4 * p), *_bn(nk(), 4 * p))
    w13, b13 = _linear(nk(), 4 * p, p)
    # decoder
    w6, b6 = _fold(*_linear(nk(), z_dim, 4 * p), *_bn(nk(), 4 * p))
    w7, b7 = _fold(*_linear(nk(), 4 * p, 64 * p), *_bn(nk(), 64 * p))
    w8, b8 = _linear(nk(), 64 * p, L * p)

    # --- fuse matmuls that share an input ---
    # fc1|fc9 share x; fc4|fc5 share h3 (the encoder_z trunk).
    w19 = jnp.concatenate([w1, w9], axis=1)            # (L, 64p)
    b19 = jnp.concatenate([b1, b9], axis=1)
    w45 = jnp.concatenate([w4, w5], axis=1)            # (4p, 2*z_dim)
    b45 = jnp.concatenate([b4, b5], axis=1)

    weights = [w19, w2, w3, w45, w10, w11, w12, w13, w6, w7, w8]
    biases = [b19, b2, b3, b45, b10, b11, b12, b13, b6, b7, b8]

    params = []
    for w, b in zip(weights, biases):
        params.append(w.astype(jnp.bfloat16))          # bf16 weights -> MXU fast path
        params.append(b.astype(jnp.float32))           # biases stay f32 (added post-dot)
    return tuple(params)


# ---------------------------------------------------------------------------
# Pallas kernel: whole forward chain for one batch tile
# ---------------------------------------------------------------------------
def _pgmsu_kernel(p, L, z_dim,
                  x_ref, eps_ref,
                  w19, b19, w2, b2, w3, b3, w45, b45,
                  w10, b10, w11, b11, w12, b12, w13, b13,
                  w6, b6, w7, b7, w8, b8,
                  packed_ref, em_ref):
    x = x_ref[...]

    def lin(h, w, b):
        # bf16 operands on the MXU, f32 accumulation, f32 bias/elementwise.
        return jnp.dot(h.astype(jnp.bfloat16), w[...],
                       preferred_element_type=jnp.float32) + b[...]

    def relu(v):
        return jnp.maximum(v, 0.0)

    # ---- fused first layer of both encoders: x @ [W1 | W9] ----
    h0 = relu(lin(x, w19, b19))                        # (tb, 64p)
    h1z = h0[:, :32 * p]                               # vreg-aligned split (32p = 128)
    h1a = h0[:, 32 * p:]

    # ---- encoder_z ----
    h = relu(lin(h1z, w2, b2))
    h = relu(lin(h, w3, b3))
    mulv = lin(h, w45, b45)                            # (tb, 2*z_dim) = mu | log_var
    mu = mulv[:, :z_dim]
    lv = mulv[:, z_dim:2 * z_dim]

    # ---- encoder_a ----
    h = relu(lin(h1a, w10, b10))
    h = relu(lin(h, w11, b11))
    h = relu(lin(h, w12, b12))
    logits = lin(h, w13, b13)
    m = jnp.max(logits, axis=-1, keepdims=True)
    e = jnp.exp(logits - m)
    a = e * pl.reciprocal(jnp.sum(e, axis=-1, keepdims=True), approx=True)

    # ---- reparametrize ----
    z = mu + eps_ref[...] * jnp.exp(0.5 * lv)

    # ---- decoder ----
    h = relu(lin(z, w6, b6))
    h = relu(lin(h, w7, b7))
    pre = lin(h, w8, b8)                               # (tb, p*L)
    em = pl.reciprocal(1.0 + jnp.exp(-pre), approx=True)   # sigmoid via EUP exp + recip
    em_ref[...] = em

    # ---- per-pixel mixing: y_hat[n, l] = sum_k a[n, k] * em[n, k, l] ----
    yhat = a[:, 0:1] * em[:, 0:L]
    for k in range(1, p):                              # p is small & static
        yhat = yhat + a[:, k:k + 1] * em[:, k * L:(k + 1) * L]

    # ---- lane-dense packed output slab: [yhat | mu | lv | a | zero-pad] ----
    used = L + 2 * z_dim + p
    pieces = [yhat, mu, lv, a]
    pad_w = packed_ref.shape[1] - used
    if pad_w > 0:
        pieces.append(jnp.zeros((yhat.shape[0], pad_w), jnp.float32))
    packed_ref[...] = jnp.concatenate(pieces, axis=-1)


# ---------------------------------------------------------------------------
# Wrapper
# ---------------------------------------------------------------------------
def pgmsu_forward(x, eps, params, *, p, L, z_dim, tb=256, vmem_limit_bytes=None):
    N = x.shape[0]
    assert N % tb == 0, "batch must be divisible by the batch tile"

    # packed output width: lane-dense (>=128, multiple of 128)
    used = L + 2 * z_dim + p
    pack_w = max(128, ((used + 127) // 128) * 128)

    def row_spec(d):
        return pl.BlockSpec((tb, d), lambda i: (i, 0))

    # weights/biases: full-array blocks, constant block index (fetched once).
    param_specs = [pl.BlockSpec(pa.shape, lambda i: (0, 0)) for pa in params]

    out_shape = (
        jax.ShapeDtypeStruct((N, pack_w), jnp.float32),   # packed: yhat|mu|lv|a|pad
        jax.ShapeDtypeStruct((N, p * L), jnp.float32),    # em (flat)
    )
    out_specs = (row_spec(pack_w), row_spec(p * L))

    kernel = functools.partial(_pgmsu_kernel, p, L, z_dim)

    cp_kwargs = dict(dimension_semantics=("parallel",))
    if vmem_limit_bytes is not None:
        # only needed for very large tb (e.g. >=1024 on v5e/v7x); defaults are
        # ample at tb=256 where the whole working set is ~2 MB.
        cp_kwargs["vmem_limit_bytes"] = vmem_limit_bytes

    packed, em = pl.pallas_call(
        kernel,
        grid=(N // tb,),
        in_specs=[row_spec(L), row_spec(z_dim)] + param_specs,
        out_specs=out_specs,
        out_shape=out_shape,
        compiler_params=pltpu.CompilerParams(**cp_kwargs),
    )(x, eps, *params)

    yhat = packed[:, :L]
    mu = packed[:, L:L + z_dim]
    lv = packed[:, L + z_dim:L + 2 * z_dim]
    a = packed[:, L + 2 * z_dim:L + 2 * z_dim + p]
    em_tensor = em.reshape(N, p, L)                    # same as torch .view(-1, p, L)
    return yhat, mu, lv, a, em_tensor


# ---------------------------------------------------------------------------
# Pure-JAX reference (for correctness check; f32 math on the same stored params)
# ---------------------------------------------------------------------------
def reference_forward(x, eps, params, *, p, L, z_dim):
    (w19, b19, w2, b2, w3, b3, w45, b45,
     w10, b10, w11, b11, w12, b12, w13, b13,
     w6, b6, w7, b7, w8, b8) = [jnp.asarray(t, jnp.float32) for t in params]
    relu = jax.nn.relu
    h0 = relu(x @ w19 + b19)
    h1z, h1a = h0[:, :32 * p], h0[:, 32 * p:]
    h = relu(h1z @ w2 + b2)
    h = relu(h @ w3 + b3)
    mulv = h @ w45 + b45
    mu, lv = mulv[:, :z_dim], mulv[:, z_dim:2 * z_dim]
    h = relu(h1a @ w10 + b10)
    h = relu(h @ w11 + b11)
    h = relu(h @ w12 + b12)
    a = jax.nn.softmax(h @ w13 + b13, axis=1)
    z = mu + eps * jnp.exp(0.5 * lv)
    h = relu(z @ w6 + b6)
    h = relu(h @ w7 + b7)
    em = jax.nn.sigmoid(h @ w8 + b8)
    em_t = em.reshape(-1, p, L)
    yhat = jnp.einsum('np,npl->nl', a, em_t)
    return yhat, mu, lv, a, em_t


# ---------------------------------------------------------------------------
if __name__ == "__main__":
    # shapes consistent with the module: N pixels, L bands, p endmembers.
    # N = 2 * tb keeps the grid >= 2 steps (v7x dual-TC) while staying small.
    N, L, p, z_dim = 512, 32, 4, 4
    tb = 256

    params = build_params(L, p, z_dim, seed=0)

    key = jax.random.PRNGKey(0)
    kx, ke = jax.random.split(key)
    x = jax.random.uniform(kx, (N, L), jnp.float32)          # hyperspectral pixels in [0,1]
    eps = jax.random.normal(ke, (N, z_dim), jnp.float32)     # reparametrization noise

    outs = pgmsu_forward(x, eps, params, p=p, L=L, z_dim=z_dim, tb=tb)
    outs = jax.block_until_ready(outs)

    refs = reference_forward(x, eps, params, p=p, L=L, z_dim=z_dim)
    for o, r in zip(outs, refs):
        np.testing.assert_allclose(np.asarray(o), np.asarray(r), rtol=2e-2, atol=2e-2)

    print("KERNEL_OK")
</pallas_src>

<mosaic_0001>
module attributes {stable_mosaic.version = 11 : i64} {
  func.func @_pgmsu_kernel(%arg0: i32, %arg1: memref<256x32xf32, #tpu.memory_space<vmem>>, %arg2: memref<256x4xf32, #tpu.memory_space<vmem>>, %arg3: memref<32x256xbf16, #tpu.memory_space<vmem>>, %arg4: memref<1x256xf32, #tpu.memory_space<vmem>>, %arg5: memref<128x64xbf16, #tpu.memory_space<vmem>>, %arg6: memref<1x64xf32, #tpu.memory_space<vmem>>, %arg7: memref<64x16xbf16, #tpu.memory_space<vmem>>, %arg8: memref<1x16xf32, #tpu.memory_space<vmem>>, %arg9: memref<16x8xbf16, #tpu.memory_space<vmem>>, %arg10: memref<1x8xf32, #tpu.memory_space<vmem>>, %arg11: memref<128x64xbf16, #tpu.memory_space<vmem>>, %arg12: memref<1x64xf32, #tpu.memory_space<vmem>>, %arg13: memref<64x16xbf16, #tpu.memory_space<vmem>>, %arg14: memref<1x16xf32, #tpu.memory_space<vmem>>, %arg15: memref<16x16xbf16, #tpu.memory_space<vmem>>, %arg16: memref<1x16xf32, #tpu.memory_space<vmem>>, %arg17: memref<16x4xbf16, #tpu.memory_space<vmem>>, %arg18: memref<1x4xf32, #tpu.memory_space<vmem>>, %arg19: memref<4x16xbf16, #tpu.memory_space<vmem>>, %arg20: memref<1x16xf32, #tpu.memory_space<vmem>>, %arg21: memref<16x256xbf16, #tpu.memory_space<vmem>>, %arg22: memref<1x256xf32, #tpu.memory_space<vmem>>, %arg23: memref<256x128xbf16, #tpu.memory_space<vmem>>, %arg24: memref<1x128xf32, #tpu.memory_space<vmem>>, %arg25: memref<256x128xf32, #tpu.memory_space<vmem>>, %arg26: memref<256x128xf32, #tpu.memory_space<vmem>>) attributes {dimension_semantics = [#tpu.dimension_semantics<parallel>], iteration_bounds = array<i64: 2>, scalar_prefetch = 0 : i64, scratch_operands = 0 : i64, tpu.core_type = #tpu.core_type<tc>, window_params = [{transform_indices = @transform_0, window_bounds = array<i64: 256, 32>}, {transform_indices = @transform_1, window_bounds = array<i64: 256, 4>}, {pipeline_mode = #tpu.pipeline_mode<synchronous>, transform_indices = @transform_2, window_bounds = array<i64: 32, 256>}, {pipeline_mode = #tpu.pipeline_mode<synchronous>, transform_indices = @transform_3, window_bounds = array<i64: 1, 256>}, {pipeline_mode = #tpu.pipeline_mode<synchronous>, transform_indices = @transform_4, window_bounds = array<i64: 128, 64>}, {pipeline_mode = #tpu.pipeline_mode<synchronous>, transform_indices = @transform_5, window_bounds = array<i64: 1, 64>}, {pipeline_mode = #tpu.pipeline_mode<synchronous>, transform_indices = @transform_6, window_bounds = array<i64: 64, 16>}, {pipeline_mode = #tpu.pipeline_mode<synchronous>, transform_indices = @transform_7, window_bounds = array<i64: 1, 16>}, {pipeline_mode = #tpu.pipeline_mode<synchronous>, transform_indices = @transform_8, window_bounds = array<i64: 16, 8>}, {pipeline_mode = #tpu.pipeline_mode<synchronous>, transform_indices = @transform_9, window_bounds = array<i64: 1, 8>}, {pipeline_mode = #tpu.pipeline_mode<synchronous>, transform_indices = @transform_10, window_bounds = array<i64: 128, 64>}, {pipeline_mode = #tpu.pipeline_mode<synchronous>, transform_indices = @transform_11, window_bounds = array<i64: 1, 64>}, {pipeline_mode = #tpu.pipeline_mode<synchronous>, transform_indices = @transform_12, window_bounds = array<i64: 64, 16>}, {pipeline_mode = #tpu.pipeline_mode<synchronous>, transform_indices = @transform_13, window_bounds = array<i64: 1, 16>}, {pipeline_mode = #tpu.pipeline_mode<synchronous>, transform_indices = @transform_14, window_bounds = array<i64: 16, 16>}, {pipeline_mode = #tpu.pipeline_mode<synchronous>, transform_indices = @transform_15, window_bounds = array<i64: 1, 16>}, {pipeline_mode = #tpu.pipeline_mode<synchronous>, transform_indices = @transform_16, window_bounds = array<i64: 16, 4>}, {pipeline_mode = #tpu.pipeline_mode<synchronous>, transform_indices = @transform_17, window_bounds = array<i64: 1, 4>}, {pipeline_mode = #tpu.pipeline_mode<synchronous>, transform_indices = @transform_18, window_bounds = array<i64: 4, 16>}, {pipeline_mode = #tpu.pipeline_mode<synchronous>, transform_indices = @transform_19, window_bounds = array<i64: 1, 16>}, {pipeline_mode = #tpu.pipeline_mode<synchronous>, transform_indices = @transform_20, window_bounds = array<i64: 16, 256>}, {pipeline_mode = #tpu.pipeline_mode<synchronous>, transform_indices = @transform_21, window_bounds = array<i64: 1, 256>}, {pipeline_mode = #tpu.pipeline_mode<synchronous>, transform_indices = @transform_22, window_bounds = array<i64: 256, 128>}, {pipeline_mode = #tpu.pipeline_mode<synchronous>, transform_indices = @transform_23, window_bounds = array<i64: 1, 128>}, {transform_indices = @transform_24, window_bounds = array<i64: 256, 128>}, {transform_indices = @transform_25, window_bounds = array<i64: 256, 128>}]} {
    %c0 = arith.constant 0 : index
    %c0_0 = arith.constant 0 : index
    %0 = vector.load %arg1[%c0, %c0_0] : memref<256x32xf32, #tpu.memory_space<vmem>>, vector<256x32xf32>
    %1 = arith.truncf %0 : vector<256x32xf32> to vector<256x32xbf16>
    %c0_1 = arith.constant 0 : index
    %c0_2 = arith.constant 0 : index
    %2 = vector.load %arg3[%c0_1, %c0_2] : memref<32x256xbf16, #tpu.memory_space<vmem>>, vector<32x256xbf16>
    %cst = arith.constant dense<0.000000e+00> : vector<256x256xf32>
    %3 = tpu.matmul %1, %2, %cst {dimension_numbers = #tpu.dot_dimension_numbers<[1], [0], [0], [1], [0, 0, 1, 1], [], []>} : vector<256x32xbf16>, vector<32x256xbf16>, vector<256x256xf32> -> vector<256x256xf32>
    %c0_3 = arith.constant 0 : index
    %c0_4 = arith.constant 0 : index
    %4 = vector.load %arg4[%c0_3, %c0_4] : memref<1x256xf32, #tpu.memory_space<vmem>>, vector<1x256xf32>
    %5 = vector.broadcast %4 : vector<1x256xf32> to vector<256x256xf32>
    %6 = arith.addf %3, %5 : vector<256x256xf32>
    %cst_5 = arith.constant 0.000000e+00 : f32
    %7 = vector.broadcast %cst_5 : f32 to vector<256x256xf32>
    %8 = arith.maximumf %6, %7 : vector<256x256xf32>
    %9 = vector.extract_strided_slice %8 {offsets = [0, 0], sizes = [256, 128], strides = [1, 1]} : vector<256x256xf32> to vector<256x128xf32>
    %10 = vector.extract_strided_slice %8 {offsets = [0, 128], sizes = [256, 128], strides = [1, 1]} : vector<256x256xf32> to vector<256x128xf32>
    %11 = arith.truncf %9 : vector<256x128xf32> to vector<256x128xbf16>
    %c0_6 = arith.constant 0 : index
    %c0_7 = arith.constant 0 : index
    %12 = vector.load %arg5[%c0_6, %c0_7] : memref<128x64xbf16, #tpu.memory_space<vmem>>, vector<128x64xbf16>
    %cst_8 = arith.constant dense<0.000000e+00> : vector<256x64xf32>
    %13 = tpu.matmul %11, %12, %cst_8 {dimension_numbers = #tpu.dot_dimension_numbers<[1], [0], [0], [1], [0, 0, 1, 1], [], []>} : vector<256x128xbf16>, vector<128x64xbf16>, vector<256x64xf32> -> vector<256x64xf32>
    %c0_9 = arith.constant 0 : index
    %c0_10 = arith.constant 0 : index
    %14 = vector.load %arg6[%c0_9, %c0_10] : memref<1x64xf32, #tpu.memory_space<vmem>>, vector<1x64xf32>
    %15 = vector.broadcast %14 : vector<1x64xf32> to vector<256x64xf32>
    %16 = arith.addf %13, %15 : vector<256x64xf32>
    %cst_11 = arith.constant 0.000000e+00 : f32
    %17 = vector.broadcast %cst_11 : f32 to vector<256x64xf32>
    %18 = arith.maximumf %16, %17 : vector<256x64xf32>
    %19 = arith.truncf %18 : vector<256x64xf32> to vector<256x64xbf16>
    %c0_12 = arith.constant 0 : index
    %c0_13 = arith.constant 0 : index
    %20 = vector.load %arg7[%c0_12, %c0_13] : memref<64x16xbf16, #tpu.memory_space<vmem>>, vector<64x16xbf16>
    %cst_14 = arith.constant dense<0.000000e+00> : vector<256x16xf32>
    %21 = tpu.matmul %19, %20, %cst_14 {dimension_numbers = #tpu.dot_dimension_numbers<[1], [0], [0], [1], [0, 0, 1, 1], [], []>} : vector<256x64xbf16>, vector<64x16xbf16>, vector<256x16xf32> -> vector<256x16xf32>
    %c0_15 = arith.constant 0 : index
    %c0_16 = arith.constant 0 : index
    %22 = vector.load %arg8[%c0_15, %c0_16] : memref<1x16xf32, #tpu.memory_space<vmem>>, vector<1x16xf32>
    %23 = vector.broadcast %22 : vector<1x16xf32> to vector<256x16xf32>
    %24 = arith.addf %21, %23 : vector<256x16xf32>
    %cst_17 = arith.constant 0.000000e+00 : f32
    %25 = vector.broadcast %cst_17 : f32 to vector<256x16xf32>
    %26 = arith.maximumf %24, %25 : vector<256x16xf32>
    %27 = arith.truncf %26 : vector<256x16xf32> to vector<256x16xbf16>
    %c0_18 = arith.constant 0 : index
    %c0_19 = arith.constant 0 : index
    %28 = vector.load %arg9[%c0_18, %c0_19] : memref<16x8xbf16, #tpu.memory_space<vmem>>, vector<16x8xbf16>
    %cst_20 = arith.constant dense<0.000000e+00> : vector<256x8xf32>
    %29 = tpu.matmul %27, %28, %cst_20 {dimension_numbers = #tpu.dot_dimension_numbers<[1], [0], [0], [1], [0, 0, 1, 1], [], []>} : vector<256x16xbf16>, vector<16x8xbf16>, vector<256x8xf32> -> vector<256x8xf32>
    %c0_21 = arith.constant 0 : index
    %c0_22 = arith.constant 0 : index
    %30 = vector.load %arg10[%c0_21, %c0_22] : memref<1x8xf32, #tpu.memory_space<vmem>>, vector<1x8xf32>
    %31 = vector.broadcast %30 : vector<1x8xf32> to vector<256x8xf32>
    %32 = arith.addf %29, %31 : vector<256x8xf32>
    %33 = vector.extract_strided_slice %32 {offsets = [0, 0], sizes = [256, 4], strides = [1, 1]} : vector<256x8xf32> to vector<256x4xf32>
    %34 = vector.extract_strided_slice %32 {offsets = [0, 4], sizes = [256, 4], strides = [1, 1]} : vector<256x8xf32> to vector<256x4xf32>
    %35 = arith.truncf %10 : vector<256x128xf32> to vector<256x128xbf16>
    %c0_23 = arith.constant 0 : index
    %c0_24 = arith.constant 0 : index
    %36 = vector.load %arg11[%c0_23, %c0_24] : memref<128x64xbf16, #tpu.memory_space<vmem>>, vector<128x64xbf16>
    %cst_25 = arith.constant dense<0.000000e+00> : vector<256x64xf32>
    %37 = tpu.matmul %35, %36, %cst_25 {dimension_numbers = #tpu.dot_dimension_numbers<[1], [0], [0], [1], [0, 0, 1, 1], [], []>} : vector<256x128xbf16>, vector<128x64xbf16>, vector<256x64xf32> -> vector<256x64xf32>
    %c0_26 = arith.constant 0 : index
    %c0_27 = arith.constant 0 : index
    %38 = vector.load %arg12[%c0_26, %c0_27] : memref<1x64xf32, #tpu.memory_space<vmem>>, vector<1x64xf32>
    %39 = vector.broadcast %38 : vector<1x64xf32> to vector<256x64xf32>
    %40 = arith.addf %37, %39 : vector<256x64xf32>
    %cst_28 = arith.constant 0.000000e+00 : f32
    %41 = vector.broadcast %cst_28 : f32 to vector<256x64xf32>
    %42 = arith.maximumf %40, %41 : vector<256x64xf32>
    %43 = arith.truncf %42 : vector<256x64xf32> to vector<256x64xbf16>
    %c0_29 = arith.constant 0 : index
    %c0_30 = arith.constant 0 : index
    %44 = vector.load %arg13[%c0_29, %c0_30] : memref<64x16xbf16, #tpu.memory_space<vmem>>, vector<64x16xbf16>
    %cst_31 = arith.constant dense<0.000000e+00> : vector<256x16xf32>
    %45 = tpu.matmul %43, %44, %cst_31 {dimension_numbers = #tpu.dot_dimension_numbers<[1], [0], [0], [1], [0, 0, 1, 1], [], []>} : vector<256x64xbf16>, vector<64x16xbf16>, vector<256x16xf32> -> vector<256x16xf32>
    %c0_32 = arith.constant 0 : index
    %c0_33 = arith.constant 0 : index
    %46 = vector.load %arg14[%c0_32, %c0_33] : memref<1x16xf32, #tpu.memory_space<vmem>>, vector<1x16xf32>
    %47 = vector.broadcast %46 : vector<1x16xf32> to vector<256x16xf32>
    %48 = arith.addf %45, %47 : vector<256x16xf32>
    %cst_34 = arith.constant 0.000000e+00 : f32
    %49 = vector.broadcast %cst_34 : f32 to vector<256x16xf32>
    %50 = arith.maximumf %48, %49 : vector<256x16xf32>
    %51 = arith.truncf %50 : vector<256x16xf32> to vector<256x16xbf16>
    %c0_35 = arith.constant 0 : index
    %c0_36 = arith.constant 0 : index
    %52 = vector.load %arg15[%c0_35, %c0_36] : memref<16x16xbf16, #tpu.memory_space<vmem>>, vector<16x16xbf16>
    %cst_37 = arith.constant dense<0.000000e+00> : vector<256x16xf32>
    %53 = tpu.matmul %51, %52, %cst_37 {dimension_numbers = #tpu.dot_dimension_numbers<[1], [0], [0], [1], [0, 0, 1, 1], [], []>} : vector<256x16xbf16>, vector<16x16xbf16>, vector<256x16xf32> -> vector<256x16xf32>
    %c0_38 = arith.constant 0 : index
    %c0_39 = arith.constant 0 : index
    %54 = vector.load %arg16[%c0_38, %c0_39] : memref<1x16xf32, #tpu.memory_space<vmem>>, vector<1x16xf32>
    %55 = vector.broadcast %54 : vector<1x16xf32> to vector<256x16xf32>
    %56 = arith.addf %53, %55 : vector<256x16xf32>
    %cst_40 = arith.constant 0.000000e+00 : f32
    %57 = vector.broadcast %cst_40 : f32 to vector<256x16xf32>
    %58 = arith.maximumf %56, %57 : vector<256x16xf32>
    %59 = arith.truncf %58 : vector<256x16xf32> to vector<256x16xbf16>
    %c0_41 = arith.constant 0 : index
    %c0_42 = arith.constant 0 : index
    %60 = vector.load %arg17[%c0_41, %c0_42] : memref<16x4xbf16, #tpu.memory_space<vmem>>, vector<16x4xbf16>
    %cst_43 = arith.constant dense<0.000000e+00> : vector<256x4xf32>
    %61 = tpu.matmul %59, %60, %cst_43 {dimension_numbers = #tpu.dot_dimension_numbers<[1], [0], [0], [1], [0, 0, 1, 1], [], []>} : vector<256x16xbf16>, vector<16x4xbf16>, vector<256x4xf32> -> vector<256x4xf32>
    %c0_44 = arith.constant 0 : index
    %c0_45 = arith.constant 0 : index
    %62 = vector.load %arg18[%c0_44, %c0_45] : memref<1x4xf32, #tpu.memory_space<vmem>>, vector<1x4xf32>
    %63 = vector.broadcast %62 : vector<1x4xf32> to vector<256x4xf32>
    %64 = arith.addf %61, %63 : vector<256x4xf32>
    %cst_46 = arith.constant dense<0xFF800000> : vector<256xf32>
    %65 = vector.multi_reduction <maximumf>, %64, %cst_46 [1] : vector<256x4xf32> to vector<256xf32>
    %66 = vector.shape_cast %65 : vector<256xf32> to vector<256x1xf32>
    %67 = vector.broadcast %66 : vector<256x1xf32> to vector<256x4xf32>
    %68 = arith.subf %64, %67 : vector<256x4xf32>
    %69 = math.exp %68 : vector<256x4xf32>
    %cst_47 = arith.constant dense<0.000000e+00> : vector<256xf32>
    %70 = vector.multi_reduction <add>, %69, %cst_47 [1] : vector<256x4xf32> to vector<256xf32>
    %71 = vector.shape_cast %70 : vector<256xf32> to vector<256x1xf32>
    %72 = tpu.reciprocal %71 {approx = true} : vector<256x1xf32> -> vector<256x1xf32>
    %73 = vector.broadcast %72 : vector<256x1xf32> to vector<256x4xf32>
    %74 = arith.mulf %69, %73 : vector<256x4xf32>
    %c0_48 = arith.constant 0 : index
    %c0_49 = arith.constant 0 : index
    %75 = vector.load %arg2[%c0_48, %c0_49] : memref<256x4xf32, #tpu.memory_space<vmem>>, vector<256x4xf32>
    %cst_50 = arith.constant 5.000000e-01 : f32
    %76 = vector.broadcast %cst_50 : f32 to vector<256x4xf32>
    %77 = arith.mulf %76, %34 : vector<256x4xf32>
    %78 = math.exp %77 : vector<256x4xf32>
    %79 = arith.mulf %75, %78 : vector<256x4xf32>
    %80 = arith.addf %33, %79 : vector<256x4xf32>
    %81 = arith.truncf %80 : vector<256x4xf32> to vector<256x4xbf16>
    %c0_51 = arith.constant 0 : index
    %c0_52 = arith.constant 0 : index
    %82 = vector.load %arg19[%c0_51, %c0_52] : memref<4x16xbf16, #tpu.memory_space<vmem>>, vector<4x16xbf16>
    %cst_53 = arith.constant dense<0.000000e+00> : vector<256x16xf32>
    %83 = tpu.matmul %81, %82, %cst_53 {dimension_numbers = #tpu.dot_dimension_numbers<[1], [0], [0], [1], [0, 0, 1, 1], [], []>} : vector<256x4xbf16>, vector<4x16xbf16>, vector<256x16xf32> -> vector<256x16xf32>
    %c0_54 = arith.constant 0 : index
    %c0_55 = arith.constant 0 : index
    %84 = vector.load %arg20[%c0_54, %c0_55] : memref<1x16xf32, #tpu.memory_space<vmem>>, vector<1x16xf32>
    %85 = vector.broadcast %84 : vector<1x16xf32> to vector<256x16xf32>
    %86 = arith.addf %83, %85 : vector<256x16xf32>
    %cst_56 = arith.constant 0.000000e+00 : f32
    %87 = vector.broadcast %cst_56 : f32 to vector<256x16xf32>
    %88 = arith.maximumf %86, %87 : vector<256x16xf32>
    %89 = arith.truncf %88 : vector<256x16xf32> to vector<256x16xbf16>
    %c0_57 = arith.constant 0 : index
    %c0_58 = arith.constant 0 : index
    %90 = vector.load %arg21[%c0_57, %c0_58] : memref<16x256xbf16, #tpu.memory_space<vmem>>, vector<16x256xbf16>
    %cst_59 = arith.constant dense<0.000000e+00> : vector<256x256xf32>
    %91 = tpu.matmul %89, %90, %cst_59 {dimension_numbers = #tpu.dot_dimension_numbers<[1], [0], [0], [1], [0, 0, 1, 1], [], []>} : vector<256x16xbf16>, vector<16x256xbf16>, vector<256x256xf32> -> vector<256x256xf32>
    %c0_60 = arith.constant 0 : index
    %c0_61 = arith.constant 0 : index
    %92 = vector.load %arg22[%c0_60, %c0_61] : memref<1x256xf32, #tpu.memory_space<vmem>>, vector<1x256xf32>
    %93 = vector.broadcast %92 : vector<1x256xf32> to vector<256x256xf32>
    %94 = arith.addf %91, %93 : vector<256x256xf32>
    %cst_62 = arith.constant 0.000000e+00 : f32
    %95 = vector.broadcast %cst_62 : f32 to vector<256x256xf32>
    %96 = arith.maximumf %94, %95 : vector<256x256xf32>
    %97 = arith.truncf %96 : vector<256x256xf32> to vector<256x256xbf16>
    %c0_63 = arith.constant 0 : index
    %c0_64 = arith.constant 0 : index
    %98 = vector.load %arg23[%c0_63, %c0_64] : memref<256x128xbf16, #tpu.memory_space<vmem>>, vector<256x128xbf16>
    %cst_65 = arith.constant dense<0.000000e+00> : vector<256x128xf32>
    %99 = tpu.matmul %97, %98, %cst_65 {dimension_numbers = #tpu.dot_dimension_numbers<[1], [0], [0], [1], [0, 0, 1, 1], [], []>} : vector<256x256xbf16>, vector<256x128xbf16>, vector<256x128xf32> -> vector<256x128xf32>
    %c0_66 = arith.constant 0 : index
    %c0_67 = arith.constant 0 : index
    %100 = vector.load %arg24[%c0_66, %c0_67] : memref<1x128xf32, #tpu.memory_space<vmem>>, vector<1x128xf32>
    %101 = vector.broadcast %100 : vector<1x128xf32> to vector<256x128xf32>
    %102 = arith.addf %99, %101 : vector<256x128xf32>
    %cst_68 = arith.constant 0.000000e+00 : f32
    %103 = vector.broadcast %cst_68 : f32 to vector<256x128xf32>
    %104 = arith.subf %103, %102 : vector<256x128xf32>
    %105 = math.exp %104 : vector<256x128xf32>
    %cst_69 = arith.constant 1.000000e+00 : f32
    %106 = vector.broadcast %cst_69 : f32 to vector<256x128xf32>
    %107 = arith.addf %106, %105 : vector<256x128xf32>
    %108 = tpu.reciprocal %107 {approx = true} : vector<256x128xf32> -> vector<256x128xf32>
    %c0_70 = arith.constant 0 : index
    %c0_71 = arith.constant 0 : index
    %109 = vector.load %arg26[%c0_70, %c0_71] : memref<256x128xf32, #tpu.memory_space<vmem>>, vector<256x128xf32>
    tpu.vector_store %arg26[%c0_70, %c0_71], %108 {strides = array<i32>} : memref<256x128xf32, #tpu.memory_space<vmem>>, vector<256x128xf32>,
    %110 = vector.extract_strided_slice %74 {offsets = [0, 0], sizes = [256, 1], strides = [1, 1]} : vector<256x4xf32> to vector<256x1xf32>
    %111 = vector.extract_strided_slice %108 {offsets = [0, 0], sizes = [256, 32], strides = [1, 1]} : vector<256x128xf32> to vector<256x32xf32>
    %112 = vector.broadcast %110 : vector<256x1xf32> to vector<256x32xf32>
    %113 = arith.mulf %112, %111 : vector<256x32xf32>
    %114 = vector.extract_strided_slice %74 {offsets = [0, 1], sizes = [256, 1], strides = [1, 1]} : vector<256x4xf32> to vector<256x1xf32>
    %115 = vector.extract_strided_slice %108 {offsets = [0, 32], sizes = [256, 32], strides = [1, 1]} : vector<256x128xf32> to vector<256x32xf32>
    %116 = vector.broadcast %114 : vector<256x1xf32> to vector<256x32xf32>
    %117 = arith.mulf %116, %115 : vector<256x32xf32>
    %118 = arith.addf %113, %117 : vector<256x32xf32>
    %119 = vector.extract_strided_slice %74 {offsets = [0, 2], sizes = [256, 1], strides = [1, 1]} : vector<256x4xf32> to vector<256x1xf32>
    %120 = vector.extract_strided_slice %108 {offsets = [0, 64], sizes = [256, 32], strides = [1, 1]} : vector<256x128xf32> to vector<256x32xf32>
    %121 = vector.broadcast %119 : vector<256x1xf32> to vector<256x32xf32>
    %122 = arith.mulf %121, %120 : vector<256x32xf32>
    %123 = arith.addf %118, %122 : vector<256x32xf32>
    %124 = vector.extract_strided_slice %74 {offsets = [0, 3], sizes = [256, 1], strides = [1, 1]} : vector<256x4xf32> to vector<256x1xf32>
    %125 = vector.extract_strided_slice %108 {offsets = [0, 96], sizes = [256, 32], strides = [1, 1]} : vector<256x128xf32> to vector<256x32xf32>
    %126 = vector.broadcast %124 : vector<256x1xf32> to vector<256x32xf32>
    %127 = arith.mulf %126, %125 : vector<256x32xf32>
    %128 = arith.addf %123, %127 : vector<256x32xf32>
    %cst_72 = arith.constant 0.000000e+00 : f32
    %129 = vector.broadcast %cst_72 : f32 to vector<256x84xf32>
    %130 = tpu.concatenate %128, %33, %34, %74, %129 in 1 : vector<256x32xf32>, vector<256x4xf32>, vector<256x4xf32>, vector<256x4xf32>, vector<256x84xf32> -> vector<256x128xf32>
    %c0_73 = arith.constant 0 : index
    %c0_74 = arith.constant 0 : index
    %131 = vector.load %arg25[%c0_73, %c0_74] : memref<256x128xf32, #tpu.memory_space<vmem>>, vector<256x128xf32>
    tpu.vector_store %arg25[%c0_73, %c0_74], %130 {strides = array<i32>} : memref<256x128xf32, #tpu.memory_space<vmem>>, vector<256x128xf32>,
    return
  }
  func.func @transform_0(%arg0: i32) -> (i32, i32) {
    %c0_i32 = arith.constant 0 : i32
    %c0_i32_0 = arith.constant 0 : i32
    return %arg0, %c0_i32 : i32, i32
  }
  func.func @transform_1(%arg0: i32) -> (i32, i32) {
    %c0_i32 = arith.constant 0 : i32
    %c0_i32_0 = arith.constant 0 : i32
    return %arg0, %c0_i32 : i32, i32
  }
  func.func @transform_2(%arg0: i32) -> (i32, i32) {
    %c0_i32 = arith.constant 0 : i32
    %c0_i32_0 = arith.constant 0 : i32
    %c0_i32_1 = arith.constant 0 : i32
    return %c0_i32, %c0_i32_0 : i32, i32
  }
  func.func @transform_3(%arg0: i32) -> (i32, i32) {
    %c0_i32 = arith.constant 0 : i32
    %c0_i32_0 = arith.constant 0 : i32
    %c0_i32_1 = arith.constant 0 : i32
    return %c0_i32, %c0_i32_0 : i32, i32
  }
  func.func @transform_4(%arg0: i32) -> (i32, i32) {
    %c0_i32 = arith.constant 0 : i32
    %c0_i32_0 = arith.constant 0 : i32
    %c0_i32_1 = arith.constant 0 : i32
    return %c0_i32, %c0_i32_0 : i32, i32
  }
  func.func @transform_5(%arg0: i32) -> (i32, i32) {
    %c0_i32 = arith.constant 0 : i32
    %c0_i32_0 = arith.constant 0 : i32
    %c0_i32_1 = arith.constant 0 : i32
    return %c0_i32, %c0_i32_0 : i32, i32
  }
  func.func @transform_6(%arg0: i32) -> (i32, i32) {
    %c0_i32 = arith.constant 0 : i32
    %c0_i32_0 = arith.constant 0 : i32
    %c0_i32_1 = arith.constant 0 : i32
    return %c0_i32, %c0_i32_0 : i32, i32
  }
  func.func @transform_7(%arg0: i32) -> (i32, i32) {
    %c0_i32 = arith.constant 0 : i32
    %c0_i32_0 = arith.constant 0 : i32
    %c0_i32_1 = arith.constant 0 : i32
    return %c0_i32, %c0_i32_0 : i32, i32
  }
  func.func @transform_8(%arg0: i32) -> (i32, i32) {
    %c0_i32 = arith.constant 0 : i32
    %c0_i32_0 = arith.constant 0 : i32
    %c0_i32_1 = arith.constant 0 : i32
    return %c0_i32, %c0_i32_0 : i32, i32
  }
  func.func @transform_9(%arg0: i32) -> (i32, i32) {
    %c0_i32 = arith.constant 0 : i32
    %c0_i32_0 = arith.constant 0 : i32
    %c0_i32_1 = arith.constant 0 : i32
    return %c0_i32, %c0_i32_0 : i32, i32
  }
  func.func @transform_10(%arg0: i32) -> (i32, i32) {
    %c0_i32 = arith.constant 0 : i32
    %c0_i32_0 = arith.constant 0 : i32
    %c0_i32_1 = arith.constant 0 : i32
    return %c0_i32, %c0_i32_0 : i32, i32
  }
  func.func @transform_11(%arg0: i32) -> (i32, i32) {
    %c0_i32 = arith.constant 0 : i32
    %c0_i32_0 = arith.constant 0 : i32
    %c0_i32_1 = arith.constant 0 : i32
    return %c0_i32, %c0_i32_0 : i32, i32
  }
  func.func @transform_12(%arg0: i32) -> (i32, i32) {
    %c0_i32 = arith.constant 0 : i32
    %c0_i32_0 = arith.constant 0 : i32
    %c0_i32_1 = arith.constant 0 : i32
    return %c0_i32, %c0_i32_0 : i32, i32
  }
  func.func @transform_13(%arg0: i32) -> (i32, i32) {
    %c0_i32 = arith.constant 0 : i32
    %c0_i32_0 = arith.constant 0 : i32
    %c0_i32_1 = arith.constant 0 : i32
    return %c0_i32, %c0_i32_0 : i32, i32
  }
  func.func @transform_14(%arg0: i32) -> (i32, i32) {
    %c0_i32 = arith.constant 0 : i32
    %c0_i32_0 = arith.constant 0 : i32
    %c0_i32_1 = arith.constant 0 : i32
    return %c0_i32, %c0_i32_0 : i32, i32
  }
  func.func @transform_15(%arg0: i32) -> (i32, i32) {
    %c0_i32 = arith.constant 0 : i32
    %c0_i32_0 = arith.constant 0 : i32
    %c0_i32_1 = arith.constant 0 : i32
    return %c0_i32, %c0_i32_0 : i32, i32
  }
  func.func @transform_16(%arg0: i32) -> (i32, i32) {
    %c0_i32 = arith.constant 0 : i32
    %c0_i32_0 = arith.constant 0 : i32
    %c0_i32_1 = arith.constant 0 : i32
    return %c0_i32, %c0_i32_0 : i32, i32
  }
  func.func @transform_17(%arg0: i32) -> (i32, i32) {
    %c0_i32 = arith.constant 0 : i32
    %c0_i32_0 = arith.constant 0 : i32
    %c0_i32_1 = arith.constant 0 : i32
    return %c0_i32, %c0_i32_0 : i32, i32
  }
  func.func @transform_18(%arg0: i32) -> (i32, i32) {
    %c0_i32 = arith.constant 0 : i32
    %c0_i32_0 = arith.constant 0 : i32
    %c0_i32_1 = arith.constant 0 : i32
    return %c0_i32, %c0_i32_0 : i32, i32
  }
  func.func @transform_19(%arg0: i32) -> (i32, i32) {
    %c0_i32 = arith.constant 0 : i32
    %c0_i32_0 = arith.constant 0 : i32
    %c0_i32_1 = arith.constant 0 : i32
    return %c0_i32, %c0_i32_0 : i32, i32
  }
  func.func @transform_20(%arg0: i32) -> (i32, i32) {
    %c0_i32 = arith.constant 0 : i32
    %c0_i32_0 = arith.constant 0 : i32
    %c0_i32_1 = arith.constant 0 : i32
    return %c0_i32, %c0_i32_0 : i32, i32
  }
  func.func @transform_21(%arg0: i32) -> (i32, i32) {
    %c0_i32 = arith.constant 0 : i32
    %c0_i32_0 = arith.constant 0 : i32
    %c0_i32_1 = arith.constant 0 : i32
    return %c0_i32, %c0_i32_0 : i32, i32
  }
  func.func @transform_22(%arg0: i32) -> (i32, i32) {
    %c0_i32 = arith.constant 0 : i32
    %c0_i32_0 = arith.constant 0 : i32
    %c0_i32_1 = arith.constant 0 : i32
    return %c0_i32, %c0_i32_0 : i32, i32
  }
  func.func @transform_23(%arg0: i32) -> (i32, i32) {
    %c0_i32 = arith.constant 0 : i32
    %c0_i32_0 = arith.constant 0 : i32
    %c0_i32_1 = arith.constant 0 : i32
    return %c0_i32, %c0_i32_0 : i32, i32
  }
  func.func @transform_24(%arg0: i32) -> (i32, i32) {
    %c0_i32 = arith.constant 0 : i32
    %c0_i32_0 = arith.constant 0 : i32
    return %arg0, %c0_i32 : i32, i32
  }
  func.func @transform_25(%arg0: i32) -> (i32, i32) {
    %c0_i32 = arith.constant 0 : i32
    %c0_i32_0 = arith.constant 0 : i32
    return %arg0, %c0_i32 : i32, i32
  }
}

</mosaic_0001>

<llo_original>
// kernel: tpu_custom_call.1
$region0: #{tpu_custom_call.1}
  #allocation0 [shape = 'u32[]', space=smem, size = 0x4, offset = 0x4, fixed_abs, tag = 'smem constant byte address 0x4 - core index']
  #allocation1 [shape = 'u32[144,128]{1,0:T(1,128)}', space=vmem, size = 0x12000, scoped, tag = 'internal scratch']
  %s0 = inlined_call_operand.vmem [shape: f32[512,32], index: 0, kind: input, shape index: {}]
  %s1 = inlined_call_operand.vmem [shape: f32[512,4], index: 1, kind: input, shape index: {}]
  %s2 = inlined_call_operand.vmem [shape: bf16[32,256], index: 2, kind: input, shape index: {}]
  %s3 = inlined_call_operand.vmem [shape: f32[1,256], index: 3, kind: input, shape index: {}]
  %s4 = inlined_call_operand.vmem [shape: bf16[128,64], index: 4, kind: input, shape index: {}]
  %s5 = inlined_call_operand.vmem [shape: f32[1,64], index: 5, kind: input, shape index: {}]
  %s6 = inlined_call_operand.vmem [shape: bf16[64,16], index: 6, kind: input, shape index: {}]
  %s7 = inlined_call_operand.vmem [shape: f32[1,16], index: 7, kind: input, shape index: {}]
  %s8 = inlined_call_operand.vmem [shape: bf16[16,8], index: 8, kind: input, shape index: {}]
  %s9 = inlined_call_operand.vmem [shape: f32[1,8], index: 9, kind: input, shape index: {}]
  %s10 = inlined_call_operand.vmem [shape: bf16[128,64], index: 10, kind: input, shape index: {}]
  %s11 = inlined_call_operand.vmem [shape: f32[1,64], index: 11, kind: input, shape index: {}]
  %s12 = inlined_call_operand.vmem [shape: bf16[64,16], index: 12, kind: input, shape index: {}]
  %s13 = inlined_call_operand.vmem [shape: f32[1,16], index: 13, kind: input, shape index: {}]
  %s14 = inlined_call_operand.vmem [shape: bf16[16,16], index: 14, kind: input, shape index: {}]
  %s15 = inlined_call_operand.vmem [shape: f32[1,16], index: 15, kind: input, shape index: {}]
  %s16 = inlined_call_operand.vmem [shape: bf16[16,4], index: 16, kind: input, shape index: {}]
  %s17 = inlined_call_operand.vmem [shape: f32[1,4], index: 17, kind: input, shape index: {}]
  %s18 = inlined_call_operand.vmem [shape: bf16[4,16], index: 18, kind: input, shape index: {}]
  %s19 = inlined_call_operand.vmem [shape: f32[1,16], index: 19, kind: input, shape index: {}]
  %s20 = inlined_call_operand.vmem [shape: bf16[16,256], index: 20, kind: input, shape index: {}]
  %s21 = inlined_call_operand.vmem [shape: f32[1,256], index: 21, kind: input, shape index: {}]
  %s22 = inlined_call_operand.vmem [shape: bf16[256,128], index: 22, kind: input, shape index: {}]
  %s23 = inlined_call_operand.vmem [shape: f32[1,128], index: 23, kind: input, shape index: {}]
  %s24 = inlined_call_operand.hbm [shape: f32[512,128], index: 24, kind: output, shape index: {0}]
  %s25 = inlined_call_operand.hbm [shape: f32[512,128], index: 25, kind: output, shape index: {1}]
  %26 = xla_tuple %s24, %s25
  %s27 = sld [smem:[#allocation0]]
  $region137: #{tpu_custom_call.1} parent=0
    _
  %s29 = ssub.s32 1, %s27
  %s30 = scalar_select 0, %s29, %s27
  $region1: #{tpu_custom_call.1} parent=0
    #allocation2 [shape = 'u8[262144]{0}', space=vmem, size = 0x40000, scoped, tag = 'output window, operand 0']
    #allocation3 [shape = 's32[2]{0}', space=sflag, size = 0x8, scoped, tag = 'scoped memory for tpu_custom_call.1']
    #allocation4 [shape = 'u8[262144]{0}', space=vmem, size = 0x40000, scoped, tag = 'output window, operand 1']
    #allocation5 [shape = 's32[2]{0}', space=sflag, size = 0x8, scoped, tag = 'scoped memory for tpu_custom_call.1']
    %31 = vsyncpa [#allocation3], 0
    %s32 = scalar_lea.sflag [#allocation3], 1
    %33 = vsyncpa %s32, 0
    %34 = vsyncpa [#allocation5], 0
    %s35 = scalar_lea.sflag [#allocation5], 1
    %36 = vsyncpa %s35, 0
    loop: start=0, step=1, limit=4
    $region2: #{tpu_custom_call.1} parent=1 // loop_pre_header
      _
    $region3: #{tpu_custom_call.1} parent=1 // loop_header
      %s38 = sphi 0, %s42
      %p39 = scmp.ge.s32.totalorder %s38, 4
      %s48 = sphi 0, %s50
      %s51 = sphi 0, %s48
      %s52 = sphi 0, %s51
      %s68 = sphi 0, %s52
      %s74 = sphi 0, %s76
      %s77 = sphi 0, %s74
      %s78 = sphi 0, %s77
      %s94 = sphi 0, %s78
      %s98 = sphi 0, %s98
      %s100 = sphi 0, %s98
      %s101 = sphi 0, %s100
      %s115 = sphi 0, %s101
      %s119 = sphi 0, %s119
      %s121 = sphi 0, %s119
      %s122 = sphi 0, %s121
      %s136 = sphi 0, %s122
      %s140 = sphi 0, %s140
      %s142 = sphi 0, %s140
      %s143 = sphi 0, %s142
      %s157 = sphi 0, %s143
      %s161 = sphi 0, %s161
      %s163 = sphi 0, %s161
      %s164 = sphi 0, %s163
      %s178 = sphi 0, %s164
      %s182 = sphi 0, %s182
      %s184 = sphi 0, %s182
      %s185 = sphi 0, %s184
      %s199 = sphi 0, %s185
      %s203 = sphi 0, %s203
      %s205 = sphi 0, %s203
      %s206 = sphi 0, %s205
      %s220 = sphi 0, %s206
      %s224 = sphi 0, %s224
      %s226 = sphi 0, %s224
      %s227 = sphi 0, %s226
      %s241 = sphi 0, %s227
      %s245 = sphi 0, %s245
      %s247 = sphi 0, %s245
      %s248 = sphi 0, %s247
      %s262 = sphi 0, %s248
      %s266 = sphi 0, %s266
      %s268 = sphi 0, %s266
      %s269 = sphi 0, %s268
      %s283 = sphi 0, %s269
      %s287 = sphi 0, %s287
      %s289 = sphi 0, %s287
      %s290 = sphi 0, %s289
      %s304 = sphi 0, %s290
      %s308 = sphi 0, %s308
      %s310 = sphi 0, %s308
      %s311 = sphi 0, %s310
      %s325 = sphi 0, %s311
      %s329 = sphi 0, %s329
      %s331 = sphi 0, %s329
      %s332 = sphi 0, %s331
      %s346 = sphi 0, %s332
      %s350 = sphi 0, %s350
      %s352 = sphi 0, %s350
      %s353 = sphi 0, %s352
      %s367 = sphi 0, %s353
      %s371 = sphi 0, %s371
      %s373 = sphi 0, %s371
      %s374 = sphi 0, %s373
      %s388 = sphi 0, %s374
      %s392 = sphi 0, %s392
      %s394 = sphi 0, %s392
      %s395 = sphi 0, %s394
      %s409 = sphi 0, %s395
      %s413 = sphi 0, %s413
      %s415 = sphi 0, %s413
      %s416 = sphi 0, %s415
      %s430 = sphi 0, %s416
      %s434 = sphi 0, %s434
      %s436 = sphi 0, %s434
      %s437 = sphi 0, %s436
      %s451 = sphi 0, %s437
      %s455 = sphi 0, %s455
      %s457 = sphi 0, %s455
      %s458 = sphi 0, %s457
      %s472 = sphi 0, %s458
      %s476 = sphi 0, %s476
      %s478 = sphi 0, %s476
      %s479 = sphi 0, %s478
      %s493 = sphi 0, %s479
      %s497 = sphi 0, %s497
      %s499 = sphi 0, %s497
      %s500 = sphi 0, %s499
      %s514 = sphi 0, %s500
      %s518 = sphi 0, %s518
      %s520 = sphi 0, %s518
      %s521 = sphi 0, %s520
      %s535 = sphi 0, %s521
      %s539 = sphi 0, %s539
      %s541 = sphi 0, %s539
      %s542 = sphi 0, %s541
      %s556 = sphi 0, %s542
      %s562 = sphi 0, %s564
      %s565 = sphi 0, %s562
      %s566 = sphi 0, %s565
      %s582 = sphi 0, %s566
      %s588 = sphi 0, %s590
      %s591 = sphi 0, %s588
      %s592 = sphi 0, %s591
      %s608 = sphi 0, %s592
    $region4: #{tpu_custom_call.1} parent=1 // loop_header_branch
      %41 = sbr.rel (%p39) target = $region8
    $region5: #{tpu_custom_call.1} parent=1 // loop_body
      %s43 = ssub.s32 %s38, 1
      %s44 = ssub.s32 %s38, 2
      %s45 = sadd.s32 %s38, 1
      %s46 = ssub.s32 %s38, %s45
      %p47 = scmp.eq.s32.totalorder %s46, 0
      %s49 = sadd.s32 %s48, 1
      %s50 = scalar_select %p47, %s48, %s49
      %p53 = pneg %p47
      %p54 = scmp.eq.s32.totalorder %s38, 1
      %p55 = por %p53, %p54
      %p56 = scmp.ne.s32.totalorder %s48, %s51
      %p57 = scmp.eq.s32.totalorder %s38, 0
      %p58 = por %p56, %p57
      %p59 = scmp.ne.s32.totalorder %s48, %s51
      %p60 = scmp.eq.s32.totalorder %s43, 1
      %p61 = por %p59, %p60
      %p62 = scmp.ne.s32.totalorder %s51, %s52
      %p63 = scmp.eq.s32.totalorder %s43, 0
      %p64 = por %p62, %p63
      %p65 = scmp.ne.s32.totalorder %s51, %s52
      %p66 = scmp.eq.s32.totalorder %s44, 1
      %p67 = por %p65, %p66
      %p69 = scmp.ne.s32.totalorder %s52, %s68
      %p70 = scmp.eq.s32.totalorder %s44, 0
      %p71 = por %p69, %p70
      %s72 = ssub.s32 %s38, %s45
      %p73 = scmp.eq.s32.totalorder %s72, 0
      %s75 = sadd.s32 %s74, 1
      %s76 = scalar_select %p73, %s74, %s75
      %p79 = pneg %p73
      %p80 = scmp.eq.s32.totalorder %s38, 1
      %p81 = por %p79, %p80
      %p82 = scmp.ne.s32.totalorder %s74, %s77
      %p83 = scmp.eq.s32.totalorder %s38, 0
      %p84 = por %p82, %p83
      %p85 = scmp.ne.s32.totalorder %s74, %s77
      %p86 = scmp.eq.s32.totalorder %s43, 1
      %p87 = por %p85, %p86
      %p88 = scmp.ne.s32.totalorder %s77, %s78
      %p89 = scmp.eq.s32.totalorder %s43, 0
      %p90 = por %p88, %p89
      %p91 = scmp.ne.s32.totalorder %s77, %s78
      %p92 = scmp.eq.s32.totalorder %s44, 1
      %p93 = por %p91, %p92
      %p95 = scmp.ne.s32.totalorder %s78, %s94
      %p96 = scmp.eq.s32.totalorder %s44, 0
      %p97 = por %p95, %p96
      %s99 = sadd.s32 %s98, 1
      %p102 = scmp.eq.s32.totalorder %s38, 1
      %p103 = scmp.ne.s32.totalorder %s98, %s100
      %p104 = scmp.eq.s32.totalorder %s38, 0
      %p105 = por %p103, %p104
      %p106 = scmp.ne.s32.totalorder %s98, %s100
      %p107 = scmp.eq.s32.totalorder %s43, 1
      %p108 = por %p106, %p107
      %p109 = scmp.ne.s32.totalorder %s100, %s101
      %p110 = scmp.eq.s32.totalorder %s43, 0
      %p111 = por %p109, %p110
      %p112 = scmp.ne.s32.totalorder %s100, %s101
      %p113 = scmp.eq.s32.totalorder %s44, 1
      %p114 = por %p112, %p113
      %p116 = scmp.ne.s32.totalorder %s101, %s115
      %p117 = scmp.eq.s32.totalorder %s44, 0
      %p118 = por %p116, %p117
      %s120 = sadd.s32 %s119, 1
      %p123 = scmp.eq.s32.totalorder %s38, 1
      %p124 = scmp.ne.s32.totalorder %s119, %s121
      %p125 = scmp.eq.s32.totalorder %s38, 0
      %p126 = por %p124, %p125
      %p127 = scmp.ne.s32.totalorder %s119, %s121
      %p128 = scmp.eq.s32.totalorder %s43, 1
      %p129 = por %p127, %p128
      %p130 = scmp.ne.s32.totalorder %s121, %s122
      %p131 = scmp.eq.s32.totalorder %s43, 0
      %p132 = por %p130, %p131
      %p133 = scmp.ne.s32.totalorder %s121, %s122
      %p134 = scmp.eq.s32.totalorder %s44, 1
      %p135 = por %p133, %p134
      %p137 = scmp.ne.s32.totalorder %s122, %s136
      %p138 = scmp.eq.s32.totalorder %s44, 0
      %p139 = por %p137, %p138
      %s141 = sadd.s32 %s140, 1
      %p144 = scmp.eq.s32.totalorder %s38, 1
      %p145 = scmp.ne.s32.totalorder %s140, %s142
      %p146 = scmp.eq.s32.totalorder %s38, 0
      %p147 = por %p145, %p146
      %p148 = scmp.ne.s32.totalorder %s140, %s142
      %p149 = scmp.eq.s32.totalorder %s43, 1
      %p150 = por %p148, %p149
      %p151 = scmp.ne.s32.totalorder %s142, %s143
      %p152 = scmp.eq.s32.totalorder %s43, 0
      %p153 = por %p151, %p152
      %p154 = scmp.ne.s32.totalorder %s142, %s143
      %p155 = scmp.eq.s32.totalorder %s44, 1
      %p156 = por %p154, %p155
      %p158 = scmp.ne.s32.totalorder %s143, %s157
      %p159 = scmp.eq.s32.totalorder %s44, 0
      %p160 = por %p158, %p159
      %s162 = sadd.s32 %s161, 1
      %p165 = scmp.eq.s32.totalorder %s38, 1
      %p166 = scmp.ne.s32.totalorder %s161, %s163
      %p167 = scmp.eq.s32.totalorder %s38, 0
      %p168 = por %p166, %p167
      %p169 = scmp.ne.s32.totalorder %s161, %s163
      %p170 = scmp.eq.s32.totalorder %s43, 1
      %p171 = por %p169, %p170
      %p172 = scmp.ne.s32.totalorder %s163, %s164
      %p173 = scmp.eq.s32.totalorder %s43, 0
      %p174 = por %p172, %p173
      %p175 = scmp.ne.s32.totalorder %s163, %s164
      %p176 = scmp.eq.s32.totalorder %s44, 1
      %p177 = por %p175, %p176
      %p179 = scmp.ne.s32.totalorder %s164, %s178
      %p180 = scmp.eq.s32.totalorder %s44, 0
      %p181 = por %p179, %p180
      %s183 = sadd.s32 %s182, 1
      %p186 = scmp.eq.s32.totalorder %s38, 1
      %p187 = scmp.ne.s32.totalorder %s182, %s184
      %p188 = scmp.eq.s32.totalorder %s38, 0
      %p189 = por %p187, %p188
      %p190 = scmp.ne.s32.totalorder %s182, %s184
      %p191 = scmp.eq.s32.totalorder %s43, 1
      %p192 = por %p190, %p191
      %p193 = scmp.ne.s32.totalorder %s184, %s185
      %p194 = scmp.eq.s32.totalorder %s43, 0
      %p195 = por %p193, %p194
      %p196 = scmp.ne.s32.totalorder %s184, %s185
      %p197 = scmp.eq.s32.totalorder %s44, 1
      %p198 = por %p196, %p197
      %p200 = scmp.ne.s32.totalorder %s185, %s199
      %p201 = scmp.eq.s32.totalorder %s44, 0
      %p202 = por %p200, %p201
      %s204 = sadd.s32 %s203, 1
      %p207 = scmp.eq.s32.totalorder %s38, 1
      %p208 = scmp.ne.s32.totalorder %s203, %s205
      %p209 = scmp.eq.s32.totalorder %s38, 0
      %p210 = por %p208, %p209
      %p211 = scmp.ne.s32.totalorder %s203, %s205
      %p212 = scmp.eq.s32.totalorder %s43, 1
      %p213 = por %p211, %p212
      %p214 = scmp.ne.s32.totalorder %s205, %s206
      %p215 = scmp.eq.s32.totalorder %s43, 0
      %p216 = por %p214, %p215
      %p217 = scmp.ne.s32.totalorder %s205, %s206
      %p218 = scmp.eq.s32.totalorder %s44, 1
      %p219 = por %p217, %p218
      %p221 = scmp.ne.s32.totalorder %s206, %s220
      %p222 = scmp.eq.s32.totalorder %s44, 0
      %p223 = por %p221, %p222
      %s225 = sadd.s32 %s224, 1
      %p228 = scmp.eq.s32.totalorder %s38, 1
      %p229 = scmp.ne.s32.totalorder %s224, %s226
      %p230 = scmp.eq.s32.totalorder %s38, 0
      %p231 = por %p229, %p230
      %p232 = scmp.ne.s32.totalorder %s224, %s226
      %p233 = scmp.eq.s32.totalorder %s43, 1
      %p234 = por %p232, %p233
      %p235 = scmp.ne.s32.totalorder %s226, %s227
      %p236 = scmp.eq.s32.totalorder %s43, 0
      %p237 = por %p235, %p236
      %p238 = scmp.ne.s32.totalorder %s226, %s227
      %p239 = scmp.eq.s32.totalorder %s44, 1
      %p240 = por %p238, %p239
      %p242 = scmp.ne.s32.totalorder %s227, %s241
      %p243 = scmp.eq.s32.totalorder %s44, 0
      %p244 = por %p242, %p243
      %s246 = sadd.s32 %s245, 1
      %p249 = scmp.eq.s32.totalorder %s38, 1
      %p250 = scmp.ne.s32.totalorder %s245, %s247
      %p251 = scmp.eq.s32.totalorder %s38, 0
      %p252 = por %p250, %p251
      %p253 = scmp.ne.s32.totalorder %s245, %s247
      %p254 = scmp.eq.s32.totalorder %s43, 1
      %p255 = por %p253, %p254
      %p256 = scmp.ne.s32.totalorder %s247, %s248
      %p257 = scmp.eq.s32.totalorder %s43, 0
      %p258 = por %p256, %p257
      %p259 = scmp.ne.s32.totalorder %s247, %s248
      %p260 = scmp.eq.s32.totalorder %s44, 1
      %p261 = por %p259, %p260
      %p263 = scmp.ne.s32.totalorder %s248, %s262
      %p264 = scmp.eq.s32.totalorder %s44, 0
      %p265 = por %p263, %p264
      %s267 = sadd.s32 %s266, 1
      %p270 = scmp.eq.s32.totalorder %s38, 1
      %p271 = scmp.ne.s32.totalorder %s266, %s268
      %p272 = scmp.eq.s32.totalorder %s38, 0
      %p273 = por %p271, %p272
      %p274 = scmp.ne.s32.totalorder %s266, %s268
      %p275 = scmp.eq.s32.totalorder %s43, 1
      %p276 = por %p274, %p275
      %p277 = scmp.ne.s32.totalorder %s268, %s269
      %p278 = scmp.eq.s32.totalorder %s43, 0
      %p279 = por %p277, %p278
      %p280 = scmp.ne.s32.totalorder %s268, %s269
      %p281 = scmp.eq.s32.totalorder %s44, 1
      %p282 = por %p280, %p281
      %p284 = scmp.ne.s32.totalorder %s269, %s283
      %p285 = scmp.eq.s32.totalorder %s44, 0
      %p286 = por %p284, %p285
      %s288 = sadd.s32 %s287, 1
      %p291 = scmp.eq.s32.totalorder %s38, 1
      %p292 = scmp.ne.s32.totalorder %s287, %s289
      %p293 = scmp.eq.s32.totalorder %s38, 0
      %p294 = por %p292, %p293
      %p295 = scmp.ne.s32.totalorder %s287, %s289
      %p296 = scmp.eq.s32.totalorder %s43, 1
      %p297 = por %p295, %p296
      %p298 = scmp.ne.s32.totalorder %s289, %s290
      %p299 = scmp.eq.s32.totalorder %s43, 0
      %p300 = por %p298, %p299
      %p301 = scmp.ne.s32.totalorder %s289, %s290
      %p302 = scmp.eq.s32.totalorder %s44, 1
      %p303 = por %p301, %p302
      %p305 = scmp.ne.s32.totalorder %s290, %s304
      %p306 = scmp.eq.s32.totalorder %s44, 0
      %p307 = por %p305, %p306
      %s309 = sadd.s32 %s308, 1
      %p312 = scmp.eq.s32.totalorder %s38, 1
      %p313 = scmp.ne.s32.totalorder %s308, %s310
      %p314 = scmp.eq.s32.totalorder %s38, 0
      %p315 = por %p313, %p314
      %p316 = scmp.ne.s32.totalorder %s308, %s310
      %p317 = scmp.eq.s32.totalorder %s43, 1
      %p318 = por %p316, %p317
      %p319 = scmp.ne.s32.totalorder %s310, %s311
      %p320 = scmp.eq.s32.totalorder %s43, 0
      %p321 = por %p319, %p320
      %p322 = scmp.ne.s32.totalorder %s310, %s311
      %p323 = scmp.eq.s32.totalorder %s44, 1
      %p324 = por %p322, %p323
      %p326 = scmp.ne.s32.totalorder %s311, %s325
      %p327 = scmp.eq.s32.totalorder %s44, 0
      %p328 = por %p326, %p327
      %s330 = sadd.s32 %s329, 1
      %p333 = scmp.eq.s32.totalorder %s38, 1
      %p334 = scmp.ne.s32.totalorder %s329, %s331
      %p335 = scmp.eq.s32.totalorder %s38, 0
      %p336 = por %p334, %p335
      %p337 = scmp.ne.s32.totalorder %s329, %s331
      %p338 = scmp.eq.s32.totalorder %s43, 1
      %p339 = por %p337, %p338
      %p340 = scmp.ne.s32.totalorder %s331, %s332
      %p341 = scmp.eq.s32.totalorder %s43, 0
      %p342 = por %p340, %p341
      %p343 = scmp.ne.s32.totalorder %s331, %s332
      %p344 = scmp.eq.s32.totalorder %s44, 1
      %p345 = por %p343, %p344
      %p347 = scmp.ne.s32.totalorder %s332, %s346
      %p348 = scmp.eq.s32.totalorder %s44, 0
      %p349 = por %p347, %p348
      %s351 = sadd.s32 %s350, 1
      %p354 = scmp.eq.s32.totalorder %s38, 1
      %p355 = scmp.ne.s32.totalorder %s350, %s352
      %p356 = scmp.eq.s32.totalorder %s38, 0
      %p357 = por %p355, %p356
      %p358 = scmp.ne.s32.totalorder %s350, %s352
      %p359 = scmp.eq.s32.totalorder %s43, 1
      %p360 = por %p358, %p359
      %p361 = scmp.ne.s32.totalorder %s352, %s353
      %p362 = scmp.eq.s32.totalorder %s43, 0
      %p363 = por %p361, %p362
      %p364 = scmp.ne.s32.totalorder %s352, %s353
      %p365 = scmp.eq.s32.totalorder %s44, 1
      %p366 = por %p364, %p365
      %p368 = scmp.ne.s32.totalorder %s353, %s367
      %p369 = scmp.eq.s32.totalorder %s44, 0
      %p370 = por %p368, %p369
      %s372 = sadd.s32 %s371, 1
      %p375 = scmp.eq.s32.totalorder %s38, 1
      %p376 = scmp.ne.s32.totalorder %s371, %s373
      %p377 = scmp.eq.s32.totalorder %s38, 0
      %p378 = por %p376, %p377
      %p379 = scmp.ne.s32.totalorder %s371, %s373
      %p380 = scmp.eq.s32.totalorder %s43, 1
      %p381 = por %p379, %p380
      %p382 = scmp.ne.s32.totalorder %s373, %s374
      %p383 = scmp.eq.s32.totalorder %s43, 0
      %p384 = por %p382, %p383
      %p385 = scmp.ne.s32.totalorder %s373, %s374
      %p386 = scmp.eq.s32.totalorder %s44, 1
      %p387 = por %p385, %p386
      %p389 = scmp.ne.s32.totalorder %s374, %s388
      %p390 = scmp.eq.s32.totalorder %s44, 0
      %p391 = por %p389, %p390
      %s393 = sadd.s32 %s392, 1
      %p396 = scmp.eq.s32.totalorder %s38, 1
      %p397 = scmp.ne.s32.totalorder %s392, %s394
      %p398 = scmp.eq.s32.totalorder %s38, 0
      %p399 = por %p397, %p398
      %p400 = scmp.ne.s32.totalorder %s392, %s394
      %p401 = scmp.eq.s32.totalorder %s43, 1
      %p402 = por %p400, %p401
      %p403 = scmp.ne.s32.totalorder %s394, %s395
      %p404 = scmp.eq.s32.totalorder %s43, 0
      %p405 = por %p403, %p404
      %p406 = scmp.ne.s32.totalorder %s394, %s395
      %p407 = scmp.eq.s32.totalorder %s44, 1
      %p408 = por %p406, %p407
      %p410 = scmp.ne.s32.totalorder %s395, %s409
      %p411 = scmp.eq.s32.totalorder %s44, 0
      %p412 = por %p410, %p411
      %s414 = sadd.s32 %s413, 1
      %p417 = scmp.eq.s32.totalorder %s38, 1
      %p418 = scmp.ne.s32.totalorder %s413, %s415
      %p419 = scmp.eq.s32.totalorder %s38, 0
      %p420 = por %p418, %p419
      %p421 = scmp.ne.s32.totalorder %s413, %s415
      %p422 = scmp.eq.s32.totalorder %s43, 1
      %p423 = por %p421, %p422
      %p424 = scmp.ne.s32.totalorder %s415, %s416
      %p425 = scmp.eq.s32.totalorder %s43, 0
      %p426 = por %p424, %p425
      %p427 = scmp.ne.s32.totalorder %s415, %s416
      %p428 = scmp.eq.s32.totalorder %s44, 1
      %p429 = por %p427, %p428
      %p431 = scmp.ne.s32.totalorder %s416, %s430
      %p432 = scmp.eq.s32.totalorder %s44, 0
      %p433 = por %p431, %p432
      %s435 = sadd.s32 %s434, 1
      %p438 = scmp.eq.s32.totalorder %s38, 1
      %p439 = scmp.ne.s32.totalorder %s434, %s436
      %p440 = scmp.eq.s32.totalorder %s38, 0
      %p441 = por %p439, %p440
      %p442 = scmp.ne.s32.totalorder %s434, %s436
      %p443 = scmp.eq.s32.totalorder %s43, 1
      %p444 = por %p442, %p443
      %p445 = scmp.ne.s32.totalorder %s436, %s437
      %p446 = scmp.eq.s32.totalorder %s43, 0
      %p447 = por %p445, %p446
      %p448 = scmp.ne.s32.totalorder %s436, %s437
      %p449 = scmp.eq.s32.totalorder %s44, 1
      %p450 = por %p448, %p449
      %p452 = scmp.ne.s32.totalorder %s437, %s451
      %p453 = scmp.eq.s32.totalorder %s44, 0
      %p454 = por %p452, %p453
      %s456 = sadd.s32 %s455, 1
      %p459 = scmp.eq.s32.totalorder %s38, 1
      %p460 = scmp.ne.s32.totalorder %s455, %s457
      %p461 = scmp.eq.s32.totalorder %s38, 0
      %p462 = por %p460, %p461
      %p463 = scmp.ne.s32.totalorder %s455, %s457
      %p464 = scmp.eq.s32.totalorder %s43, 1
      %p465 = por %p463, %p464
      %p466 = scmp.ne.s32.totalorder %s457, %s458
      %p467 = scmp.eq.s32.totalorder %s43, 0
      %p468 = por %p466, %p467
      %p469 = scmp.ne.s32.totalorder %s457, %s458
      %p470 = scmp.eq.s32.totalorder %s44, 1
      %p471 = por %p469, %p470
      %p473 = scmp.ne.s32.totalorder %s458, %s472
      %p474 = scmp.eq.s32.totalorder %s44, 0
      %p475 = por %p473, %p474
      %s477 = sadd.s32 %s476, 1
      %p480 = scmp.eq.s32.totalorder %s38, 1
      %p481 = scmp.ne.s32.totalorder %s476, %s478
      %p482 = scmp.eq.s32.totalorder %s38, 0
      %p483 = por %p481, %p482
      %p484 = scmp.ne.s32.totalorder %s476, %s478
      %p485 = scmp.eq.s32.totalorder %s43, 1
      %p486 = por %p484, %p485
      %p487 = scmp.ne.s32.totalorder %s478, %s479
      %p488 = scmp.eq.s32.totalorder %s43, 0
      %p489 = por %p487, %p488
      %p490 = scmp.ne.s32.totalorder %s478, %s479
      %p491 = scmp.eq.s32.totalorder %s44, 1
      %p492 = por %p490, %p491
      %p494 = scmp.ne.s32.totalorder %s479, %s493
      %p495 = scmp.eq.s32.totalorder %s44, 0
      %p496 = por %p494, %p495
      %s498 = sadd.s32 %s497, 1
      %p501 = scmp.eq.s32.totalorder %s38, 1
      %p502 = scmp.ne.s32.totalorder %s497, %s499
      %p503 = scmp.eq.s32.totalorder %s38, 0
      %p504 = por %p502, %p503
      %p505 = scmp.ne.s32.totalorder %s497, %s499
      %p506 = scmp.eq.s32.totalorder %s43, 1
      %p507 = por %p505, %p506
      %p508 = scmp.ne.s32.totalorder %s499, %s500
      %p509 = scmp.eq.s32.totalorder %s43, 0
      %p510 = por %p508, %p509
      %p511 = scmp.ne.s32.totalorder %s499, %s500
      %p512 = scmp.eq.s32.totalorder %s44, 1
      %p513 = por %p511, %p512
      %p515 = scmp.ne.s32.totalorder %s500, %s514
      %p516 = scmp.eq.s32.totalorder %s44, 0
      %p517 = por %p515, %p516
      %s519 = sadd.s32 %s518, 1
      %p522 = scmp.eq.s32.totalorder %s38, 1
      %p523 = scmp.ne.s32.totalorder %s518, %s520
      %p524 = scmp.eq.s32.totalorder %s38, 0
      %p525 = por %p523, %p524
      %p526 = scmp.ne.s32.totalorder %s518, %s520
      %p527 = scmp.eq.s32.totalorder %s43, 1
      %p528 = por %p526, %p527
      %p529 = scmp.ne.s32.totalorder %s520, %s521
      %p530 = scmp.eq.s32.totalorder %s43, 0
      %p531 = por %p529, %p530
      %p532 = scmp.ne.s32.totalorder %s520, %s521
      %p533 = scmp.eq.s32.totalorder %s44, 1
      %p534 = por %p532, %p533
      %p536 = scmp.ne.s32.totalorder %s521, %s535
      %p537 = scmp.eq.s32.totalorder %s44, 0
      %p538 = por %p536, %p537
      %s540 = sadd.s32 %s539, 1
      %p543 = scmp.eq.s32.totalorder %s38, 1
      %p544 = scmp.ne.s32.totalorder %s539, %s541
      %p545 = scmp.eq.s32.totalorder %s38, 0
      %p546 = por %p544, %p545
      %p547 = scmp.ne.s32.totalorder %s539, %s541
      %p548 = scmp.eq.s32.totalorder %s43, 1
      %p549 = por %p547, %p548
      %p550 = scmp.ne.s32.totalorder %s541, %s542
      %p551 = scmp.eq.s32.totalorder %s43, 0
      %p552 = por %p550, %p551
      %p553 = scmp.ne.s32.totalorder %s541, %s542
      %p554 = scmp.eq.s32.totalorder %s44, 1
      %p555 = por %p553, %p554
      %p557 = scmp.ne.s32.totalorder %s542, %s556
      %p558 = scmp.eq.s32.totalorder %s44, 0
      %p559 = por %p557, %p558
      %s560 = ssub.s32 %s38, %s45
      %p561 = scmp.eq.s32.totalorder %s560, 0
      %s563 = sadd.s32 %s562, 1
      %s564 = scalar_select %p561, %s562, %s563
      %p567 = pneg %p561
      %p568 = scmp.eq.s32.totalorder %s38, 1
      %p569 = por %p567, %p568
      %p570 = scmp.ne.s32.totalorder %s562, %s565
      %p571 = scmp.eq.s32.totalorder %s38, 0
      %p572 = por %p570, %p571
      %p573 = scmp.ne.s32.totalorder %s562, %s565
      %p574 = scmp.eq.s32.totalorder %s43, 1
      %p575 = por %p573, %p574
      %p576 = scmp.ne.s32.totalorder %s565, %s566
      %p577 = scmp.eq.s32.totalorder %s43, 0
      %p578 = por %p576, %p577
      %p579 = scmp.ne.s32.totalorder %s565, %s566
      %p580 = scmp.eq.s32.totalorder %s44, 1
      %p581 = por %p579, %p580
      %p583 = scmp.ne.s32.totalorder %s566, %s582
      %p584 = scmp.eq.s32.totalorder %s44, 0
      %p585 = por %p583, %p584
      %s586 = ssub.s32 %s38, %s45
      %p587 = scmp.eq.s32.totalorder %s586, 0
      %s589 = sadd.s32 %s588, 1
      %s590 = scalar_select %p587, %s588, %s589
      %p593 = pneg %p587
      %p594 = scmp.eq.s32.totalorder %s38, 1
      %p595 = por %p593, %p594
      %p596 = scmp.ne.s32.totalorder %s588, %s591
      %p597 = scmp.eq.s32.totalorder %s38, 0
      %p598 = por %p596, %p597
      %p599 = scmp.ne.s32.totalorder %s588, %s591
      %p600 = scmp.eq.s32.totalorder %s43, 1
      %p601 = por %p599, %p600
      %p602 = scmp.ne.s32.totalorder %s591, %s592
      %p603 = scmp.eq.s32.totalorder %s43, 0
      %p604 = por %p602, %p603
      %p605 = scmp.ne.s32.totalorder %s591, %s592
      %p606 = scmp.eq.s32.totalorder %s44, 1
      %p607 = por %p605, %p606
      %p609 = scmp.ne.s32.totalorder %s592, %s608
      %p610 = scmp.eq.s32.totalorder %s44, 0
      %p611 = por %p609, %p610
      %p612 = scmp.le.s32.totalorder 1, %s38
      %p613 = scmp.lt.s32.totalorder %s38, 3
      %p614 = pnand %p612, %p613
      %p615 = pneg %p614
      // Predicated region
      $region9: #{tpu_custom_call.1} parent=5 // pred_check
        _
      $region10: #{tpu_custom_call.1} parent=5 // pred_check_branch
        %617 = sbr.rel (%p614) target = $region12
      $region11: #{tpu_custom_call.1} parent=5 // pred_region
        %s618 = ssub.s32 %s38, 1
        // Predicated region
        $region13: #{tpu_custom_call.1} parent=11 // pred_check
          %p619 = pneg %p111
        $region14: #{tpu_custom_call.1} parent=11 // pred_check_branch
          %621 = sbr.rel (%p619) target = $region16
        $region15: #{tpu_custom_call.1} parent=11 // pred_region
          _
        $region16: #{tpu_custom_call.1} parent=11 // pred_fallthru
          _
        // Predicated region
        $region17: #{tpu_custom_call.1} parent=11 // pred_check
          %p622 = pneg %p132
        $region18: #{tpu_custom_call.1} parent=11 // pred_check_branch
          %624 = sbr.rel (%p622) target = $region20
        $region19: #{tpu_custom_call.1} parent=11 // pred_region
          _
        $region20: #{tpu_custom_call.1} parent=11 // pred_fallthru
          _
        // Predicated region
        $region21: #{tpu_custom_call.1} parent=11 // pred_check
          %p625 = pneg %p153
        $region22: #{tpu_custom_call.1} parent=11 // pred_check_branch
          %627 = sbr.rel (%p625) target = $region24
        $region23: #{tpu_custom_call.1} parent=11 // pred_region
          _
        $region24: #{tpu_custom_call.1} parent=11 // pred_fallthru
          _
        // Predicated region
        $region25: #{tpu_custom_call.1} parent=11 // pred_check
          %p628 = pneg %p174
        $region26: #{tpu_custom_call.1} parent=11 // pred_check_branch
          %630 = sbr.rel (%p628) target = $region28
        $region27: #{tpu_custom_call.1} parent=11 // pred_region
          _
        $region28: #{tpu_custom_call.1} parent=11 // pred_fallthru
          _
        // Predicated region
        $region29: #{tpu_custom_call.1} parent=11 // pred_check
          %p631 = pneg %p195
        $region30: #{tpu_custom_call.1} parent=11 // pred_check_branch
          %633 = sbr.rel (%p631) target = $region32
        $region31: #{tpu_custom_call.1} parent=11 // pred_region
          _
        $region32: #{tpu_custom_call.1} parent=11 // pred_fallthru
          _
        // Predicated region
        $region33: #{tpu_custom_call.1} parent=11 // pred_check
          %p634 = pneg %p216
        $region34: #{tpu_custom_call.1} parent=11 // pred_check_branch
          %636 = sbr.rel (%p634) target = $region36
        $region35: #{tpu_custom_call.1} parent=11 // pred_region
          _
        $region36: #{tpu_custom_call.1} parent=11 // pred_fallthru
          _
        // Predicated region
        $region37: #{tpu_custom_call.1} parent=11 // pred_check
          %p637 = pneg %p237
        $region38: #{tpu_custom_call.1} parent=11 // pred_check_branch
          %639 = sbr.rel (%p637) target = $region40
        $region39: #{tpu_custom_call.1} parent=11 // pred_region
          _
        $region40: #{tpu_custom_call.1} parent=11 // pred_fallthru
          _
        // Predicated region
        $region41: #{tpu_custom_call.1} parent=11 // pred_check
          %p640 = pneg %p258
        $region42: #{tpu_custom_call.1} parent=11 // pred_check_branch
          %642 = sbr.rel (%p640) target = $region44
        $region43: #{tpu_custom_call.1} parent=11 // pred_region
          _
        $region44: #{tpu_custom_call.1} parent=11 // pred_fallthru
          _
        // Predicated region
        $region45: #{tpu_custom_call.1} parent=11 // pred_check
          %p643 = pneg %p279
        $region46: #{tpu_custom_call.1} parent=11 // pred_check_branch
          %645 = sbr.rel (%p643) target = $region48
        $region47: #{tpu_custom_call.1} parent=11 // pred_region
          _
        $region48: #{tpu_custom_call.1} parent=11 // pred_fallthru
          _
        // Predicated region
        $region49: #{tpu_custom_call.1} parent=11 // pred_check
          %p646 = pneg %p300
        $region50: #{tpu_custom_call.1} parent=11 // pred_check_branch
          %648 = sbr.rel (%p646) target = $region52
        $region51: #{tpu_custom_call.1} parent=11 // pred_region
          _
        $region52: #{tpu_custom_call.1} parent=11 // pred_fallthru
          _
        // Predicated region
        $region53: #{tpu_custom_call.1} parent=11 // pred_check
          %p649 = pneg %p321
        $region54: #{tpu_custom_call.1} parent=11 // pred_check_branch
          %651 = sbr.rel (%p649) target = $region56
        $region55: #{tpu_custom_call.1} parent=11 // pred_region
          _
        $region56: #{tpu_custom_call.1} parent=11 // pred_fallthru
          _
        // Predicated region
        $region57: #{tpu_custom_call.1} parent=11 // pred_check
          %p652 = pneg %p342
        $region58: #{tpu_custom_call.1} parent=11 // pred_check_branch
          %654 = sbr.rel (%p652) target = $region60
        $region59: #{tpu_custom_call.1} parent=11 // pred_region
          _
        $region60: #{tpu_custom_call.1} parent=11 // pred_fallthru
          _
        // Predicated region
        $region61: #{tpu_custom_call.1} parent=11 // pred_check
          %p655 = pneg %p363
        $region62: #{tpu_custom_call.1} parent=11 // pred_check_branch
          %657 = sbr.rel (%p655) target = $region64
        $region63: #{tpu_custom_call.1} parent=11 // pred_region
          _
        $region64: #{tpu_custom_call.1} parent=11 // pred_fallthru
          _
        // Predicated region
        $region65: #{tpu_custom_call.1} parent=11 // pred_check
          %p658 = pneg %p384
        $region66: #{tpu_custom_call.1} parent=11 // pred_check_branch
          %660 = sbr.rel (%p658) target = $region68
        $region67: #{tpu_custom_call.1} parent=11 // pred_region
          _
        $region68: #{tpu_custom_call.1} parent=11 // pred_fallthru
          _
        // Predicated region
        $region69: #{tpu_custom_call.1} parent=11 // pred_check
          %p661 = pneg %p405
        $region70: #{tpu_custom_call.1} parent=11 // pred_check_branch
          %663 = sbr.rel (%p661) target = $region72
        $region71: #{tpu_custom_call.1} parent=11 // pred_region
          _
        $region72: #{tpu_custom_call.1} parent=11 // pred_fallthru
          _
        // Predicated region
        $region73: #{tpu_custom_call.1} parent=11 // pred_check
          %p664 = pneg %p426
        $region74: #{tpu_custom_call.1} parent=11 // pred_check_branch
          %666 = sbr.rel (%p664) target = $region76
        $region75: #{tpu_custom_call.1} parent=11 // pred_region
          _
        $region76: #{tpu_custom_call.1} parent=11 // pred_fallthru
          _
        // Predicated region
        $region77: #{tpu_custom_call.1} parent=11 // pred_check
          %p667 = pneg %p447
        $region78: #{tpu_custom_call.1} parent=11 // pred_check_branch
          %669 = sbr.rel (%p667) target = $region80
        $region79: #{tpu_custom_call.1} parent=11 // pred_region
          _
        $region80: #{tpu_custom_call.1} parent=11 // pred_fallthru
          _
        // Predicated region
        $region81: #{tpu_custom_call.1} parent=11 // pred_check
          %p670 = pneg %p468
        $region82: #{tpu_custom_call.1} parent=11 // pred_check_branch
          %672 = sbr.rel (%p670) target = $region84
        $region83: #{tpu_custom_call.1} parent=11 // pred_region
          _
        $region84: #{tpu_custom_call.1} parent=11 // pred_fallthru
          _
        // Predicated region
        $region85: #{tpu_custom_call.1} parent=11 // pred_check
          %p673 = pneg %p489
        $region86: #{tpu_custom_call.1} parent=11 // pred_check_branch
          %675 = sbr.rel (%p673) target = $region88
        $region87: #{tpu_custom_call.1} parent=11 // pred_region
          _
        $region88: #{tpu_custom_call.1} parent=11 // pred_fallthru
          _
        // Predicated region
        $region89: #{tpu_custom_call.1} parent=11 // pred_check
          %p676 = pneg %p510
        $region90: #{tpu_custom_call.1} parent=11 // pred_check_branch
          %678 = sbr.rel (%p676) target = $region92
        $region91: #{tpu_custom_call.1} parent=11 // pred_region
          _
        $region92: #{tpu_custom_call.1} parent=11 // pred_fallthru
          _
        // Predicated region
        $region93: #{tpu_custom_call.1} parent=11 // pred_check
          %p679 = pneg %p531
        $region94: #{tpu_custom_call.1} parent=11 // pred_check_branch
          %681 = sbr.rel (%p679) target = $region96
        $region95: #{tpu_custom_call.1} parent=11 // pred_region
          _
        $region96: #{tpu_custom_call.1} parent=11 // pred_fallthru
          _
        // Predicated region
        $region97: #{tpu_custom_call.1} parent=11 // pred_check
          %p682 = pneg %p552
        $region98: #{tpu_custom_call.1} parent=11 // pred_check_branch
          %684 = sbr.rel (%p682) target = $region100
        $region99: #{tpu_custom_call.1} parent=11 // pred_region
          _
        $region100: #{tpu_custom_call.1} parent=11 // pred_fallthru
          _
      $region12: #{tpu_custom_call.1} parent=5 // pred_fallthru
        _
      %p685 = scmp.lt.s32.totalorder %s38, 2
      // Predicated region
      $region101: #{tpu_custom_call.1} parent=5 // pred_check
        %p686 = pneg %p685
      $region102: #{tpu_custom_call.1} parent=5 // pred_check_branch
        %688 = sbr.rel (%p686) target = $region104
      $region103: #{tpu_custom_call.1} parent=5 // pred_region
        // Predicated region
        $region105: #{tpu_custom_call.1} parent=103 // pred_check
          %p689 = pneg %p58
        $region106: #{tpu_custom_call.1} parent=103 // pred_check_branch
          %691 = sbr.rel (%p689) target = $region108
        $region107: #{tpu_custom_call.1} parent=103 // pred_region
          %s692 = smul.u32 32, %s38
          %p693 = scmp.lt.s32.totalorder %s692, 63
          %s694 = scalar_select %p693, %s692, 63
          %s695 = smul.addr %s694, 8
          %s696 = scalar_lea.vmem %s0, %s695
          %s697 = smul.u32 32, %s38
        $region108: #{tpu_custom_call.1} parent=103 // pred_fallthru
          _
        // Predicated region
        $region109: #{tpu_custom_call.1} parent=103 // pred_check
          %p698 = pneg %p84
        $region110: #{tpu_custom_call.1} parent=103 // pred_check_branch
          %700 = sbr.rel (%p698) target = $region112
        $region111: #{tpu_custom_call.1} parent=103 // pred_region
          %s701 = smul.u32 32, %s38
          %p702 = scmp.lt.s32.totalorder %s701, 63
          %s703 = scalar_select %p702, %s701, 63
          %s704 = smul.addr %s703, 8
          %s705 = scalar_lea.vmem %s1, %s704
          %s706 = smul.u32 32, %s38
        $region112: #{tpu_custom_call.1} parent=103 // pred_fallthru
          _
      $region104: #{tpu_custom_call.1} parent=5 // pred_fallthru
        _
      %p707 = scmp.le.s32.totalorder 1, %s38
      %p708 = scmp.lt.s32.totalorder %s38, 3
      %p709 = pnand %p707, %p708
      %p710 = pneg %p709
      // Predicated region
      $region113: #{tpu_custom_call.1} parent=5 // pred_check
        _
      $region114: #{tpu_custom_call.1} parent=5 // pred_check_branch
        %712 = sbr.rel (%p709) target = $region116
      $region115: #{tpu_custom_call.1} parent=5 // pred_region
        %s713 = ssub.s32 %s38, 1
        %s714 = smul.u32 32, %s43
        %p715 = scmp.lt.s32.totalorder %s714, 63
        %s716 = scalar_select %p715, %s714, 63
        %s717 = smul.addr %s716, 8
        %s718 = scalar_lea.vmem %s0, %s717
        %p719 = pneg %p64
        %p720 = pneg %p61
        %s721 = smul.u32 32, %s43
        %p722 = scmp.lt.s32.totalorder %s721, 63
        %s723 = scalar_select %p722, %s721, 63
        %s724 = smul.addr %s723, 8
        %s725 = scalar_lea.vmem %s1, %s724
        %p726 = pneg %p90
        %p727 = pneg %p87
        %p728 = pneg %p111
        %p729 = pneg %p108
        %p730 = pneg %p132
        %p731 = pneg %p129
        %p732 = pneg %p153
        %p733 = pneg %p150
        %p734 = pneg %p174
        %p735 = pneg %p171
        %p736 = pneg %p195
        %p737 = pneg %p192
        %p738 = pneg %p216
        %p739 = pneg %p213
        %p740 = pneg %p237
        %p741 = pneg %p234
        %p742 = pneg %p258
        %p743 = pneg %p255
        %p744 = pneg %p279
        %p745 = pneg %p276
        %p746 = pneg %p300
        %p747 = pneg %p297
        %p748 = pneg %p321
        %p749 = pneg %p318
        %p750 = pneg %p342
        %p751 = pneg %p339
        %p752 = pneg %p363
        %p753 = pneg %p360
        %p754 = pneg %p384
        %p755 = pneg %p381
        %p756 = pneg %p405
        %p757 = pneg %p402
        %p758 = pneg %p426
        %p759 = pneg %p423
        %p760 = pneg %p447
        %p761 = pneg %p444
        %p762 = pneg %p468
        %p763 = pneg %p465
        %p764 = pneg %p489
        %p765 = pneg %p486
        %p766 = pneg %p510
        %p767 = pneg %p507
        %p768 = pneg %p531
        %p769 = pneg %p528
        %p770 = pneg %p552
        %p771 = pneg %p549
        %p772 = pneg %p578
        %p773 = pneg %p575
        %s774 = sand.u32 %s565, 1
        %s775 = scalar_lea.sflag [#allocation3], %s774
        %s776 = sand.u32 %s565, 1
        %s777 = smul.addr %s776, 256
        %s778 = scalar_lea.vmem [#allocation2], %s777
        %p779 = pneg %p604
        %p780 = pneg %p601
        %s781 = sand.u32 %s591, 1
        %s782 = scalar_lea.sflag [#allocation5], %s781
        %s783 = sand.u32 %s591, 1
        %s784 = smul.addr %s783, 256
        %s785 = scalar_lea.vmem [#allocation4], %s784
        %s786 = smul.u32 32, %s43
        %p787 = scmp.lt.s32.totalorder %s786, 63
        %s788 = scalar_select %p787, %s786, 63
        %s789 = smul.addr %s788, 8
        %s790 = scalar_lea.vmem %s0, %s789
        %s791 = smul.u32 32, %s43
        %s792 = smul.u32 32, %s43
        %p793 = scmp.lt.s32.totalorder %s792, 63
        %s794 = scalar_select %p793, %s792, 63
        %s795 = smul.addr %s794, 8
        %s796 = scalar_lea.vmem %s1, %s795
        %s797 = smul.u32 32, %s43
        %s798 = smul.u32 32, %s43
        %s799 = smul.u32 32, %s43
        %v801 = vld [vmem:[%s790] sm:$0xff]
        %v802 = vld [vmem:[%s790 + $0x8] sm:$0xff]
        %v803 = vld [vmem:[%s790 + $0x10] sm:$0xff]
        %v804 = vld [vmem:[%s790 + $0x18] sm:$0xff]
        %v805 = vld [vmem:[%s790 + $0x20] sm:$0xff]
        %v806 = vld [vmem:[%s790 + $0x28] sm:$0xff]
        %v807 = vld [vmem:[%s790 + $0x30] sm:$0xff]
        %v808 = vld [vmem:[%s790 + $0x38] sm:$0xff]
        %v809 = vld [vmem:[%s790 + $0x40] sm:$0xff]
        %v810 = vld [vmem:[%s790 + $0x48] sm:$0xff]
        %v811 = vld [vmem:[%s790 + $0x50] sm:$0xff]
        %v812 = vld [vmem:[%s790 + $0x58] sm:$0xff]
        %v813 = vld [vmem:[%s790 + $0x60] sm:$0xff]
        %v814 = vld [vmem:[%s790 + $0x68] sm:$0xff]
        %v815 = vld [vmem:[%s790 + $0x70] sm:$0xff]
        %v816 = vld [vmem:[%s790 + $0x78] sm:$0xff]
        %v817 = vld [vmem:[%s790 + $0x80] sm:$0xff]
        %v818 = vld [vmem:[%s790 + $0x88] sm:$0xff]
        %v819 = vld [vmem:[%s790 + $0x90] sm:$0xff]
        %v820 = vld [vmem:[%s790 + $0x98] sm:$0xff]
        %v821 = vld [vmem:[%s790 + $0xa0] sm:$0xff]
        %v822 = vld [vmem:[%s790 + $0xa8] sm:$0xff]
        %v823 = vld [vmem:[%s790 + $0xb0] sm:$0xff]
        %v824 = vld [vmem:[%s790 + $0xb8] sm:$0xff]
        %v825 = vld [vmem:[%s790 + $0xc0] sm:$0xff]
        %v826 = vld [vmem:[%s790 + $0xc8] sm:$0xff]
        %v827 = vld [vmem:[%s790 + $0xd0] sm:$0xff]
        %v828 = vld [vmem:[%s790 + $0xd8] sm:$0xff]
        %v829 = vld [vmem:[%s790 + $0xe0] sm:$0xff]
        %v830 = vld [vmem:[%s790 + $0xe8] sm:$0xff]
        %v831 = vld [vmem:[%s790 + $0xf0] sm:$0xff]
        %v832 = vld [vmem:[%s790 + $0xf8] sm:$0xff]
        %v833 = vpack.c.bf16 %v802, %v801
        %v834 = vpack.c.bf16 %v804, %v803
        %v835 = vpack.c.bf16 %v806, %v805
        %v836 = vpack.c.bf16 %v808, %v807
        %v837 = vpack.c.bf16 %v810, %v809
        %v838 = vpack.c.bf16 %v812, %v811
        %v839 = vpack.c.bf16 %v814, %v813
        %v840 = vpack.c.bf16 %v816, %v815
        %v841 = vpack.c.bf16 %v818, %v817
        %v842 = vpack.c.bf16 %v820, %v819
        %v843 = vpack.c.bf16 %v822, %v821
        %v844 = vpack.c.bf16 %v824, %v823
        %v845 = vpack.c.bf16 %v826, %v825
        %v846 = vpack.c.bf16 %v828, %v827
        %v847 = vpack.c.bf16 %v830, %v829
        %v848 = vpack.c.bf16 %v832, %v831
        %v849 = vld [vmem:[%s2] sm:$0xff]
        %v850 = vld [vmem:[%s2 + $0x8] sm:$0xff]
        %v851 = vld [vmem:[%s2 + $0x10] sm:$0xff]
        %v852 = vld [vmem:[%s2 + $0x18] sm:$0xff]
        %v853 = vld [vmem:[%s3] sm:$0x3]
        %v855 = vlaneseq
        %v856 = vshrl.u32 %v855, 7
        %v857 = vsub.s32 0, %v856
        %v858 = vrot.slane %v853, %v857
        %v859 = vlaneseq
        %v860 = vshrl.u32 %v859, 7
        %v861 = vsub.s32 1, %v860
        %v862 = vrot.slane %v853, %v861
        %v869 = vunpack.c.l.b16 %v849
        %v870 = vunpack.c.h.b16 %v849
        %v871 = vunpack.c.l.b16 %v850
        %v872 = vunpack.c.h.b16 %v850
        %v873 = vunpack.c.l.b16 %v851
        %v874 = vunpack.c.h.b16 %v851
        %v875 = vunpack.c.l.b16 %v852
        %v876 = vunpack.c.h.b16 %v852
        %v877 = vpack.c.b16 %v871, %v869
        %v878 = vpack.c.b16 %v872, %v870
        %v879 = vpack.c.b16 %v875, %v873
        %v880 = vpack.c.b16 %v876, %v874
        %vm885 = vcmask 261120
        %v887 = vsel %vm885, %v833, 0
        %v890 = vsel %vm885, %v834, 0
        %v893 = vsel %vm885, %v835, 0
        %v896 = vsel %vm885, %v836, 0
        %v899 = vsel %vm885, %v837, 0
        %v902 = vsel %vm885, %v838, 0
        %v905 = vsel %vm885, %v839, 0
        %v908 = vsel %vm885, %v840, 0
        %v911 = vsel %vm885, %v841, 0
        %v914 = vsel %vm885, %v842, 0
        %v917 = vsel %vm885, %v843, 0
        %v920 = vsel %vm885, %v844, 0
        %v923 = vsel %vm885, %v845, 0
        %v926 = vsel %vm885, %v846, 0
        %v929 = vsel %vm885, %v847, 0
        %v932 = vsel %vm885, %v848, 0
        %934 = vmatprep.subr.bf16.mxu0 %v878
        %935 = vmatpush1.bf16.msra.mxu0 %v877
        %936 = vmatprep.subr.bf16.mxu0 %v880
        %937 = vmatpush1.bf16.msra.mxu0 %v879
        %938 = vmatprep.subr.bf16.mxu0 0
        %939 = vmatpush1.bf16.msra.mxu0 0
        %940 = vmatprep.subr.bf16.mxu0 0
        %941 = vmatpush1.bf16.msra.mxu0 0
        %942 = vmatprep.subr.bf16.mxu0 0
        %943 = vmatpush1.bf16.msra.mxu0 0
        %944 = vmatprep.subr.bf16.mxu0 0
        %945 = vmatpush1.bf16.msra.mxu0 0
        %946 = vmatprep.subr.bf16.mxu0 0
        %947 = vmatpush1.bf16.msra.mxu0 0
        %948 = vmatprep.subr.bf16.mxu0 0
        %949 = vmatpush1.bf16.msra.mxu0 0
        %950 = vmatprep.subr.bf16.mxu0 0
        %951 = vmatpush1.bf16.msra.mxu0 0
        %952 = vmatprep.subr.bf16.mxu0 0
        %953 = vmatpush1.bf16.msra.mxu0 0
        %954 = vmatprep.subr.bf16.mxu0 0
        %955 = vmatpush1.bf16.msra.mxu0 0
        %956 = vmatprep.subr.bf16.mxu0 0
        %957 = vmatpush1.bf16.msra.mxu0 0
        %958 = vmatprep.subr.bf16.mxu0 0
        %959 = vmatpush1.bf16.msra.mxu0 0
        %960 = vmatprep.subr.bf16.mxu0 0
        %961 = vmatpush1.bf16.msra.mxu0 0
        %962 = vmatprep.subr.bf16.mxu0 0
        %963 = vmatpush1.bf16.msra.mxu0 0
        %964 = vmatprep.subr.bf16.mxu0 0
        %965 = vmatpush1.bf16.msra.mxu0 0
        %966 = vmatprep.mubr.bf16.mxu0 0
        %967 = vmatmul.mubr.bf16.gmra.mrb[0].mxu0 %v887
        %v968 = vpop.f32.mrb[0].mxu0
        %v969 = vadd.f32 %v858, %v968
        %v970 = vpop.f32.mrb[0].mxu0
        %v971 = vadd.f32 %v862, %v970
        %v972 = vpop.f32.mrb[0].mxu0
        %v973 = vadd.f32 %v858, %v972
        %v974 = vpop.f32.mrb[0].mxu0
        %v975 = vadd.f32 %v862, %v974
        %976 = vmatprep.mubr.bf16.mxu0 0
        %977 = vmatmul.mubr.bf16.gmra.mrb[0].mxu0 %v890
        %v978 = vpop.f32.mrb[0].mxu0
        %v979 = vadd.f32 %v858, %v978
        %v980 = vpop.f32.mrb[0].mxu0
        %v981 = vadd.f32 %v862, %v980
        %v982 = vpop.f32.mrb[0].mxu0
        %v983 = vadd.f32 %v858, %v982
        %v984 = vpop.f32.mrb[0].mxu0
        %v985 = vadd.f32 %v862, %v984
        %986 = vmatprep.mubr.bf16.mxu0 0
        %987 = vmatmul.mubr.bf16.gmra.mrb[0].mxu0 %v893
        %v988 = vpop.f32.mrb[0].mxu0
        %v989 = vadd.f32 %v858, %v988
        %v990 = vpop.f32.mrb[0].mxu0
        %v991 = vadd.f32 %v862, %v990
        %v992 = vpop.f32.mrb[0].mxu0
        %v993 = vadd.f32 %v858, %v992
        %v994 = vpop.f32.mrb[0].mxu0
        %v995 = vadd.f32 %v862, %v994
        %996 = vmatprep.mubr.bf16.mxu0 0
        %997 = vmatmul.mubr.bf16.gmra.mrb[0].mxu0 %v896
        %v998 = vpop.f32.mrb[0].mxu0
        %v999 = vadd.f32 %v858, %v998
        %v1000 = vpop.f32.mrb[0].mxu0
        %v1001 = vadd.f32 %v862, %v1000
        %v1002 = vpop.f32.mrb[0].mxu0
        %v1003 = vadd.f32 %v858, %v1002
        %v1004 = vpop.f32.mrb[0].mxu0
        %v1005 = vadd.f32 %v862, %v1004
        %1006 = vmatprep.mubr.bf16.mxu0 0
        %1007 = vmatmul.mubr.bf16.gmra.mrb[0].mxu0 %v899
        %v1008 = vpop.f32.mrb[0].mxu0
        %v1009 = vadd.f32 %v858, %v1008
        %v1010 = vpop.f32.mrb[0].mxu0
        %v1011 = vadd.f32 %v862, %v1010
        %v1012 = vpop.f32.mrb[0].mxu0
        %v1013 = vadd.f32 %v858, %v1012
        %v1014 = vpop.f32.mrb[0].mxu0
        %v1015 = vadd.f32 %v862, %v1014
        %1016 = vmatprep.mubr.bf16.mxu0 0
        %1017 = vmatmul.mubr.bf16.gmra.mrb[0].mxu0 %v902
        %v1018 = vpop.f32.mrb[0].mxu0
        %v1019 = vadd.f32 %v858, %v1018
        %v1020 = vpop.f32.mrb[0].mxu0
        %v1021 = vadd.f32 %v862, %v1020
        %v1022 = vpop.f32.mrb[0].mxu0
        %v1023 = vadd.f32 %v858, %v1022
        %v1024 = vpop.f32.mrb[0].mxu0
        %v1025 = vadd.f32 %v862, %v1024
        %1026 = vmatprep.mubr.bf16.mxu0 0
        %1027 = vmatmul.mubr.bf16.gmra.mrb[0].mxu0 %v905
        %v1028 = vpop.f32.mrb[0].mxu0
        %v1029 = vadd.f32 %v858, %v1028
        %v1030 = vpop.f32.mrb[0].mxu0
        %v1031 = vadd.f32 %v862, %v1030
        %v1032 = vpop.f32.mrb[0].mxu0
        %v1033 = vadd.f32 %v858, %v1032
        %v1034 = vpop.f32.mrb[0].mxu0
        %v1035 = vadd.f32 %v862, %v1034
        %1036 = vmatprep.mubr.bf16.mxu0 0
        %1037 = vmatmul.mubr.bf16.gmra.mrb[0].mxu0 %v908
        %v1038 = vpop.f32.mrb[0].mxu0
        %v1039 = vadd.f32 %v858, %v1038
        %v1040 = vpop.f32.mrb[0].mxu0
        %v1041 = vadd.f32 %v862, %v1040
        %v1042 = vpop.f32.mrb[0].mxu0
        %v1043 = vadd.f32 %v858, %v1042
        %v1044 = vpop.f32.mrb[0].mxu0
        %v1045 = vadd.f32 %v862, %v1044
        %1046 = vmatprep.mubr.bf16.mxu0 0
        %1047 = vmatmul.mubr.bf16.gmra.mrb[0].mxu0 %v911
        %v1048 = vpop.f32.mrb[0].mxu0
        %v1049 = vadd.f32 %v858, %v1048
        %v1050 = vpop.f32.mrb[0].mxu0
        %v1051 = vadd.f32 %v862, %v1050
        %v1052 = vpop.f32.mrb[0].mxu0
        %v1053 = vadd.f32 %v858, %v1052
        %v1054 = vpop.f32.mrb[0].mxu0
        %v1055 = vadd.f32 %v862, %v1054
        %1056 = vmatprep.mubr.bf16.mxu0 0
        %1057 = vmatmul.mubr.bf16.gmra.mrb[0].mxu0 %v914
        %v1058 = vpop.f32.mrb[0].mxu0
        %v1059 = vadd.f32 %v858, %v1058
        %v1060 = vpop.f32.mrb[0].mxu0
        %v1061 = vadd.f32 %v862, %v1060
        %v1062 = vpop.f32.mrb[0].mxu0
        %v1063 = vadd.f32 %v858, %v1062
        %v1064 = vpop.f32.mrb[0].mxu0
        %v1065 = vadd.f32 %v862, %v1064
        %1066 = vmatprep.mubr.bf16.mxu0 0
        %1067 = vmatmul.mubr.bf16.gmra.mrb[0].mxu0 %v917
        %v1068 = vpop.f32.mrb[0].mxu0
        %v1069 = vadd.f32 %v858, %v1068
        %v1070 = vpop.f32.mrb[0].mxu0
        %v1071 = vadd.f32 %v862, %v1070
        %v1072 = vpop.f32.mrb[0].mxu0
        %v1073 = vadd.f32 %v858, %v1072
        %v1074 = vpop.f32.mrb[0].mxu0
        %v1075 = vadd.f32 %v862, %v1074
        %1076 = vmatprep.mubr.bf16.mxu0 0
        %1077 = vmatmul.mubr.bf16.gmra.mrb[0].mxu0 %v920
        %v1078 = vpop.f32.mrb[0].mxu0
        %v1079 = vadd.f32 %v858, %v1078
        %v1080 = vpop.f32.mrb[0].mxu0
        %v1081 = vadd.f32 %v862, %v1080
        %v1082 = vpop.f32.mrb[0].mxu0
        %v1083 = vadd.f32 %v858, %v1082
        %v1084 = vpop.f32.mrb[0].mxu0
        %v1085 = vadd.f32 %v862, %v1084
        %1086 = vmatprep.mubr.bf16.mxu0 0
        %1087 = vmatmul.mubr.bf16.gmra.mrb[0].mxu0 %v923
        %v1088 = vpop.f32.mrb[0].mxu0
        %v1089 = vadd.f32 %v858, %v1088
        %v1090 = vpop.f32.mrb[0].mxu0
        %v1091 = vadd.f32 %v862, %v1090
        %v1092 = vpop.f32.mrb[0].mxu0
        %v1093 = vadd.f32 %v858, %v1092
        %v1094 = vpop.f32.mrb[0].mxu0
        %v1095 = vadd.f32 %v862, %v1094
        %1096 = vmatprep.mubr.bf16.mxu0 0
        %1097 = vmatmul.mubr.bf16.gmra.mrb[0].mxu0 %v926
        %v1098 = vpop.f32.mrb[0].mxu0
        %v1099 = vadd.f32 %v858, %v1098
        %v1100 = vpop.f32.mrb[0].mxu0
        %v1101 = vadd.f32 %v862, %v1100
        %v1102 = vpop.f32.mrb[0].mxu0
        %v1103 = vadd.f32 %v858, %v1102
        %v1104 = vpop.f32.mrb[0].mxu0
        %v1105 = vadd.f32 %v862, %v1104
        %1106 = vmatprep.mubr.bf16.mxu0 0
        %1107 = vmatmul.mubr.bf16.gmra.mrb[0].mxu0 %v929
        %v1108 = vpop.f32.mrb[0].mxu0
        %v1109 = vadd.f32 %v858, %v1108
        %v1110 = vpop.f32.mrb[0].mxu0
        %v1111 = vadd.f32 %v862, %v1110
        %v1112 = vpop.f32.mrb[0].mxu0
        %v1113 = vadd.f32 %v858, %v1112
        %v1114 = vpop.f32.mrb[0].mxu0
        %v1115 = vadd.f32 %v862, %v1114
        %1116 = vmatprep.mubr.bf16.mxu0 0
        %1117 = vmatmul.mubr.bf16.gmra.mrb[0].mxu0 %v932
        %v1118 = vpop.f32.mrb[0].mxu0
        %v1119 = vadd.f32 %v858, %v1118
        %v1120 = vpop.f32.mrb[0].mxu0
        %v1121 = vadd.f32 %v862, %v1120
        %v1122 = vpop.f32.mrb[0].mxu0
        %v1123 = vadd.f32 %v858, %v1122
        %v1124 = vpop.f32.mrb[0].mxu0
        %v1125 = vadd.f32 %v862, %v1124
        %1126 = vdwg.mxu0
        %v1127 = vmax.f32 %v969, 0.0
        %v1128 = vmax.f32 %v971, 0.0
        %v1129 = vmax.f32 %v973, 0.0
        %v1130 = vmax.f32 %v975, 0.0
        %v1131 = vmax.f32 %v979, 0.0
        %v1132 = vmax.f32 %v981, 0.0
        %v1133 = vmax.f32 %v983, 0.0
        %v1134 = vmax.f32 %v985, 0.0
        %v1135 = vmax.f32 %v989, 0.0
        %v1136 = vmax.f32 %v991, 0.0
        %v1137 = vmax.f32 %v993, 0.0
        %v1138 = vmax.f32 %v995, 0.0
        %v1139 = vmax.f32 %v999, 0.0
        %v1140 = vmax.f32 %v1001, 0.0
        %v1141 = vmax.f32 %v1003, 0.0
        %v1142 = vmax.f32 %v1005, 0.0
        %v1143 = vmax.f32 %v1009, 0.0
        %v1144 = vmax.f32 %v1011, 0.0
        %v1145 = vmax.f32 %v1013, 0.0
        %v1146 = vmax.f32 %v1015, 0.0
        %v1147 = vmax.f32 %v1019, 0.0
        %v1148 = vmax.f32 %v1021, 0.0
        %v1149 = vmax.f32 %v1023, 0.0
        %v1150 = vmax.f32 %v1025, 0.0
        %v1151 = vmax.f32 %v1029, 0.0
        %v1152 = vmax.f32 %v1031, 0.0
        %v1153 = vmax.f32 %v1033, 0.0
        %v1154 = vmax.f32 %v1035, 0.0
        %v1155 = vmax.f32 %v1039, 0.0
        %v1156 = vmax.f32 %v1041, 0.0
        %v1157 = vmax.f32 %v1043, 0.0
        %v1158 = vmax.f32 %v1045, 0.0
        %v1159 = vmax.f32 %v1049, 0.0
        %v1160 = vmax.f32 %v1051, 0.0
        %v1161 = vmax.f32 %v1053, 0.0
        %v1162 = vmax.f32 %v1055, 0.0
        %v1163 = vmax.f32 %v1059, 0.0
        %v1164 = vmax.f32 %v1061, 0.0
        %v1165 = vmax.f32 %v1063, 0.0
        %v1166 = vmax.f32 %v1065, 0.0
        %v1167 = vmax.f32 %v1069, 0.0
        %v1168 = vmax.f32 %v1071, 0.0
        %v1169 = vmax.f32 %v1073, 0.0
        %v1170 = vmax.f32 %v1075, 0.0
        %v1171 = vmax.f32 %v1079, 0.0
        %v1172 = vmax.f32 %v1081, 0.0
        %v1173 = vmax.f32 %v1083, 0.0
        %v1174 = vmax.f32 %v1085, 0.0
        %v1175 = vmax.f32 %v1089, 0.0
        %v1176 = vmax.f32 %v1091, 0.0
        %v1177 = vmax.f32 %v1093, 0.0
        %v1178 = vmax.f32 %v1095, 0.0
        %v1179 = vmax.f32 %v1099, 0.0
        %v1180 = vmax.f32 %v1101, 0.0
        %v1181 = vmax.f32 %v1103, 0.0
        %v1182 = vmax.f32 %v1105, 0.0
        %v1183 = vmax.f32 %v1109, 0.0
        %v1184 = vmax.f32 %v1111, 0.0
        %v1185 = vmax.f32 %v1113, 0.0
        %v1186 = vmax.f32 %v1115, 0.0
        %v1187 = vmax.f32 %v1119, 0.0
        %v1188 = vmax.f32 %v1121, 0.0
        %v1189 = vmax.f32 %v1123, 0.0
        %v1190 = vmax.f32 %v1125, 0.0
        %v1191 = vpack.c.bf16 %v1129, %v1127
        %v1192 = vpack.c.bf16 %v1133, %v1131
        %v1193 = vpack.c.bf16 %v1137, %v1135
        %v1194 = vpack.c.bf16 %v1141, %v1139
        %v1195 = vpack.c.bf16 %v1145, %v1143
        %v1196 = vpack.c.bf16 %v1149, %v1147
        %v1197 = vpack.c.bf16 %v1153, %v1151
        %v1198 = vpack.c.bf16 %v1157, %v1155
        %v1199 = vpack.c.bf16 %v1161, %v1159
        %v1200 = vpack.c.bf16 %v1165, %v1163
        %v1201 = vpack.c.bf16 %v1169, %v1167
        %v1202 = vpack.c.bf16 %v1173, %v1171
        %v1203 = vpack.c.bf16 %v1177, %v1175
        %v1204 = vpack.c.bf16 %v1181, %v1179
        %v1205 = vpack.c.bf16 %v1185, %v1183
        %v1206 = vpack.c.bf16 %v1189, %v1187
        %v1207 = vld [vmem:[%s4] sm:$0xf]
        %v1208 = vld [vmem:[%s4 + $0x4] sm:$0xf]
        %v1209 = vld [vmem:[%s4 + $0x8] sm:$0xf]
        %v1210 = vld [vmem:[%s4 + $0xc] sm:$0xf]
        %v1211 = vld [vmem:[%s4 + $0x10] sm:$0xf]
        %v1212 = vld [vmem:[%s4 + $0x14] sm:$0xf]
        %v1213 = vld [vmem:[%s4 + $0x18] sm:$0xf]
        %v1214 = vld [vmem:[%s4 + $0x1c] sm:$0xf]
        %v1215 = vld [vmem:[%s4 + $0x20] sm:$0xf]
        %v1216 = vld [vmem:[%s4 + $0x24] sm:$0xf]
        %v1217 = vld [vmem:[%s4 + $0x28] sm:$0xf]
        %v1218 = vld [vmem:[%s4 + $0x2c] sm:$0xf]
        %v1219 = vld [vmem:[%s4 + $0x30] sm:$0xf]
        %v1220 = vld [vmem:[%s4 + $0x34] sm:$0xf]
        %v1221 = vld [vmem:[%s4 + $0x38] sm:$0xf]
        %v1222 = vld [vmem:[%s4 + $0x3c] sm:$0xf]
        %v1223 = vld [vmem:[%s5] sm:$0x1]
        %v1225 = vlaneseq
        %v1226 = vshrl.u32 %v1225, 7
        %v1227 = vsub.s32 0, %v1226
        %v1228 = vrot.slane %v1223, %v1227
        %v1246 = vunpack.c.l.b16 %v1207
        %v1247 = vunpack.c.l.b16 %v1208
        %v1248 = vunpack.c.l.b16 %v1209
        %v1249 = vunpack.c.l.b16 %v1210
        %v1250 = vunpack.c.l.b16 %v1211
        %v1251 = vunpack.c.l.b16 %v1212
        %v1252 = vunpack.c.l.b16 %v1213
        %v1253 = vunpack.c.l.b16 %v1214
        %v1254 = vunpack.c.l.b16 %v1215
        %v1255 = vunpack.c.l.b16 %v1216
        %v1256 = vunpack.c.l.b16 %v1217
        %v1257 = vunpack.c.l.b16 %v1218
        %v1258 = vunpack.c.l.b16 %v1219
        %v1259 = vunpack.c.l.b16 %v1220
        %v1260 = vunpack.c.l.b16 %v1221
        %v1261 = vunpack.c.l.b16 %v1222
        %v1262 = vpack.c.b16 %v1247, %v1246
        %v1263 = vpack.c.b16 %v1249, %v1248
        %v1264 = vpack.c.b16 %v1251, %v1250
        %v1265 = vpack.c.b16 %v1253, %v1252
        %v1266 = vpack.c.b16 %v1255, %v1254
        %v1267 = vpack.c.b16 %v1257, %v1256
        %v1268 = vpack.c.b16 %v1259, %v1258
        %v1269 = vpack.c.b16 %v1261, %v1260
        %1278 = vmatprep.subr.bf16.mxu0 0
        %1279 = vmatpush1.bf16.msra.mxu0 %v1262
        %1280 = vmatprep.subr.bf16.mxu0 0
        %1281 = vmatpush1.bf16.msra.mxu0 %v1263
        %1282 = vmatprep.subr.bf16.mxu0 0
        %1283 = vmatpush1.bf16.msra.mxu0 %v1264
        %1284 = vmatprep.subr.bf16.mxu0 0
        %1285 = vmatpush1.bf16.msra.mxu0 %v1265
        %1286 = vmatprep.subr.bf16.mxu0 0
        %1287 = vmatpush1.bf16.msra.mxu0 %v1266
        %1288 = vmatprep.subr.bf16.mxu0 0
        %1289 = vmatpush1.bf16.msra.mxu0 %v1267
        %1290 = vmatprep.subr.bf16.mxu0 0
        %1291 = vmatpush1.bf16.msra.mxu0 %v1268
        %1292 = vmatprep.subr.bf16.mxu0 0
        %1293 = vmatpush1.bf16.msra.mxu0 %v1269
        %1294 = vmatprep.subr.bf16.mxu0 0
        %1295 = vmatpush1.bf16.msra.mxu0 0
        %1296 = vmatprep.subr.bf16.mxu0 0
        %1297 = vmatpush1.bf16.msra.mxu0 0
        %1298 = vmatprep.subr.bf16.mxu0 0
        %1299 = vmatpush1.bf16.msra.mxu0 0
        %1300 = vmatprep.subr.bf16.mxu0 0
        %1301 = vmatpush1.bf16.msra.mxu0 0
        %1302 = vmatprep.subr.bf16.mxu0 0
        %1303 = vmatpush1.bf16.msra.mxu0 0
        %1304 = vmatprep.subr.bf16.mxu0 0
        %1305 = vmatpush1.bf16.msra.mxu0 0
        %1306 = vmatprep.subr.bf16.mxu0 0
        %1307 = vmatpush1.bf16.msra.mxu0 0
        %1308 = vmatprep.subr.bf16.mxu0 0
        %1309 = vmatpush1.bf16.msra.mxu0 0
        %1310 = vmatprep.mubr.bf16.mxu0 0
        %1311 = vmatmul.mubr.bf16.gmra.mrb[0].mxu0 %v1191
        %v1312 = vpop.f32.mrb[0].mxu0
        %v1313 = vadd.f32 %v1228, %v1312
        %v1314 = vpop.f32.mrb[0].mxu0
        %v1315 = vpop.f32.mrb[0].mxu0
        %v1316 = vadd.f32 %v1228, %v1315
        %v1317 = vpop.f32.mrb[0].mxu0
        %1318 = vmatprep.mubr.bf16.mxu0 0
        %1319 = vmatmul.mubr.bf16.gmra.mrb[0].mxu0 %v1192
        %v1320 = vpop.f32.mrb[0].mxu0
        %v1321 = vadd.f32 %v1228, %v1320
        %v1322 = vpop.f32.mrb[0].mxu0
        %v1323 = vpop.f32.mrb[0].mxu0
        %v1324 = vadd.f32 %v1228, %v1323
        %v1325 = vpop.f32.mrb[0].mxu0
        %1326 = vmatprep.mubr.bf16.mxu0 0
        %1327 = vmatmul.mubr.bf16.gmra.mrb[0].mxu0 %v1193
        %v1328 = vpop.f32.mrb[0].mxu0
        %v1329 = vadd.f32 %v1228, %v1328
        %v1330 = vpop.f32.mrb[0].mxu0
        %v1331 = vpop.f32.mrb[0].mxu0
        %v1332 = vadd.f32 %v1228, %v1331
        %v1333 = vpop.f32.mrb[0].mxu0
        %1334 = vmatprep.mubr.bf16.mxu0 0
        %1335 = vmatmul.mubr.bf16.gmra.mrb[0].mxu0 %v1194
        %v1336 = vpop.f32.mrb[0].mxu0
        %v1337 = vadd.f32 %v1228, %v1336
        %v1338 = vpop.f32.mrb[0].mxu0
        %v1339 = vpop.f32.mrb[0].mxu0
        %v1340 = vadd.f32 %v1228, %v1339
        %v1341 = vpop.f32.mrb[0].mxu0
        %1342 = vmatprep.mubr.bf16.mxu0 0
        %1343 = vmatmul.mubr.bf16.gmra.mrb[0].mxu0 %v1195
        %v1344 = vpop.f32.mrb[0].mxu0
        %v1345 = vadd.f32 %v1228, %v1344
        %v1346 = vpop.f32.mrb[0].mxu0
        %v1347 = vpop.f32.mrb[0].mxu0
        %v1348 = vadd.f32 %v1228, %v1347
        %v1349 = vpop.f32.mrb[0].mxu0
        %1350 = vmatprep.mubr.bf16.mxu0 0
        %1351 = vmatmul.mubr.bf16.gmra.mrb[0].mxu0 %v1196
        %v1352 = vpop.f32.mrb[0].mxu0
        %v1353 = vadd.f32 %v1228, %v1352
        %v1354 = vpop.f32.mrb[0].mxu0
        %v1355 = vpop.f32.mrb[0].mxu0
        %v1356 = vadd.f32 %v1228, %v1355
        %v1357 = vpop.f32.mrb[0].mxu0
        %1358 = vmatprep.mubr.bf16.mxu0 0
        %1359 = vmatmul.mubr.bf16.gmra.mrb[0].mxu0 %v1197
        %v1360 = vpop.f32.mrb[0].mxu0
        %v1361 = vadd.f32 %v1228, %v1360
        %v1362 = vpop.f32.mrb[0].mxu0
        %v1363 = vpop.f32.mrb[0].mxu0
        %v1364 = vadd.f32 %v1228, %v1363
        %v1365 = vpop.f32.mrb[0].mxu0
        %1366 = vmatprep.mubr.bf16.mxu0 0
        %1367 = vmatmul.mubr.bf16.gmra.mrb[0].mxu0 %v1198
        %v1368 = vpop.f32.mrb[0].mxu0
        %v1369 = vadd.f32 %v1228, %v1368
        %v1370 = vpop.f32.mrb[0].mxu0
        %v1371 = vpop.f32.mrb[0].mxu0
        %v1372 = vadd.f32 %v1228, %v1371
        %v1373 = vpop.f32.mrb[0].mxu0
        %1374 = vmatprep.mubr.bf16.mxu0 0
        %1375 = vmatmul.mubr.bf16.gmra.mrb[0].mxu0 %v1199
        %v1376 = vpop.f32.mrb[0].mxu0
        %v1377 = vadd.f32 %v1228, %v1376
        %v1378 = vpop.f32.mrb[0].mxu0
        %v1379 = vpop.f32.mrb[0].mxu0
        %v1380 = vadd.f32 %v1228, %v1379
        %v1381 = vpop.f32.mrb[0].mxu0
        %1382 = vmatprep.mubr.bf16.mxu0 0
        %1383 = vmatmul.mubr.bf16.gmra.mrb[0].mxu0 %v1200
        %v1384 = vpop.f32.mrb[0].mxu0
        %v1385 = vadd.f32 %v1228, %v1384
        %v1386 = vpop.f32.mrb[0].mxu0
        %v1387 = vpop.f32.mrb[0].mxu0
        %v1388 = vadd.f32 %v1228, %v1387
        %v1389 = vpop.f32.mrb[0].mxu0
        %1390 = vmatprep.mubr.bf16.mxu0 0
        %1391 = vmatmul.mubr.bf16.gmra.mrb[0].mxu0 %v1201
        %v1392 = vpop.f32.mrb[0].mxu0
        %v1393 = vadd.f32 %v1228, %v1392
        %v1394 = vpop.f32.mrb[0].mxu0
        %v1395 = vpop.f32.mrb[0].mxu0
        %v1396 = vadd.f32 %v1228, %v1395
        %v1397 = vpop.f32.mrb[0].mxu0
        %1398 = vmatprep.mubr.bf16.mxu0 0
        %1399 = vmatmul.mubr.bf16.gmra.mrb[0].mxu0 %v1202
        %v1400 = vpop.f32.mrb[0].mxu0
        %v1401 = vadd.f32 %v1228, %v1400
        %v1402 = vpop.f32.mrb[0].mxu0
        %v1403 = vpop.f32.mrb[0].mxu0
        %v1404 = vadd.f32 %v1228, %v1403
        %v1405 = vpop.f32.mrb[0].mxu0
        %1406 = vmatprep.mubr.bf16.mxu0 0
        %1407 = vmatmul.mubr.bf16.gmra.mrb[0].mxu0 %v1203
        %v1408 = vpop.f32.mrb[0].mxu0
        %v1409 = vadd.f32 %v1228, %v1408
        %v1410 = vpop.f32.mrb[0].mxu0
        %v1411 = vpop.f32.mrb[0].mxu0
        %v1412 = vadd.f32 %v1228, %v1411
        %v1413 = vpop.f32.mrb[0].mxu0
        %1414 = vmatprep.mubr.bf16.mxu0 0
        %1415 = vmatmul.mubr.bf16.gmra.mrb[0].mxu0 %v1204
        %v1416 = vpop.f32.mrb[0].mxu0
        %v1417 = vadd.f32 %v1228, %v1416
        %v1418 = vpop.f32.mrb[0].mxu0
        %v1419 = vpop.f32.mrb[0].mxu0
        %v1420 = vadd.f32 %v1228, %v1419
        %v1421 = vpop.f32.mrb[0].mxu0
        %1422 = vmatprep.mubr.bf16.mxu0 0
        %1423 = vmatmul.mubr.bf16.gmra.mrb[0].mxu0 %v1205
        %v1424 = vpop.f32.mrb[0].mxu0
        %v1425 = vadd.f32 %v1228, %v1424
        %v1426 = vpop.f32.mrb[0].mxu0
        %v1427 = vpop.f32.mrb[0].mxu0
        %v1428 = vadd.f32 %v1228, %v1427
        %v1429 = vpop.f32.mrb[0].mxu0
        %1430 = vmatprep.mubr.bf16.mxu0 0
        %1431 = vmatmul.mubr.bf16.gmra.mrb[0].mxu0 %v1206
        %v1432 = vpop.f32.mrb[0].mxu0
        %v1433 = vadd.f32 %v1228, %v1432
        %v1434 = vpop.f32.mrb[0].mxu0
        %v1435 = vpop.f32.mrb[0].mxu0
        %v1436 = vadd.f32 %v1228, %v1435
        %v1437 = vpop.f32.mrb[0].mxu0
        %1438 = vdwg.mxu0
        %v1439 = vmax.f32 %v1313, 0.0
        %v1440 = vmax.f32 %v1316, 0.0
        %v1441 = vmax.f32 %v1321, 0.0
        %v1442 = vmax.f32 %v1324, 0.0
        %v1443 = vmax.f32 %v1329, 0.0
        %v1444 = vmax.f32 %v1332, 0.0
        %v1445 = vmax.f32 %v1337, 0.0
        %v1446 = vmax.f32 %v1340, 0.0
        %v1447 = vmax.f32 %v1345, 0.0
        %v1448 = vmax.f32 %v1348, 0.0
        %v1449 = vmax.f32 %v1353, 0.0
        %v1450 = vmax.f32 %v1356, 0.0
        %v1451 = vmax.f32 %v1361, 0.0
        %v1452 = vmax.f32 %v1364, 0.0
        %v1453 = vmax.f32 %v1369, 0.0
        %v1454 = vmax.f32 %v1372, 0.0
        %v1455 = vmax.f32 %v1377, 0.0
        %v1456 = vmax.f32 %v1380, 0.0
        %v1457 = vmax.f32 %v1385, 0.0
        %v1458 = vmax.f32 %v1388, 0.0
        %v1459 = vmax.f32 %v1393, 0.0
        %v1460 = vmax.f32 %v1396, 0.0
        %v1461 = vmax.f32 %v1401, 0.0
        %v1462 = vmax.f32 %v1404, 0.0
        %v1463 = vmax.f32 %v1409, 0.0
        %v1464 = vmax.f32 %v1412, 0.0
        %v1465 = vmax.f32 %v1417, 0.0
        %v1466 = vmax.f32 %v1420, 0.0
        %v1467 = vmax.f32 %v1425, 0.0
        %v1468 = vmax.f32 %v1428, 0.0
        %v1469 = vmax.f32 %v1433, 0.0
        %v1470 = vmax.f32 %v1436, 0.0
        %v1471 = vpack.c.bf16 %v1440, %v1439
        %v1472 = vpack.c.bf16 %v1442, %v1441
        %v1473 = vpack.c.bf16 %v1444, %v1443
        %v1474 = vpack.c.bf16 %v1446, %v1445
        %v1475 = vpack.c.bf16 %v1448, %v1447
        %v1476 = vpack.c.bf16 %v1450, %v1449
        %v1477 = vpack.c.bf16 %v1452, %v1451
        %v1478 = vpack.c.bf16 %v1454, %v1453
        %v1479 = vpack.c.bf16 %v1456, %v1455
        %v1480 = vpack.c.bf16 %v1458, %v1457
        %v1481 = vpack.c.bf16 %v1460, %v1459
        %v1482 = vpack.c.bf16 %v1462, %v1461
        %v1483 = vpack.c.bf16 %v1464, %v1463
        %v1484 = vpack.c.bf16 %v1466, %v1465
        %v1485 = vpack.c.bf16 %v1468, %v1467
        %v1486 = vpack.c.bf16 %v1470, %v1469
        %v1487 = vld [vmem:[%s6] sm:$0xf]
        %v1488 = vld [vmem:[%s6 + $0x4] sm:$0xf]
        %v1489 = vld [vmem:[%s6 + $0x8] sm:$0xf]
        %v1490 = vld [vmem:[%s6 + $0xc] sm:$0xf]
        %v1491 = vld [vmem:[%s6 + $0x10] sm:$0xf]
        %v1492 = vld [vmem:[%s6 + $0x14] sm:$0xf]
        %v1493 = vld [vmem:[%s6 + $0x18] sm:$0xf]
        %v1494 = vld [vmem:[%s6 + $0x1c] sm:$0xf]
        %v1495 = vld [vmem:[%s7] sm:$0x1]
        %v1497 = vlaneseq
        %v1498 = vshrl.u32 %v1497, 7
        %v1499 = vsub.s32 0, %v1498
        %v1500 = vrot.slane %v1495, %v1499
        %v1510 = vunpack.c.l.b16 %v1487
        %v1511 = vunpack.c.l.b16 %v1488
        %v1512 = vunpack.c.l.b16 %v1489
        %v1513 = vunpack.c.l.b16 %v1490
        %v1514 = vunpack.c.l.b16 %v1491
        %v1515 = vunpack.c.l.b16 %v1492
        %v1516 = vunpack.c.l.b16 %v1493
        %v1517 = vunpack.c.l.b16 %v1494
        %v1518 = vpack.c.b16 %v1511, %v1510
        %v1519 = vpack.c.b16 %v1513, %v1512
        %v1520 = vpack.c.b16 %v1515, %v1514
        %v1521 = vpack.c.b16 %v1517, %v1516
        %vm1526 = vcmask 523264
        %v1528 = vsel %vm1526, %v1471, 0
        %v1531 = vsel %vm1526, %v1472, 0
        %v1534 = vsel %vm1526, %v1473, 0
        %v1537 = vsel %vm1526, %v1474, 0
        %v1540 = vsel %vm1526, %v1475, 0
        %v1543 = vsel %vm1526, %v1476, 0
        %v1546 = vsel %vm1526, %v1477, 0
        %v1549 = vsel %vm1526, %v1478, 0
        %v1552 = vsel %vm1526, %v1479, 0
        %v1555 = vsel %vm1526, %v1480, 0
        %v1558 = vsel %vm1526, %v1481, 0
        %v1561 = vsel %vm1526, %v1482, 0
        %v1564 = vsel %vm1526, %v1483, 0
        %v1567 = vsel %vm1526, %v1484, 0
        %v1570 = vsel %vm1526, %v1485, 0
        %v1573 = vsel %vm1526, %v1486, 0
        %1575 = vmatprep.subr.bf16.mxu0 0
        %1576 = vmatpush1.bf16.msra.mxu0 %v1518
        %1577 = vmatprep.subr.bf16.mxu0 0
        %1578 = vmatpush1.bf16.msra.mxu0 %v1519
        %1579 = vmatprep.subr.bf16.mxu0 0
        %1580 = vmatpush1.bf16.msra.mxu0 %v1520
        %1581 = vmatprep.subr.bf16.mxu0 0
        %1582 = vmatpush1.bf16.msra.mxu0 %v1521
        %1583 = vmatprep.subr.bf16.mxu0 0
        %1584 = vmatpush1.bf16.msra.mxu0 0
        %1585 = vmatprep.subr.bf16.mxu0 0
        %1586 = vmatpush1.bf16.msra.mxu0 0
        %1587 = vmatprep.subr.bf16.mxu0 0
        %1588 = vmatpush1.bf16.msra.mxu0 0
        %1589 = vmatprep.subr.bf16.mxu0 0
        %1590 = vmatpush1.bf16.msra.mxu0 0
        %1591 = vmatprep.subr.bf16.mxu0 0
        %1592 = vmatpush1.bf16.msra.mxu0 0
        %1593 = vmatprep.subr.bf16.mxu0 0
        %1594 = vmatpush1.bf16.msra.mxu0 0
        %1595 = vmatprep.subr.bf16.mxu0 0
        %1596 = vmatpush1.bf16.msra.mxu0 0
        %1597 = vmatprep.subr.bf16.mxu0 0
        %1598 = vmatpush1.bf16.msra.mxu0 0
        %1599 = vmatprep.subr.bf16.mxu0 0
        %1600 = vmatpush1.bf16.msra.mxu0 0
        %1601 = vmatprep.subr.bf16.mxu0 0
        %1602 = vmatpush1.bf16.msra.mxu0 0
        %1603 = vmatprep.subr.bf16.mxu0 0
        %1604 = vmatpush1.bf16.msra.mxu0 0
        %1605 = vmatprep.subr.bf16.mxu0 0
        %1606 = vmatpush1.bf16.msra.mxu0 0
        %1607 = vmatprep.mubr.bf16.mxu0 0
        %1608 = vmatmul.mubr.bf16.gmra.mrb[0].mxu0 %v1528
        %v1609 = vpop.f32.mrb[0].mxu0
        %v1610 = vadd.f32 %v1500, %v1609
        %v1611 = vpop.f32.mrb[0].mxu0
        %v1612 = vpop.f32.mrb[0].mxu0
        %v1613 = vadd.f32 %v1500, %v1612
        %v1614 = vpop.f32.mrb[0].mxu0
        %1615 = vmatprep.mubr.bf16.mxu0 0
        %1616 = vmatmul.mubr.bf16.gmra.mrb[0].mxu0 %v1531
        %v1617 = vpop.f32.mrb[0].mxu0
        %v1618 = vadd.f32 %v1500, %v1617
        %v1619 = vpop.f32.mrb[0].mxu0
        %v1620 = vpop.f32.mrb[0].mxu0
        %v1621 = vadd.f32 %v1500, %v1620
        %v1622 = vpop.f32.mrb[0].mxu0
        %1623 = vmatprep.mubr.bf16.mxu0 0
        %1624 = vmatmul.mubr.bf16.gmra.mrb[0].mxu0 %v1534
        %v1625 = vpop.f32.mrb[0].mxu0
        %v1626 = vadd.f32 %v1500, %v1625
        %v1627 = vpop.f32.mrb[0].mxu0
        %v1628 = vpop.f32.mrb[0].mxu0
        %v1629 = vadd.f32 %v1500, %v1628
        %v1630 = vpop.f32.mrb[0].mxu0
        %1631 = vmatprep.mubr.bf16.mxu0 0
        %1632 = vmatmul.mubr.bf16.gmra.mrb[0].mxu0 %v1537
        %v1633 = vpop.f32.mrb[0].mxu0
        %v1634 = vadd.f32 %v1500, %v1633
        %v1635 = vpop.f32.mrb[0].mxu0
        %v1636 = vpop.f32.mrb[0].mxu0
        %v1637 = vadd.f32 %v1500, %v1636
        %v1638 = vpop.f32.mrb[0].mxu0
        %1639 = vmatprep.mubr.bf16.mxu0 0
        %1640 = vmatmul.mubr.bf16.gmra.mrb[0].mxu0 %v1540
        %v1641 = vpop.f32.mrb[0].mxu0
        %v1642 = vadd.f32 %v1500, %v1641
        %v1643 = vpop.f32.mrb[0].mxu0
        %v1644 = vpop.f32.mrb[0].mxu0
        %v1645 = vadd.f32 %v1500, %v1644
        %v1646 = vpop.f32.mrb[0].mxu0
        %1647 = vmatprep.mubr.bf16.mxu0 0
        %1648 = vmatmul.mubr.bf16.gmra.mrb[0].mxu0 %v1543
        %v1649 = vpop.f32.mrb[0].mxu0
        %v1650 = vadd.f32 %v1500, %v1649
        %v1651 = vpop.f32.mrb[0].mxu0
        %v1652 = vpop.f32.mrb[0].mxu0
        %v1653 = vadd.f32 %v1500, %v1652
        %v1654 = vpop.f32.mrb[0].mxu0
        %1655 = vmatprep.mubr.bf16.mxu0 0
        %1656 = vmatmul.mubr.bf16.gmra.mrb[0].mxu0 %v1546
        %v1657 = vpop.f32.mrb[0].mxu0
        %v1658 = vadd.f32 %v1500, %v1657
        %v1659 = vpop.f32.mrb[0].mxu0
        %v1660 = vpop.f32.mrb[0].mxu0
        %v1661 = vadd.f32 %v1500, %v1660
        %v1662 = vpop.f32.mrb[0].mxu0
        %1663 = vmatprep.mubr.bf16.mxu0 0
        %1664 = vmatmul.mubr.bf16.gmra.mrb[0].mxu0 %v1549
        %v1665 = vpop.f32.mrb[0].mxu0
        %v1666 = vadd.f32 %v1500, %v1665
        %v1667 = vpop.f32.mrb[0].mxu0
        %v1668 = vpop.f32.mrb[0].mxu0
        %v1669 = vadd.f32 %v1500, %v1668
        %v1670 = vpop.f32.mrb[0].mxu0
        %1671 = vmatprep.mubr.bf16.mxu0 0
        %1672 = vmatmul.mubr.bf16.gmra.mrb[0].mxu0 %v1552
        %v1673 = vpop.f32.mrb[0].mxu0
        %v1674 = vadd.f32 %v1500, %v1673
        %v1675 = vpop.f32.mrb[0].mxu0
        %v1676 = vpop.f32.mrb[0].mxu0
        %v1677 = vadd.f32 %v1500, %v1676
        %v1678 = vpop.f32.mrb[0].mxu0
        %1679 = vmatprep.mubr.bf16.mxu0 0
        %1680 = vmatmul.mubr.bf16.gmra.mrb[0].mxu0 %v1555
        %v1681 = vpop.f32.mrb[0].mxu0
        %v1682 = vadd.f32 %v1500, %v1681
        %v1683 = vpop.f32.mrb[0].mxu0
        %v1684 = vpop.f32.mrb[0].mxu0
        %v1685 = vadd.f32 %v1500, %v1684
        %v1686 = vpop.f32.mrb[0].mxu0
        %1687 = vmatprep.mubr.bf16.mxu0 0
        %1688 = vmatmul.mubr.bf16.gmra.mrb[0].mxu0 %v1558
        %v1689 = vpop.f32.mrb[0].mxu0
        %v1690 = vadd.f32 %v1500, %v1689
        %v1691 = vpop.f32.mrb[0].mxu0
        %v1692 = vpop.f32.mrb[0].mxu0
        %v1693 = vadd.f32 %v1500, %v1692
        %v1694 = vpop.f32.mrb[0].mxu0
        %1695 = vmatprep.mubr.bf16.mxu0 0
        %1696 = vmatmul.mubr.bf16.gmra.mrb[0].mxu0 %v1561
        %v1697 = vpop.f32.mrb[0].mxu0
        %v1698 = vadd.f32 %v1500, %v1697
        %v1699 = vpop.f32.mrb[0].mxu0
        %v1700 = vpop.f32.mrb[0].mxu0
        %v1701 = vadd.f32 %v1500, %v1700
        %v1702 = vpop.f32.mrb[0].mxu0
        %1703 = vmatprep.mubr.bf16.mxu0 0
        %1704 = vmatmul.mubr.bf16.gmra.mrb[0].mxu0 %v1564
        %v1705 = vpop.f32.mrb[0].mxu0
        %v1706 = vadd.f32 %v1500, %v1705
        %v1707 = vpop.f32.mrb[0].mxu0
        %v1708 = vpop.f32.mrb[0].mxu0
        %v1709 = vadd.f32 %v1500, %v1708
        %v1710 = vpop.f32.mrb[0].mxu0
        %1711 = vmatprep.mubr.bf16.mxu0 0
        %1712 = vmatmul.mubr.bf16.gmra.mrb[0].mxu0 %v1567
        %v1713 = vpop.f32.mrb[0].mxu0
        %v1714 = vadd.f32 %v1500, %v1713
        %v1715 = vpop.f32.mrb[0].mxu0
        %v1716 = vpop.f32.mrb[0].mxu0
        %v1717 = vadd.f32 %v1500, %v1716
        %v1718 = vpop.f32.mrb[0].mxu0
        %1719 = vmatprep.mubr.bf16.mxu0 0
        %1720 = vmatmul.mubr.bf16.gmra.mrb[0].mxu0 %v1570
        %v1721 = vpop.f32.mrb[0].mxu0
        %v1722 = vadd.f32 %v1500, %v1721
        %v1723 = vpop.f32.mrb[0].mxu0
        %v1724 = vpop.f32.mrb[0].mxu0
        %v1725 = vadd.f32 %v1500, %v1724
        %v1726 = vpop.f32.mrb[0].mxu0
        %1727 = vmatprep.mubr.bf16.mxu0 0
        %1728 = vmatmul.mubr.bf16.gmra.mrb[0].mxu0 %v1573
        %v1729 = vpop.f32.mrb[0].mxu0
        %v1730 = vadd.f32 %v1500, %v1729
        %v1731 = vpop.f32.mrb[0].mxu0
        %v1732 = vpop.f32.mrb[0].mxu0
        %v1733 = vadd.f32 %v1500, %v1732
        %v1734 = vpop.f32.mrb[0].mxu0
        %1735 = vdwg.mxu0
        %v1736 = vmax.f32 %v1610, 0.0
        %v1737 = vmax.f32 %v1613, 0.0
        %v1738 = vmax.f32 %v1618, 0.0
        %v1739 = vmax.f32 %v1621, 0.0
        %v1740 = vmax.f32 %v1626, 0.0
        %v1741 = vmax.f32 %v1629, 0.0
        %v1742 = vmax.f32 %v1634, 0.0
        %v1743 = vmax.f32 %v1637, 0.0
        %v1744 = vmax.f32 %v1642, 0.0
        %v1745 = vmax.f32 %v1645, 0.0
        %v1746 = vmax.f32 %v1650, 0.0
        %v1747 = vmax.f32 %v1653, 0.0
        %v1748 = vmax.f32 %v1658, 0.0
        %v1749 = vmax.f32 %v1661, 0.0
        %v1750 = vmax.f32 %v1666, 0.0
        %v1751 = vmax.f32 %v1669, 0.0
        %v1752 = vmax.f32 %v1674, 0.0
        %v1753 = vmax.f32 %v1677, 0.0
        %v1754 = vmax.f32 %v1682, 0.0
        %v1755 = vmax.f32 %v1685, 0.0
        %v1756 = vmax.f32 %v1690, 0.0
        %v1757 = vmax.f32 %v1693, 0.0
        %v1758 = vmax.f32 %v1698, 0.0
        %v1759 = vmax.f32 %v1701, 0.0
        %v1760 = vmax.f32 %v1706, 0.0
        %v1761 = vmax.f32 %v1709, 0.0
        %v1762 = vmax.f32 %v1714, 0.0
        %v1763 = vmax.f32 %v1717, 0.0
        %v1764 = vmax.f32 %v1722, 0.0
        %v1765 = vmax.f32 %v1725, 0.0
        %v1766 = vmax.f32 %v1730, 0.0
        %v1767 = vmax.f32 %v1733, 0.0
        %v1768 = vpack.c.bf16 %v1737, %v1736
        %v1769 = vpack.c.bf16 %v1739, %v1738
        %v1770 = vpack.c.bf16 %v1741, %v1740
        %v1771 = vpack.c.bf16 %v1743, %v1742
        %v1772 = vpack.c.bf16 %v1745, %v1744
        %v1773 = vpack.c.bf16 %v1747, %v1746
        %v1774 = vpack.c.bf16 %v1749, %v1748
        %v1775 = vpack.c.bf16 %v1751, %v1750
        %v1776 = vpack.c.bf16 %v1753, %v1752
        %v1777 = vpack.c.bf16 %v1755, %v1754
        %v1778 = vpack.c.bf16 %v1757, %v1756
        %v1779 = vpack.c.bf16 %v1759, %v1758
        %v1780 = vpack.c.bf16 %v1761, %v1760
        %v1781 = vpack.c.bf16 %v1763, %v1762
        %v1782 = vpack.c.bf16 %v1765, %v1764
        %v1783 = vpack.c.bf16 %v1767, %v1766
        %v1784 = vld [vmem:[%s8] sm:$0xf]
        %v1785 = vld [vmem:[%s8 + $0x4] sm:$0xf]
        %v1786 = vld [vmem:[%s9] sm:$0x1]
        %v1788 = vlaneseq
        %v1789 = vshrl.u32 %v1788, 7
        %v1790 = vsub.s32 0, %v1789
        %v1791 = vrot.slane %v1786, %v1790
        %v1795 = vunpack.c.l.b16 %v1784
        %v1796 = vunpack.c.l.b16 %v1785
        %v1797 = vpack.c.b16 %v1796, %v1795
        %vm1799 = vcmask 130048
        %v1801 = vsel %vm1799, %v1768, 0
        %v1804 = vsel %vm1799, %v1769, 0
        %v1807 = vsel %vm1799, %v1770, 0
        %v1810 = vsel %vm1799, %v1771, 0
        %v1813 = vsel %vm1799, %v1772, 0
        %v1816 = vsel %vm1799, %v1773, 0
        %v1819 = vsel %vm1799, %v1774, 0
        %v1822 = vsel %vm1799, %v1775, 0
        %v1825 = vsel %vm1799, %v1776, 0
        %v1828 = vsel %vm1799, %v1777, 0
        %v1831 = vsel %vm1799, %v1778, 0
        %v1834 = vsel %vm1799, %v1779, 0
        %v1837 = vsel %vm1799, %v1780, 0
        %v1840 = vsel %vm1799, %v1781, 0
        %v1843 = vsel %vm1799, %v1782, 0
        %v1846 = vsel %vm1799, %v1783, 0
        %1848 = vmatprep.subr.bf16.mxu0 0
        %1849 = vmatpush1.bf16.msra.mxu0 %v1797
        %1850 = vmatprep.subr.bf16.mxu0 0
        %1851 = vmatpush1.bf16.msra.mxu0 0
        %1852 = vmatprep.subr.bf16.mxu0 0
        %1853 = vmatpush1.bf16.msra.mxu0 0
        %1854 = vmatprep.subr.bf16.mxu0 0
        %1855 = vmatpush1.bf16.msra.mxu0 0
        %1856 = vmatprep.subr.bf16.mxu0 0
        %1857 = vmatpush1.bf16.msra.mxu0 0
        %1858 = vmatprep.subr.bf16.mxu0 0
        %1859 = vmatpush1.bf16.msra.mxu0 0
        %1860 = vmatprep.subr.bf16.mxu0 0
        %1861 = vmatpush1.bf16.msra.mxu0 0
        %1862 = vmatprep.subr.bf16.mxu0 0
        %1863 = vmatpush1.bf16.msra.mxu0 0
        %1864 = vmatprep.subr.bf16.mxu0 0
        %1865 = vmatpush1.bf16.msra.mxu0 0
        %1866 = vmatprep.subr.bf16.mxu0 0
        %1867 = vmatpush1.bf16.msra.mxu0 0
        %1868 = vmatprep.subr.bf16.mxu0 0
        %1869 = vmatpush1.bf16.msra.mxu0 0
        %1870 = vmatprep.subr.bf16.mxu0 0
        %1871 = vmatpush1.bf16.msra.mxu0 0
        %1872 = vmatprep.subr.bf16.mxu0 0
        %1873 = vmatpush1.bf16.msra.mxu0 0
        %1874 = vmatprep.subr.bf16.mxu0 0
        %1875 = vmatpush1.bf16.msra.mxu0 0
        %1876 = vmatprep.subr.bf16.mxu0 0
        %1877 = vmatpush1.bf16.msra.mxu0 0
        %1878 = vmatprep.subr.bf16.mxu0 0
        %1879 = vmatpush1.bf16.msra.mxu0 0
        %1880 = vmatprep.mubr.bf16.mxu0 0
        %1881 = vmatmul.mubr.bf16.gmra.mrb[0].mxu0 %v1801
        %v1882 = vpop.f32.mrb[0].mxu0
        %v1883 = vadd.f32 %v1791, %v1882
        %v1884 = vpop.f32.mrb[0].mxu0
        %v1885 = vpop.f32.mrb[0].mxu0
        %v1886 = vadd.f32 %v1791, %v1885
        %v1887 = vpop.f32.mrb[0].mxu0
        %1888 = vmatprep.mubr.bf16.mxu0 0
        %1889 = vmatmul.mubr.bf16.gmra.mrb[0].mxu0 %v1804
        %v1890 = vpop.f32.mrb[0].mxu0
        %v1891 = vadd.f32 %v1791, %v1890
        %v1892 = vpop.f32.mrb[0].mxu0
        %v1893 = vpop.f32.mrb[0].mxu0
        %v1894 = vadd.f32 %v1791, %v1893
        %v1895 = vpop.f32.mrb[0].mxu0
        %1896 = vmatprep.mubr.bf16.mxu0 0
        %1897 = vmatmul.mubr.bf16.gmra.mrb[0].mxu0 %v1807
        %v1898 = vpop.f32.mrb[0].mxu0
        %v1899 = vadd.f32 %v1791, %v1898
        %v1900 = vpop.f32.mrb[0].mxu0
        %v1901 = vpop.f32.mrb[0].mxu0
        %v1902 = vadd.f32 %v1791, %v1901
        %v1903 = vpop.f32.mrb[0].mxu0
        %1904 = vmatprep.mubr.bf16.mxu0 0
        %1905 = vmatmul.mubr.bf16.gmra.mrb[0].mxu0 %v1810
        %v1906 = vpop.f32.mrb[0].mxu0
        %v1907 = vadd.f32 %v1791, %v1906
        %v1908 = vpop.f32.mrb[0].mxu0
        %v1909 = vpop.f32.mrb[0].mxu0
        %v1910 = vadd.f32 %v1791, %v1909
        %v1911 = vpop.f32.mrb[0].mxu0
        %1912 = vmatprep.mubr.bf16.mxu0 0
        %1913 = vmatmul.mubr.bf16.gmra.mrb[0].mxu0 %v1813
        %v1914 = vpop.f32.mrb[0].mxu0
        %v1915 = vadd.f32 %v1791, %v1914
        %v1916 = vpop.f32.mrb[0].mxu0
        %v1917 = vpop.f32.mrb[0].mxu0
        %v1918 = vadd.f32 %v1791, %v1917
        %v1919 = vpop.f32.mrb[0].mxu0
        %1920 = vmatprep.mubr.bf16.mxu0 0
        %1921 = vmatmul.mubr.bf16.gmra.mrb[0].mxu0 %v1816
        %v1922 = vpop.f32.mrb[0].mxu0
        %v1923 = vadd.f32 %v1791, %v1922
        %v1924 = vpop.f32.mrb[0].mxu0
        %v1925 = vpop.f32.mrb[0].mxu0
        %v1926 = vadd.f32 %v1791, %v1925
        %v1927 = vpop.f32.mrb[0].mxu0
        %1928 = vmatprep.mubr.bf16.mxu0 0
        %1929 = vmatmul.mubr.bf16.gmra.mrb[0].mxu0 %v1819
        %v1930 = vpop.f32.mrb[0].mxu0
        %v1931 = vadd.f32 %v1791, %v1930
        %v1932 = vpop.f32.mrb[0].mxu0
        %v1933 = vpop.f32.mrb[0].mxu0
        %v1934 = vadd.f32 %v1791, %v1933
        %v1935 = vpop.f32.mrb[0].mxu0
        %1936 = vmatprep.mubr.bf16.mxu0 0
        %1937 = vmatmul.mubr.bf16.gmra.mrb[0].mxu0 %v1822
        %v1938 = vpop.f32.mrb[0].mxu0
        %v1939 = vadd.f32 %v1791, %v1938
        %v1940 = vpop.f32.mrb[0].mxu0
        %v1941 = vpop.f32.mrb[0].mxu0
        %v1942 = vadd.f32 %v1791, %v1941
        %v1943 = vpop.f32.mrb[0].mxu0
        %1944 = vmatprep.mubr.bf16.mxu0 0
        %1945 = vmatmul.mubr.bf16.gmra.mrb[0].mxu0 %v1825
        %v1946 = vpop.f32.mrb[0].mxu0
        %v1947 = vadd.f32 %v1791, %v1946
        %v1948 = vpop.f32.mrb[0].mxu0
        %v1949 = vpop.f32.mrb[0].mxu0
        %v1950 = vadd.f32 %v1791, %v1949
        %v1951 = vpop.f32.mrb[0].mxu0
        %1952 = vmatprep.mubr.bf16.mxu0 0
        %1953 = vmatmul.mubr.bf16.gmra.mrb[0].mxu0 %v1828
        %v1954 = vpop.f32.mrb[0].mxu0
        %v1955 = vadd.f32 %v1791, %v1954
        %v1956 = vpop.f32.mrb[0].mxu0
        %v1957 = vpop.f32.mrb[0].mxu0
        %v1958 = vadd.f32 %v1791, %v1957
        %v1959 = vpop.f32.mrb[0].mxu0
        %1960 = vmatprep.mubr.bf16.mxu0 0
        %1961 = vmatmul.mubr.bf16.gmra.mrb[0].mxu0 %v1831
        %v1962 = vpop.f32.mrb[0].mxu0
        %v1963 = vadd.f32 %v1791, %v1962
        %v1964 = vpop.f32.mrb[0].mxu0
        %v1965 = vpop.f32.mrb[0].mxu0
        %v1966 = vadd.f32 %v1791, %v1965
        %v1967 = vpop.f32.mrb[0].mxu0
        %1968 = vmatprep.mubr.bf16.mxu0 0
        %1969 = vmatmul.mubr.bf16.gmra.mrb[0].mxu0 %v1834
        %v1970 = vpop.f32.mrb[0].mxu0
        %v1971 = vadd.f32 %v1791, %v1970
        %v1972 = vpop.f32.mrb[0].mxu0
        %v1973 = vpop.f32.mrb[0].mxu0
        %v1974 = vadd.f32 %v1791, %v1973
        %v1975 = vpop.f32.mrb[0].mxu0
        %1976 = vmatprep.mubr.bf16.mxu0 0
        %1977 = vmatmul.mubr.bf16.gmra.mrb[0].mxu0 %v1837
        %v1978 = vpop.f32.mrb[0].mxu0
        %v1979 = vadd.f32 %v1791, %v1978
        %v1980 = vpop.f32.mrb[0].mxu0
        %v1981 = vpop.f32.mrb[0].mxu0
        %v1982 = vadd.f32 %v1791, %v1981
        %v1983 = vpop.f32.mrb[0].mxu0
        %1984 = vmatprep.mubr.bf16.mxu0 0
        %1985 = vmatmul.mubr.bf16.gmra.mrb[0].mxu0 %v1840
        %v1986 = vpop.f32.mrb[0].mxu0
        %v1987 = vadd.f32 %v1791, %v1986
        %v1988 = vpop.f32.mrb[0].mxu0
        %v1989 = vpop.f32.mrb[0].mxu0
        %v1990 = vadd.f32 %v1791, %v1989
        %v1991 = vpop.f32.mrb[0].mxu0
        %1992 = vmatprep.mubr.bf16.mxu0 0
        %1993 = vmatmul.mubr.bf16.gmra.mrb[0].mxu0 %v1843
        %v1994 = vpop.f32.mrb[0].mxu0
        %v1995 = vadd.f32 %v1791, %v1994
        %v1996 = vpop.f32.mrb[0].mxu0
        %v1997 = vpop.f32.mrb[0].mxu0
        %v1998 = vadd.f32 %v1791, %v1997
        %v1999 = vpop.f32.mrb[0].mxu0
        %2000 = vmatprep.mubr.bf16.mxu0 0
        %2001 = vmatmul.mubr.bf16.gmra.mrb[0].mxu0 %v1846
        %v2002 = vpop.f32.mrb[0].mxu0
        %v2003 = vadd.f32 %v1791, %v2002
        %v2004 = vpop.f32.mrb[0].mxu0
        %v2005 = vpop.f32.mrb[0].mxu0
        %v2006 = vadd.f32 %v1791, %v2005
        %v2007 = vpop.f32.mrb[0].mxu0
        %2008 = vdwg.mxu0
        %v2009 = vpack.c.bf16 %v1130, %v1128
        %v2010 = vpack.c.bf16 %v1134, %v1132
        %v2011 = vpack.c.bf16 %v1138, %v1136
        %v2012 = vpack.c.bf16 %v1142, %v1140
        %v2013 = vpack.c.bf16 %v1146, %v1144
        %v2014 = vpack.c.bf16 %v1150, %v1148
        %v2015 = vpack.c.bf16 %v1154, %v1152
        %v2016 = vpack.c.bf16 %v1158, %v1156
        %v2017 = vpack.c.bf16 %v1162, %v1160
        %v2018 = vpack.c.bf16 %v1166, %v1164
        %v2019 = vpack.c.bf16 %v1170, %v1168
        %v2020 = vpack.c.bf16 %v1174, %v1172
        %v2021 = vpack.c.bf16 %v1178, %v1176
        %v2022 = vpack.c.bf16 %v1182, %v1180
        %v2023 = vpack.c.bf16 %v1186, %v1184
        %v2024 = vpack.c.bf16 %v1190, %v1188
        %v2025 = vld [vmem:[%s10] sm:$0xf]
        %v2026 = vld [vmem:[%s10 + $0x4] sm:$0xf]
        %v2027 = vld [vmem:[%s10 + $0x8] sm:$0xf]
        %v2028 = vld [vmem:[%s10 + $0xc] sm:$0xf]
        %v2029 = vld [vmem:[%s10 + $0x10] sm:$0xf]
        %v2030 = vld [vmem:[%s10 + $0x14] sm:$0xf]
        %v2031 = vld [vmem:[%s10 + $0x18] sm:$0xf]
        %v2032 = vld [vmem:[%s10 + $0x1c] sm:$0xf]
        %v2033 = vld [vmem:[%s10 + $0x20] sm:$0xf]
        %v2034 = vld [vmem:[%s10 + $0x24] sm:$0xf]
        %v2035 = vld [vmem:[%s10 + $0x28] sm:$0xf]
        %v2036 = vld [vmem:[%s10 + $0x2c] sm:$0xf]
        %v2037 = vld [vmem:[%s10 + $0x30] sm:$0xf]
        %v2038 = vld [vmem:[%s10 + $0x34] sm:$0xf]
        %v2039 = vld [vmem:[%s10 + $0x38] sm:$0xf]
        %v2040 = vld [vmem:[%s10 + $0x3c] sm:$0xf]
        %v2041 = vld [vmem:[%s11] sm:$0x1]
        %v2043 = vlaneseq
        %v2044 = vshrl.u32 %v2043, 7
        %v2045 = vsub.s32 0, %v2044
        %v2046 = vrot.slane %v2041, %v2045
        %v2064 = vunpack.c.l.b16 %v2025
        %v2065 = vunpack.c.l.b16 %v2026
        %v2066 = vunpack.c.l.b16 %v2027
        %v2067 = vunpack.c.l.b16 %v2028
        %v2068 = vunpack.c.l.b16 %v2029
        %v2069 = vunpack.c.l.b16 %v2030
        %v2070 = vunpack.c.l.b16 %v2031
        %v2071 = vunpack.c.l.b16 %v2032
        %v2072 = vunpack.c.l.b16 %v2033
        %v2073 = vunpack.c.l.b16 %v2034
        %v2074 = vunpack.c.l.b16 %v2035
        %v2075 = vunpack.c.l.b16 %v2036
        %v2076 = vunpack.c.l.b16 %v2037
        %v2077 = vunpack.c.l.b16 %v2038
        %v2078 = vunpack.c.l.b16 %v2039
        %v2079 = vunpack.c.l.b16 %v2040
        %v2080 = vpack.c.b16 %v2065, %v2064
        %v2081 = vpack.c.b16 %v2067, %v2066
        %v2082 = vpack.c.b16 %v2069, %v2068
        %v2083 = vpack.c.b16 %v2071, %v2070
        %v2084 = vpack.c.b16 %v2073, %v2072
        %v2085 = vpack.c.b16 %v2075, %v2074
        %v2086 = vpack.c.b16 %v2077, %v2076
        %v2087 = vpack.c.b16 %v2079, %v2078
        %2096 = vmatprep.subr.bf16.mxu0 0
        %2097 = vmatpush1.bf16.msra.mxu0 %v2080
        %2098 = vmatprep.subr.bf16.mxu0 0
        %2099 = vmatpush1.bf16.msra.mxu0 %v2081
        %2100 = vmatprep.subr.bf16.mxu0 0
        %2101 = vmatpush1.bf16.msra.mxu0 %v2082
        %2102 = vmatprep.subr.bf16.mxu0 0
        %2103 = vmatpush1.bf16.msra.mxu0 %v2083
        %2104 = vmatprep.subr.bf16.mxu0 0
        %2105 = vmatpush1.bf16.msra.mxu0 %v2084
        %2106 = vmatprep.subr.bf16.mxu0 0
        %2107 = vmatpush1.bf16.msra.mxu0 %v2085
        %2108 = vmatprep.subr.bf16.mxu0 0
        %2109 = vmatpush1.bf16.msra.mxu0 %v2086
        %2110 = vmatprep.subr.bf16.mxu0 0
        %2111 = vmatpush1.bf16.msra.mxu0 %v2087
        %2112 = vmatprep.subr.bf16.mxu0 0
        %2113 = vmatpush1.bf16.msra.mxu0 0
        %2114 = vmatprep.subr.bf16.mxu0 0
        %2115 = vmatpush1.bf16.msra.mxu0 0
        %2116 = vmatprep.subr.bf16.mxu0 0
        %2117 = vmatpush1.bf16.msra.mxu0 0
        %2118 = vmatprep.subr.bf16.mxu0 0
        %2119 = vmatpush1.bf16.msra.mxu0 0
        %2120 = vmatprep.subr.bf16.mxu0 0
        %2121 = vmatpush1.bf16.msra.mxu0 0
        %2122 = vmatprep.subr.bf16.mxu0 0
        %2123 = vmatpush1.bf16.msra.mxu0 0
        %2124 = vmatprep.subr.bf16.mxu0 0
        %2125 = vmatpush1.bf16.msra.mxu0 0
        %2126 = vmatprep.subr.bf16.mxu0 0
        %2127 = vmatpush1.bf16.msra.mxu0 0
        %2128 = vmatprep.mubr.bf16.mxu0 0
        %2129 = vmatmul.mubr.bf16.gmra.mrb[0].mxu0 %v2009
        %v2130 = vpop.f32.mrb[0].mxu0
        %v2131 = vadd.f32 %v2046, %v2130
        %v2132 = vpop.f32.mrb[0].mxu0
        %v2133 = vpop.f32.mrb[0].mxu0
        %v2134 = vadd.f32 %v2046, %v2133
        %v2135 = vpop.f32.mrb[0].mxu0
        %2136 = vmatprep.mubr.bf16.mxu0 0
        %2137 = vmatmul.mubr.bf16.gmra.mrb[0].mxu0 %v2010
        %v2138 = vpop.f32.mrb[0].mxu0
        %v2139 = vadd.f32 %v2046, %v2138
        %v2140 = vpop.f32.mrb[0].mxu0
        %v2141 = vpop.f32.mrb[0].mxu0
        %v2142 = vadd.f32 %v2046, %v2141
        %v2143 = vpop.f32.mrb[0].mxu0
        %2144 = vmatprep.mubr.bf16.mxu0 0
        %2145 = vmatmul.mubr.bf16.gmra.mrb[0].mxu0 %v2011
        %v2146 = vpop.f32.mrb[0].mxu0
        %v2147 = vadd.f32 %v2046, %v2146
        %v2148 = vpop.f32.mrb[0].mxu0
        %v2149 = vpop.f32.mrb[0].mxu0
        %v2150 = vadd.f32 %v2046, %v2149
        %v2151 = vpop.f32.mrb[0].mxu0
        %2152 = vmatprep.mubr.bf16.mxu0 0
        %2153 = vmatmul.mubr.bf16.gmra.mrb[0].mxu0 %v2012
        %v2154 = vpop.f32.mrb[0].mxu0
        %v2155 = vadd.f32 %v2046, %v2154
        %v2156 = vpop.f32.mrb[0].mxu0
        %v2157 = vpop.f32.mrb[0].mxu0
        %v2158 = vadd.f32 %v2046, %v2157
        %v2159 = vpop.f32.mrb[0].mxu0
        %2160 = vmatprep.mubr.bf16.mxu0 0
        %2161 = vmatmul.mubr.bf16.gmra.mrb[0].mxu0 %v2013
        %v2162 = vpop.f32.mrb[0].mxu0
        %v2163 = vadd.f32 %v2046, %v2162
        %v2164 = vpop.f32.mrb[0].mxu0
        %v2165 = vpop.f32.mrb[0].mxu0
        %v2166 = vadd.f32 %v2046, %v2165
        %v2167 = vpop.f32.mrb[0].mxu0
        %2168 = vmatprep.mubr.bf16.mxu0 0
        %2169 = vmatmul.mubr.bf16.gmra.mrb[0].mxu0 %v2014
        %v2170 = vpop.f32.mrb[0].mxu0
        %v2171 = vadd.f32 %v2046, %v2170
        %v2172 = vpop.f32.mrb[0].mxu0
        %v2173 = vpop.f32.mrb[0].mxu0
        %v2174 = vadd.f32 %v2046, %v2173
        %v2175 = vpop.f32.mrb[0].mxu0
        %2176 = vmatprep.mubr.bf16.mxu0 0
        %2177 = vmatmul.mubr.bf16.gmra.mrb[0].mxu0 %v2015
        %v2178 = vpop.f32.mrb[0].mxu0
        %v2179 = vadd.f32 %v2046, %v2178
        %v2180 = vpop.f32.mrb[0].mxu0
        %v2181 = vpop.f32.mrb[0].mxu0
        %v2182 = vadd.f32 %v2046, %v2181
        %v2183 = vpop.f32.mrb[0].mxu0
        %2184 = vmatprep.mubr.bf16.mxu0 0
        %2185 = vmatmul.mubr.bf16.gmra.mrb[0].mxu0 %v2016
        %v2186 = vpop.f32.mrb[0].mxu0
        %v2187 = vadd.f32 %v2046, %v2186
        %v2188 = vpop.f32.mrb[0].mxu0
        %v2189 = vpop.f32.mrb[0].mxu0
        %v2190 = vadd.f32 %v2046, %v2189
        %v2191 = vpop.f32.mrb[0].mxu0
        %2192 = vmatprep.mubr.bf16.mxu0 0
        %2193 = vmatmul.mubr.bf16.gmra.mrb[0].mxu0 %v2017
        %v2194 = vpop.f32.mrb[0].mxu0
        %v2195 = vadd.f32 %v2046, %v2194
        %v2196 = vpop.f32.mrb[0].mxu0
        %v2197 = vpop.f32.mrb[0].mxu0
        %v2198 = vadd.f32 %v2046, %v2197
        %v2199 = vpop.f32.mrb[0].mxu0
        %2200 = vmatprep.mubr.bf16.mxu0 0
        %2201 = vmatmul.mubr.bf16.gmra.mrb[0].mxu0 %v2018
        %v2202 = vpop.f32.mrb[0].mxu0
        %v2203 = vadd.f32 %v2046, %v2202
        %v2204 = vpop.f32.mrb[0].mxu0
        %v2205 = vpop.f32.mrb[0].mxu0
        %v2206 = vadd.f32 %v2046, %v2205
        %v2207 = vpop.f32.mrb[0].mxu0
        %2208 = vmatprep.mubr.bf16.mxu0 0
        %2209 = vmatmul.mubr.bf16.gmra.mrb[0].mxu0 %v2019
        %v2210 = vpop.f32.mrb[0].mxu0
        %v2211 = vadd.f32 %v2046, %v2210
        %v2212 = vpop.f32.mrb[0].mxu0
        %v2213 = vpop.f32.mrb[0].mxu0
        %v2214 = vadd.f32 %v2046, %v2213
        %v2215 = vpop.f32.mrb[0].mxu0
        %2216 = vmatprep.mubr.bf16.mxu0 0
        %2217 = vmatmul.mubr.bf16.gmra.mrb[0].mxu0 %v2020
        %v2218 = vpop.f32.mrb[0].mxu0
        %v2219 = vadd.f32 %v2046, %v2218
        %v2220 = vpop.f32.mrb[0].mxu0
        %v2221 = vpop.f32.mrb[0].mxu0
        %v2222 = vadd.f32 %v2046, %v2221
        %v2223 = vpop.f32.mrb[0].mxu0
        %2224 = vmatprep.mubr.bf16.mxu0 0
        %2225 = vmatmul.mubr.bf16.gmra.mrb[0].mxu0 %v2021
        %v2226 = vpop.f32.mrb[0].mxu0
        %v2227 = vadd.f32 %v2046, %v2226
        %v2228 = vpop.f32.mrb[0].mxu0
        %v2229 = vpop.f32.mrb[0].mxu0
        %v2230 = vadd.f32 %v2046, %v2229
        %v2231 = vpop.f32.mrb[0].mxu0
        %2232 = vmatprep.mubr.bf16.mxu0 0
        %2233 = vmatmul.mubr.bf16.gmra.mrb[0].mxu0 %v2022
        %v2234 = vpop.f32.mrb[0].mxu0
        %v2235 = vadd.f32 %v2046, %v2234
        %v2236 = vpop.f32.mrb[0].mxu0
        %v2237 = vpop.f32.mrb[0].mxu0
        %v2238 = vadd.f32 %v2046, %v2237
        %v2239 = vpop.f32.mrb[0].mxu0
        %2240 = vmatprep.mubr.bf16.mxu0 0
        %2241 = vmatmul.mubr.bf16.gmra.mrb[0].mxu0 %v2023
        %v2242 = vpop.f32.mrb[0].mxu0
        %v2243 = vadd.f32 %v2046, %v2242
        %v2244 = vpop.f32.mrb[0].mxu0
        %v2245 = vpop.f32.mrb[0].mxu0
        %v2246 = vadd.f32 %v2046, %v2245
        %v2247 = vpop.f32.mrb[0].mxu0
        %2248 = vmatprep.mubr.bf16.mxu0 0
        %2249 = vmatmul.mubr.bf16.gmra.mrb[0].mxu0 %v2024
        %v2250 = vpop.f32.mrb[0].mxu0
        %v2251 = vadd.f32 %v2046, %v2250
        %v2252 = vpop.f32.mrb[0].mxu0
        %v2253 = vpop.f32.mrb[0].mxu0
        %v2254 = vadd.f32 %v2046, %v2253
        %v2255 = vpop.f32.mrb[0].mxu0
        %2256 = vdwg.mxu0
        %v2257 = vmax.f32 %v2131, 0.0
        %v2258 = vmax.f32 %v2134, 0.0
        %v2259 = vmax.f32 %v2139, 0.0
        %v2260 = vmax.f32 %v2142, 0.0
        %v2261 = vmax.f32 %v2147, 0.0
        %v2262 = vmax.f32 %v2150, 0.0
        %v2263 = vmax.f32 %v2155, 0.0
        %v2264 = vmax.f32 %v2158, 0.0
        %v2265 = vmax.f32 %v2163, 0.0
        %v2266 = vmax.f32 %v2166, 0.0
        %v2267 = vmax.f32 %v2171, 0.0
        %v2268 = vmax.f32 %v2174, 0.0
        %v2269 = vmax.f32 %v2179, 0.0
        %v2270 = vmax.f32 %v2182, 0.0
        %v2271 = vmax.f32 %v2187, 0.0
        %v2272 = vmax.f32 %v2190, 0.0
        %v2273 = vmax.f32 %v2195, 0.0
        %v2274 = vmax.f32 %v2198, 0.0
        %v2275 = vmax.f32 %v2203, 0.0
        %v2276 = vmax.f32 %v2206, 0.0
        %v2277 = vmax.f32 %v2211, 0.0
        %v2278 = vmax.f32 %v2214, 0.0
        %v2279 = vmax.f32 %v2219, 0.0
        %v2280 = vmax.f32 %v2222, 0.0
        %v2281 = vmax.f32 %v2227, 0.0
        %v2282 = vmax.f32 %v2230, 0.0
        %v2283 = vmax.f32 %v2235, 0.0
        %v2284 = vmax.f32 %v2238, 0.0
        %v2285 = vmax.f32 %v2243, 0.0
        %v2286 = vmax.f32 %v2246, 0.0
        %v2287 = vmax.f32 %v2251, 0.0
        %v2288 = vmax.f32 %v2254, 0.0
        %v2289 = vpack.c.bf16 %v2258, %v2257
        %v2290 = vpack.c.bf16 %v2260, %v2259
        %v2291 = vpack.c.bf16 %v2262, %v2261
        %v2292 = vpack.c.bf16 %v2264, %v2263
        %v2293 = vpack.c.bf16 %v2266, %v2265
        %v2294 = vpack.c.bf16 %v2268, %v2267
        %v2295 = vpack.c.bf16 %v2270, %v2269
        %v2296 = vpack.c.bf16 %v2272, %v2271
        %v2297 = vpack.c.bf16 %v2274, %v2273
        %v2298 = vpack.c.bf16 %v2276, %v2275
        %v2299 = vpack.c.bf16 %v2278, %v2277
        %v2300 = vpack.c.bf16 %v2280, %v2279
        %v2301 = vpack.c.bf16 %v2282, %v2281
        %v2302 = vpack.c.bf16 %v2284, %v2283
        %v2303 = vpack.c.bf16 %v2286, %v2285
        %v2304 = vpack.c.bf16 %v2288, %v2287
        %v2305 = vld [vmem:[%s12] sm:$0xf]
        %v2306 = vld [vmem:[%s12 + $0x4] sm:$0xf]
        %v2307 = vld [vmem:[%s12 + $0x8] sm:$0xf]
        %v2308 = vld [vmem:[%s12 + $0xc] sm:$0xf]
        %v2309 = vld [vmem:[%s12 + $0x10] sm:$0xf]
        %v2310 = vld [vmem:[%s12 + $0x14] sm:$0xf]
        %v2311 = vld [vmem:[%s12 + $0x18] sm:$0xf]
        %v2312 = vld [vmem:[%s12 + $0x1c] sm:$0xf]
        %v2313 = vld [vmem:[%s13] sm:$0x1]
        %v2315 = vlaneseq
        %v2316 = vshrl.u32 %v2315, 7
        %v2317 = vsub.s32 0, %v2316
        %v2318 = vrot.slane %v2313, %v2317
        %v2328 = vunpack.c.l.b16 %v2305
        %v2329 = vunpack.c.l.b16 %v2306
        %v2330 = vunpack.c.l.b16 %v2307
        %v2331 = vunpack.c.l.b16 %v2308
        %v2332 = vunpack.c.l.b16 %v2309
        %v2333 = vunpack.c.l.b16 %v2310
        %v2334 = vunpack.c.l.b16 %v2311
        %v2335 = vunpack.c.l.b16 %v2312
        %v2336 = vpack.c.b16 %v2329, %v2328
        %v2337 = vpack.c.b16 %v2331, %v2330
        %v2338 = vpack.c.b16 %v2333, %v2332
        %v2339 = vpack.c.b16 %v2335, %v2334
        %v2345 = vsel %vm1526, %v2289, 0
        %v2348 = vsel %vm1526, %v2290, 0
        %v2351 = vsel %vm1526, %v2291, 0
        %v2354 = vsel %vm1526, %v2292, 0
        %v2357 = vsel %vm1526, %v2293, 0
        %v2360 = vsel %vm1526, %v2294, 0
        %v2363 = vsel %vm1526, %v2295, 0
        %v2366 = vsel %vm1526, %v2296, 0
        %v2369 = vsel %vm1526, %v2297, 0
        %v2372 = vsel %vm1526, %v2298, 0
        %v2375 = vsel %vm1526, %v2299, 0
        %v2378 = vsel %vm1526, %v2300, 0
        %v2381 = vsel %vm1526, %v2301, 0
        %v2384 = vsel %vm1526, %v2302, 0
        %v2387 = vsel %vm1526, %v2303, 0
        %v2390 = vsel %vm1526, %v2304, 0
        %2392 = vmatprep.subr.bf16.mxu0 0
        %2393 = vmatpush1.bf16.msra.mxu0 %v2336
        %2394 = vmatprep.subr.bf16.mxu0 0
        %2395 = vmatpush1.bf16.msra.mxu0 %v2337
        %2396 = vmatprep.subr.bf16.mxu0 0
        %2397 = vmatpush1.bf16.msra.mxu0 %v2338
        %2398 = vmatprep.subr.bf16.mxu0 0
        %2399 = vmatpush1.bf16.msra.mxu0 %v2339
        %2400 = vmatprep.subr.bf16.mxu0 0
        %2401 = vmatpush1.bf16.msra.mxu0 0
        %2402 = vmatprep.subr.bf16.mxu0 0
        %2403 = vmatpush1.bf16.msra.mxu0 0
        %2404 = vmatprep.subr.bf16.mxu0 0
        %2405 = vmatpush1.bf16.msra.mxu0 0
        %2406 = vmatprep.subr.bf16.mxu0 0
        %2407 = vmatpush1.bf16.msra.mxu0 0
        %2408 = vmatprep.subr.bf16.mxu0 0
        %2409 = vmatpush1.bf16.msra.mxu0 0
        %2410 = vmatprep.subr.bf16.mxu0 0
        %2411 = vmatpush1.bf16.msra.mxu0 0
        %2412 = vmatprep.subr.bf16.mxu0 0
        %2413 = vmatpush1.bf16.msra.mxu0 0
        %2414 = vmatprep.subr.bf16.mxu0 0
        %2415 = vmatpush1.bf16.msra.mxu0 0
        %2416 = vmatprep.subr.bf16.mxu0 0
        %2417 = vmatpush1.bf16.msra.mxu0 0
        %2418 = vmatprep.subr.bf16.mxu0 0
        %2419 = vmatpush1.bf16.msra.mxu0 0
        %2420 = vmatprep.subr.bf16.mxu0 0
        %2421 = vmatpush1.bf16.msra.mxu0 0
        %2422 = vmatprep.subr.bf16.mxu0 0
        %2423 = vmatpush1.bf16.msra.mxu0 0
        %2424 = vmatprep.mubr.bf16.mxu0 0
        %2425 = vmatmul.mubr.bf16.gmra.mrb[0].mxu0 %v2345
        %v2426 = vpop.f32.mrb[0].mxu0
        %v2427 = vadd.f32 %v2318, %v2426
        %v2428 = vpop.f32.mrb[0].mxu0
        %v2429 = vpop.f32.mrb[0].mxu0
        %v2430 = vadd.f32 %v2318, %v2429
        %v2431 = vpop.f32.mrb[0].mxu0
        %2432 = vmatprep.mubr.bf16.mxu0 0
        %2433 = vmatmul.mubr.bf16.gmra.mrb[0].mxu0 %v2348
        %v2434 = vpop.f32.mrb[0].mxu0
        %v2435 = vadd.f32 %v2318, %v2434
        %v2436 = vpop.f32.mrb[0].mxu0
        %v2437 = vpop.f32.mrb[0].mxu0
        %v2438 = vadd.f32 %v2318, %v2437
        %v2439 = vpop.f32.mrb[0].mxu0
        %2440 = vmatprep.mubr.bf16.mxu0 0
        %2441 = vmatmul.mubr.bf16.gmra.mrb[0].mxu0 %v2351
        %v2442 = vpop.f32.mrb[0].mxu0
        %v2443 = vadd.f32 %v2318, %v2442
        %v2444 = vpop.f32.mrb[0].mxu0
        %v2445 = vpop.f32.mrb[0].mxu0
        %v2446 = vadd.f32 %v2318, %v2445
        %v2447 = vpop.f32.mrb[0].mxu0
        %2448 = vmatprep.mubr.bf16.mxu0 0
        %2449 = vmatmul.mubr.bf16.gmra.mrb[0].mxu0 %v2354
        %v2450 = vpop.f32.mrb[0].mxu0
        %v2451 = vadd.f32 %v2318, %v2450
        %v2452 = vpop.f32.mrb[0].mxu0
        %v2453 = vpop.f32.mrb[0].mxu0
        %v2454 = vadd.f32 %v2318, %v2453
        %v2455 = vpop.f32.mrb[0].mxu0
        %2456 = vmatprep.mubr.bf16.mxu0 0
        %2457 = vmatmul.mubr.bf16.gmra.mrb[0].mxu0 %v2357
        %v2458 = vpop.f32.mrb[0].mxu0
        %v2459 = vadd.f32 %v2318, %v2458
        %v2460 = vpop.f32.mrb[0].mxu0
        %v2461 = vpop.f32.mrb[0].mxu0
        %v2462 = vadd.f32 %v2318, %v2461
        %v2463 = vpop.f32.mrb[0].mxu0
        %2464 = vmatprep.mubr.bf16.mxu0 0
        %2465 = vmatmul.mubr.bf16.gmra.mrb[0].mxu0 %v2360
        %v2466 = vpop.f32.mrb[0].mxu0
        %v2467 = vadd.f32 %v2318, %v2466
        %v2468 = vpop.f32.mrb[0].mxu0
        %v2469 = vpop.f32.mrb[0].mxu0
        %v2470 = vadd.f32 %v2318, %v2469
        %v2471 = vpop.f32.mrb[0].mxu0
        %2472 = vmatprep.mubr.bf16.mxu0 0
        %2473 = vmatmul.mubr.bf16.gmra.mrb[0].mxu0 %v2363
        %v2474 = vpop.f32.mrb[0].mxu0
        %v2475 = vadd.f32 %v2318, %v2474
        %v2476 = vpop.f32.mrb[0].mxu0
        %v2477 = vpop.f32.mrb[0].mxu0
        %v2478 = vadd.f32 %v2318, %v2477
        %v2479 = vpop.f32.mrb[0].mxu0
        %2480 = vmatprep.mubr.bf16.mxu0 0
        %2481 = vmatmul.mubr.bf16.gmra.mrb[0].mxu0 %v2366
        %v2482 = vpop.f32.mrb[0].mxu0
        %v2483 = vadd.f32 %v2318, %v2482
        %v2484 = vpop.f32.mrb[0].mxu0
        %v2485 = vpop.f32.mrb[0].mxu0
        %v2486 = vadd.f32 %v2318, %v2485
        %v2487 = vpop.f32.mrb[0].mxu0
        %2488 = vmatprep.mubr.bf16.mxu0 0
        %2489 = vmatmul.mubr.bf16.gmra.mrb[0].mxu0 %v2369
        %v2490 = vpop.f32.mrb[0].mxu0
        %v2491 = vadd.f32 %v2318, %v2490
        %v2492 = vpop.f32.mrb[0].mxu0
        %v2493 = vpop.f32.mrb[0].mxu0
        %v2494 = vadd.f32 %v2318, %v2493
        %v2495 = vpop.f32.mrb[0].mxu0
        %2496 = vmatprep.mubr.bf16.mxu0 0
        %2497 = vmatmul.mubr.bf16.gmra.mrb[0].mxu0 %v2372
        %v2498 = vpop.f32.mrb[0].mxu0
        %v2499 = vadd.f32 %v2318, %v2498
        %v2500 = vpop.f32.mrb[0].mxu0
        %v2501 = vpop.f32.mrb[0].mxu0
        %v2502 = vadd.f32 %v2318, %v2501
        %v2503 = vpop.f32.mrb[0].mxu0
        %2504 = vmatprep.mubr.bf16.mxu0 0
        %2505 = vmatmul.mubr.bf16.gmra.mrb[0].mxu0 %v2375
        %v2506 = vpop.f32.mrb[0].mxu0
        %v2507 = vadd.f32 %v2318, %v2506
        %v2508 = vpop.f32.mrb[0].mxu0
        %v2509 = vpop.f32.mrb[0].mxu0
        %v2510 = vadd.f32 %v2318, %v2509
        %v2511 = vpop.f32.mrb[0].mxu0
        %2512 = vmatprep.mubr.bf16.mxu0 0
        %2513 = vmatmul.mubr.bf16.gmra.mrb[0].mxu0 %v2378
        %v2514 = vpop.f32.mrb[0].mxu0
        %v2515 = vadd.f32 %v2318, %v2514
        %v2516 = vpop.f32.mrb[0].mxu0
        %v2517 = vpop.f32.mrb[0].mxu0
        %v2518 = vadd.f32 %v2318, %v2517
        %v2519 = vpop.f32.mrb[0].mxu0
        %2520 = vmatprep.mubr.bf16.mxu0 0
        %2521 = vmatmul.mubr.bf16.gmra.mrb[0].mxu0 %v2381
        %v2522 = vpop.f32.mrb[0].mxu0
        %v2523 = vadd.f32 %v2318, %v2522
        %v2524 = vpop.f32.mrb[0].mxu0
        %v2525 = vpop.f32.mrb[0].mxu0
        %v2526 = vadd.f32 %v2318, %v2525
        %v2527 = vpop.f32.mrb[0].mxu0
        %2528 = vmatprep.mubr.bf16.mxu0 0
        %2529 = vmatmul.mubr.bf16.gmra.mrb[0].mxu0 %v2384
        %v2530 = vpop.f32.mrb[0].mxu0
        %v2531 = vadd.f32 %v2318, %v2530
        %v2532 = vpop.f32.mrb[0].mxu0
        %v2533 = vpop.f32.mrb[0].mxu0
        %v2534 = vadd.f32 %v2318, %v2533
        %v2535 = vpop.f32.mrb[0].mxu0
        %2536 = vmatprep.mubr.bf16.mxu0 0
        %2537 = vmatmul.mubr.bf16.gmra.mrb[0].mxu0 %v2387
        %v2538 = vpop.f32.mrb[0].mxu0
        %v2539 = vadd.f32 %v2318, %v2538
        %v2540 = vpop.f32.mrb[0].mxu0
        %v2541 = vpop.f32.mrb[0].mxu0
        %v2542 = vadd.f32 %v2318, %v2541
        %v2543 = vpop.f32.mrb[0].mxu0
        %2544 = vmatprep.mubr.bf16.mxu0 0
        %2545 = vmatmul.mubr.bf16.gmra.mrb[0].mxu0 %v2390
        %v2546 = vpop.f32.mrb[0].mxu0
        %v2547 = vadd.f32 %v2318, %v2546
        %v2548 = vpop.f32.mrb[0].mxu0
        %v2549 = vpop.f32.mrb[0].mxu0
        %v2550 = vadd.f32 %v2318, %v2549
        %v2551 = vpop.f32.mrb[0].mxu0
        %2552 = vdwg.mxu0
        %v2553 = vmax.f32 %v2427, 0.0
        %v2554 = vmax.f32 %v2430, 0.0
        %v2555 = vmax.f32 %v2435, 0.0
        %v2556 = vmax.f32 %v2438, 0.0
        %v2557 = vmax.f32 %v2443, 0.0
        %v2558 = vmax.f32 %v2446, 0.0
        %v2559 = vmax.f32 %v2451, 0.0
        %v2560 = vmax.f32 %v2454, 0.0
        %v2561 = vmax.f32 %v2459, 0.0
        %v2562 = vmax.f32 %v2462, 0.0
        %v2563 = vmax.f32 %v2467, 0.0
        %v2564 = vmax.f32 %v2470, 0.0
        %v2565 = vmax.f32 %v2475, 0.0
        %v2566 = vmax.f32 %v2478, 0.0
        %v2567 = vmax.f32 %v2483, 0.0
        %v2568 = vmax.f32 %v2486, 0.0
        %v2569 = vmax.f32 %v2491, 0.0
        %v2570 = vmax.f32 %v2494, 0.0
        %v2571 = vmax.f32 %v2499, 0.0
        %v2572 = vmax.f32 %v2502, 0.0
        %v2573 = vmax.f32 %v2507, 0.0
        %v2574 = vmax.f32 %v2510, 0.0
        %v2575 = vmax.f32 %v2515, 0.0
        %v2576 = vmax.f32 %v2518, 0.0
        %v2577 = vmax.f32 %v2523, 0.0
        %v2578 = vmax.f32 %v2526, 0.0
        %v2579 = vmax.f32 %v2531, 0.0
        %v2580 = vmax.f32 %v2534, 0.0
        %v2581 = vmax.f32 %v2539, 0.0
        %v2582 = vmax.f32 %v2542, 0.0
        %v2583 = vmax.f32 %v2547, 0.0
        %v2584 = vmax.f32 %v2550, 0.0
        %v2585 = vpack.c.bf16 %v2554, %v2553
        %v2586 = vpack.c.bf16 %v2556, %v2555
        %v2587 = vpack.c.bf16 %v2558, %v2557
        %v2588 = vpack.c.bf16 %v2560, %v2559
        %v2589 = vpack.c.bf16 %v2562, %v2561
        %v2590 = vpack.c.bf16 %v2564, %v2563
        %v2591 = vpack.c.bf16 %v2566, %v2565
        %v2592 = vpack.c.bf16 %v2568, %v2567
        %v2593 = vpack.c.bf16 %v2570, %v2569
        %v2594 = vpack.c.bf16 %v2572, %v2571
        %v2595 = vpack.c.bf16 %v2574, %v2573
        %v2596 = vpack.c.bf16 %v2576, %v2575
        %v2597 = vpack.c.bf16 %v2578, %v2577
        %v2598 = vpack.c.bf16 %v2580, %v2579
        %v2599 = vpack.c.bf16 %v2582, %v2581
        %v2600 = vpack.c.bf16 %v2584, %v2583
        %v2601 = vld [vmem:[%s14] sm:$0xf]
        %v2602 = vld [vmem:[%s14 + $0x4] sm:$0xf]
        %v2603 = vld [vmem:[%s15] sm:$0x1]
        %v2605 = vlaneseq
        %v2606 = vshrl.u32 %v2605, 7
        %v2607 = vsub.s32 0, %v2606
        %v2608 = vrot.slane %v2603, %v2607
        %v2612 = vunpack.c.l.b16 %v2601
        %v2613 = vunpack.c.l.b16 %v2602
        %v2614 = vpack.c.b16 %v2613, %v2612
        %v2617 = vsel %vm1799, %v2585, 0
        %v2620 = vsel %vm1799, %v2586, 0
        %v2623 = vsel %vm1799, %v2587, 0
        %v2626 = vsel %vm1799, %v2588, 0
        %v2629 = vsel %vm1799, %v2589, 0
        %v2632 = vsel %vm1799, %v2590, 0
        %v2635 = vsel %vm1799, %v2591, 0
        %v2638 = vsel %vm1799, %v2592, 0
        %v2641 = vsel %vm1799, %v2593, 0
        %v2644 = vsel %vm1799, %v2594, 0
        %v2647 = vsel %vm1799, %v2595, 0
        %v2650 = vsel %vm1799, %v2596, 0
        %v2653 = vsel %vm1799, %v2597, 0
        %v2656 = vsel %vm1799, %v2598, 0
        %v2659 = vsel %vm1799, %v2599, 0
        %v2662 = vsel %vm1799, %v2600, 0
        %2664 = vmatprep.subr.bf16.mxu0 0
        %2665 = vmatpush1.bf16.msra.mxu0 %v2614
        %2666 = vmatprep.subr.bf16.mxu0 0
        %2667 = vmatpush1.bf16.msra.mxu0 0
        %2668 = vmatprep.subr.bf16.mxu0 0
        %2669 = vmatpush1.bf16.msra.mxu0 0
        %2670 = vmatprep.subr.bf16.mxu0 0
        %2671 = vmatpush1.bf16.msra.mxu0 0
        %2672 = vmatprep.subr.bf16.mxu0 0
        %2673 = vmatpush1.bf16.msra.mxu0 0
        %2674 = vmatprep.subr.bf16.mxu0 0
        %2675 = vmatpush1.bf16.msra.mxu0 0
        %2676 = vmatprep.subr.bf16.mxu0 0
        %2677 = vmatpush1.bf16.msra.mxu0 0
        %2678 = vmatprep.subr.bf16.mxu0 0
        %2679 = vmatpush1.bf16.msra.mxu0 0
        %2680 = vmatprep.subr.bf16.mxu0 0
        %2681 = vmatpush1.bf16.msra.mxu0 0
        %2682 = vmatprep.subr.bf16.mxu0 0
        %2683 = vmatpush1.bf16.msra.mxu0 0
        %2684 = vmatprep.subr.bf16.mxu0 0
        %2685 = vmatpush1.bf16.msra.mxu0 0
        %2686 = vmatprep.subr.bf16.mxu0 0
        %2687 = vmatpush1.bf16.msra.mxu0 0
        %2688 = vmatprep.subr.bf16.mxu0 0
        %2689 = vmatpush1.bf16.msra.mxu0 0
        %2690 = vmatprep.subr.bf16.mxu0 0
        %2691 = vmatpush1.bf16.msra.mxu0 0
        %2692 = vmatprep.subr.bf16.mxu0 0
        %2693 = vmatpush1.bf16.msra.mxu0 0
        %2694 = vmatprep.subr.bf16.mxu0 0
        %2695 = vmatpush1.bf16.msra.mxu0 0
        %2696 = vmatprep.mubr.bf16.mxu0 0
        %2697 = vmatmul.mubr.bf16.gmra.mrb[0].mxu0 %v2617
        %v2698 = vpop.f32.mrb[0].mxu0
        %v2699 = vadd.f32 %v2608, %v2698
        %v2700 = vpop.f32.mrb[0].mxu0
        %v2701 = vpop.f32.mrb[0].mxu0
        %v2702 = vadd.f32 %v2608, %v2701
        %v2703 = vpop.f32.mrb[0].mxu0
        %2704 = vmatprep.mubr.bf16.mxu0 0
        %2705 = vmatmul.mubr.bf16.gmra.mrb[0].mxu0 %v2620
        %v2706 = vpop.f32.mrb[0].mxu0
        %v2707 = vadd.f32 %v2608, %v2706
        %v2708 = vpop.f32.mrb[0].mxu0
        %v2709 = vpop.f32.mrb[0].mxu0
        %v2710 = vadd.f32 %v2608, %v2709
        %v2711 = vpop.f32.mrb[0].mxu0
        %2712 = vmatprep.mubr.bf16.mxu0 0
        %2713 = vmatmul.mubr.bf16.gmra.mrb[0].mxu0 %v2623
        %v2714 = vpop.f32.mrb[0].mxu0
        %v2715 = vadd.f32 %v2608, %v2714
        %v2716 = vpop.f32.mrb[0].mxu0
        %v2717 = vpop.f32.mrb[0].mxu0
        %v2718 = vadd.f32 %v2608, %v2717
        %v2719 = vpop.f32.mrb[0].mxu0
        %2720 = vmatprep.mubr.bf16.mxu0 0
        %2721 = vmatmul.mubr.bf16.gmra.mrb[0].mxu0 %v2626
        %v2722 = vpop.f32.mrb[0].mxu0
        %v2723 = vadd.f32 %v2608, %v2722
        %v2724 = vpop.f32.mrb[0].mxu0
        %v2725 = vpop.f32.mrb[0].mxu0
        %v2726 = vadd.f32 %v2608, %v2725
        %v2727 = vpop.f32.mrb[0].mxu0
        %2728 = vmatprep.mubr.bf16.mxu0 0
        %2729 = vmatmul.mubr.bf16.gmra.mrb[0].mxu0 %v2629
        %v2730 = vpop.f32.mrb[0].mxu0
        %v2731 = vadd.f32 %v2608, %v2730
        %v2732 = vpop.f32.mrb[0].mxu0
        %v2733 = vpop.f32.mrb[0].mxu0
        %v2734 = vadd.f32 %v2608, %v2733
        %v2735 = vpop.f32.mrb[0].mxu0
        %2736 = vmatprep.mubr.bf16.mxu0 0
        %2737 = vmatmul.mubr.bf16.gmra.mrb[0].mxu0 %v2632
        %v2738 = vpop.f32.mrb[0].mxu0
        %v2739 = vadd.f32 %v2608, %v2738
        %v2740 = vpop.f32.mrb[0].mxu0
        %v2741 = vpop.f32.mrb[0].mxu0
        %v2742 = vadd.f32 %v2608, %v2741
        %v2743 = vpop.f32.mrb[0].mxu0
        %2744 = vmatprep.mubr.bf16.mxu0 0
        %2745 = vmatmul.mubr.bf16.gmra.mrb[0].mxu0 %v2635
        %v2746 = vpop.f32.mrb[0].mxu0
        %v2747 = vadd.f32 %v2608, %v2746
        %v2748 = vpop.f32.mrb[0].mxu0
        %v2749 = vpop.f32.mrb[0].mxu0
        %v2750 = vadd.f32 %v2608, %v2749
        %v2751 = vpop.f32.mrb[0].mxu0
        %2752 = vmatprep.mubr.bf16.mxu0 0
        %2753 = vmatmul.mubr.bf16.gmra.mrb[0].mxu0 %v2638
        %v2754 = vpop.f32.mrb[0].mxu0
        %v2755 = vadd.f32 %v2608, %v2754
        %v2756 = vpop.f32.mrb[0].mxu0
        %v2757 = vpop.f32.mrb[0].mxu0
        %v2758 = vadd.f32 %v2608, %v2757
        %v2759 = vpop.f32.mrb[0].mxu0
        %2760 = vmatprep.mubr.bf16.mxu0 0
        %2761 = vmatmul.mubr.bf16.gmra.mrb[0].mxu0 %v2641
        %v2762 = vpop.f32.mrb[0].mxu0
        %v2763 = vadd.f32 %v2608, %v2762
        %v2764 = vpop.f32.mrb[0].mxu0
        %v2765 = vpop.f32.mrb[0].mxu0
        %v2766 = vadd.f32 %v2608, %v2765
        %v2767 = vpop.f32.mrb[0].mxu0
        %2768 = vmatprep.mubr.bf16.mxu0 0
        %2769 = vmatmul.mubr.bf16.gmra.mrb[0].mxu0 %v2644
        %v2770 = vpop.f32.mrb[0].mxu0
        %v2771 = vadd.f32 %v2608, %v2770
        %v2772 = vpop.f32.mrb[0].mxu0
        %v2773 = vpop.f32.mrb[0].mxu0
        %v2774 = vadd.f32 %v2608, %v2773
        %v2775 = vpop.f32.mrb[0].mxu0
        %2776 = vmatprep.mubr.bf16.mxu0 0
        %2777 = vmatmul.mubr.bf16.gmra.mrb[0].mxu0 %v2647
        %v2778 = vpop.f32.mrb[0].mxu0
        %v2779 = vadd.f32 %v2608, %v2778
        %v2780 = vpop.f32.mrb[0].mxu0
        %v2781 = vpop.f32.mrb[0].mxu0
        %v2782 = vadd.f32 %v2608, %v2781
        %v2783 = vpop.f32.mrb[0].mxu0
        %2784 = vmatprep.mubr.bf16.mxu0 0
        %2785 = vmatmul.mubr.bf16.gmra.mrb[0].mxu0 %v2650
        %v2786 = vpop.f32.mrb[0].mxu0
        %v2787 = vadd.f32 %v2608, %v2786
        %v2788 = vpop.f32.mrb[0].mxu0
        %v2789 = vpop.f32.mrb[0].mxu0
        %v2790 = vadd.f32 %v2608, %v2789
        %v2791 = vpop.f32.mrb[0].mxu0
        %2792 = vmatprep.mubr.bf16.mxu0 0
        %2793 = vmatmul.mubr.bf16.gmra.mrb[0].mxu0 %v2653
        %v2794 = vpop.f32.mrb[0].mxu0
        %v2795 = vadd.f32 %v2608, %v2794
        %v2796 = vpop.f32.mrb[0].mxu0
        %v2797 = vpop.f32.mrb[0].mxu0
        %v2798 = vadd.f32 %v2608, %v2797
        %v2799 = vpop.f32.mrb[0].mxu0
        %2800 = vmatprep.mubr.bf16.mxu0 0
        %2801 = vmatmul.mubr.bf16.gmra.mrb[0].mxu0 %v2656
        %v2802 = vpop.f32.mrb[0].mxu0
        %v2803 = vadd.f32 %v2608, %v2802
        %v2804 = vpop.f32.mrb[0].mxu0
        %v2805 = vpop.f32.mrb[0].mxu0
        %v2806 = vadd.f32 %v2608, %v2805
        %v2807 = vpop.f32.mrb[0].mxu0
        %2808 = vmatprep.mubr.bf16.mxu0 0
        %2809 = vmatmul.mubr.bf16.gmra.mrb[0].mxu0 %v2659
        %v2810 = vpop.f32.mrb[0].mxu0
        %v2811 = vadd.f32 %v2608, %v2810
        %v2812 = vpop.f32.mrb[0].mxu0
        %v2813 = vpop.f32.mrb[0].mxu0
        %v2814 = vadd.f32 %v2608, %v2813
        %v2815 = vpop.f32.mrb[0].mxu0
        %2816 = vmatprep.mubr.bf16.mxu0 0
        %2817 = vmatmul.mubr.bf16.gmra.mrb[0].mxu0 %v2662
        %v2818 = vpop.f32.mrb[0].mxu0
        %v2819 = vadd.f32 %v2608, %v2818
        %v2820 = vpop.f32.mrb[0].mxu0
        %v2821 = vpop.f32.mrb[0].mxu0
        %v2822 = vadd.f32 %v2608, %v2821
        %v2823 = vpop.f32.mrb[0].mxu0
        %2824 = vdwg.mxu0
        %v2825 = vmax.f32 %v2699, 0.0
        %v2826 = vmax.f32 %v2702, 0.0
        %v2827 = vmax.f32 %v2707, 0.0
        %v2828 = vmax.f32 %v2710, 0.0
        %v2829 = vmax.f32 %v2715, 0.0
        %v2830 = vmax.f32 %v2718, 0.0
        %v2831 = vmax.f32 %v2723, 0.0
        %v2832 = vmax.f32 %v2726, 0.0
        %v2833 = vmax.f32 %v2731, 0.0
        %v2834 = vmax.f32 %v2734, 0.0
        %v2835 = vmax.f32 %v2739, 0.0
        %v2836 = vmax.f32 %v2742, 0.0
        %v2837 = vmax.f32 %v2747, 0.0
        %v2838 = vmax.f32 %v2750, 0.0
        %v2839 = vmax.f32 %v2755, 0.0
        %v2840 = vmax.f32 %v2758, 0.0
        %v2841 = vmax.f32 %v2763, 0.0
        %v2842 = vmax.f32 %v2766, 0.0
        %v2843 = vmax.f32 %v2771, 0.0
        %v2844 = vmax.f32 %v2774, 0.0
        %v2845 = vmax.f32 %v2779, 0.0
        %v2846 = vmax.f32 %v2782, 0.0
        %v2847 = vmax.f32 %v2787, 0.0
        %v2848 = vmax.f32 %v2790, 0.0
        %v2849 = vmax.f32 %v2795, 0.0
        %v2850 = vmax.f32 %v2798, 0.0
        %v2851 = vmax.f32 %v2803, 0.0
        %v2852 = vmax.f32 %v2806, 0.0
        %v2853 = vmax.f32 %v2811, 0.0
        %v2854 = vmax.f32 %v2814, 0.0
        %v2855 = vmax.f32 %v2819, 0.0
        %v2856 = vmax.f32 %v2822, 0.0
        %v2857 = vpack.c.bf16 %v2826, %v2825
        %v2858 = vpack.c.bf16 %v2828, %v2827
        %v2859 = vpack.c.bf16 %v2830, %v2829
        %v2860 = vpack.c.bf16 %v2832, %v2831
        %v2861 = vpack.c.bf16 %v2834, %v2833
        %v2862 = vpack.c.bf16 %v2836, %v2835
        %v2863 = vpack.c.bf16 %v2838, %v2837
        %v2864 = vpack.c.bf16 %v2840, %v2839
        %v2865 = vpack.c.bf16 %v2842, %v2841
        %v2866 = vpack.c.bf16 %v2844, %v2843
        %v2867 = vpack.c.bf16 %v2846, %v2845
        %v2868 = vpack.c.bf16 %v2848, %v2847
        %v2869 = vpack.c.bf16 %v2850, %v2849
        %v2870 = vpack.c.bf16 %v2852, %v2851
        %v2871 = vpack.c.bf16 %v2854, %v2853
        %v2872 = vpack.c.bf16 %v2856, %v2855
        %v2873 = vld [vmem:[%s16] sm:$0xf]
        %v2874 = vld [vmem:[%s16 + $0x4] sm:$0xf]
        %v2875 = vld [vmem:[%s17] sm:$0x1]
        %v2877 = vlaneseq
        %v2878 = vshrl.u32 %v2877, 7
        %v2879 = vsub.s32 0, %v2878
        %v2880 = vrot.slane %v2875, %v2879
        %v2884 = vunpack.c.l.b16 %v2873
        %v2885 = vunpack.c.l.b16 %v2874
        %v2886 = vpack.c.b16 %v2885, %v2884
        %v2889 = vsel %vm1799, %v2857, 0
        %v2892 = vsel %vm1799, %v2858, 0
        %v2895 = vsel %vm1799, %v2859, 0
        %v2898 = vsel %vm1799, %v2860, 0
        %v2901 = vsel %vm1799, %v2861, 0
        %v2904 = vsel %vm1799, %v2862, 0
        %v2907 = vsel %vm1799, %v2863, 0
        %v2910 = vsel %vm1799, %v2864, 0
        %v2913 = vsel %vm1799, %v2865, 0
        %v2916 = vsel %vm1799, %v2866, 0
        %v2919 = vsel %vm1799, %v2867, 0
        %v2922 = vsel %vm1799, %v2868, 0
        %v2925 = vsel %vm1799, %v2869, 0
        %v2928 = vsel %vm1799, %v2870, 0
        %v2931 = vsel %vm1799, %v2871, 0
        %v2934 = vsel %vm1799, %v2872, 0
        %2936 = vmatprep.subr.bf16.mxu0 0
        %2937 = vmatpush1.bf16.msra.mxu0 %v2886
        %2938 = vmatprep.subr.bf16.mxu0 0
        %2939 = vmatpush1.bf16.msra.mxu0 0
        %2940 = vmatprep.subr.bf16.mxu0 0
        %2941 = vmatpush1.bf16.msra.mxu0 0
        %2942 = vmatprep.subr.bf16.mxu0 0
        %2943 = vmatpush1.bf16.msra.mxu0 0
        %2944 = vmatprep.subr.bf16.mxu0 0
        %2945 = vmatpush1.bf16.msra.mxu0 0
        %2946 = vmatprep.subr.bf16.mxu0 0
        %2947 = vmatpush1.bf16.msra.mxu0 0
        %2948 = vmatprep.subr.bf16.mxu0 0
        %2949 = vmatpush1.bf16.msra.mxu0 0
        %2950 = vmatprep.subr.bf16.mxu0 0
        %2951 = vmatpush1.bf16.msra.mxu0 0
        %2952 = vmatprep.subr.bf16.mxu0 0
        %2953 = vmatpush1.bf16.msra.mxu0 0
        %2954 = vmatprep.subr.bf16.mxu0 0
        %2955 = vmatpush1.bf16.msra.mxu0 0
        %2956 = vmatprep.subr.bf16.mxu0 0
        %2957 = vmatpush1.bf16.msra.mxu0 0
        %2958 = vmatprep.subr.bf16.mxu0 0
        %2959 = vmatpush1.bf16.msra.mxu0 0
        %2960 = vmatprep.subr.bf16.mxu0 0
        %2961 = vmatpush1.bf16.msra.mxu0 0
        %2962 = vmatprep.subr.bf16.mxu0 0
        %2963 = vmatpush1.bf16.msra.mxu0 0
        %2964 = vmatprep.subr.bf16.mxu0 0
        %2965 = vmatpush1.bf16.msra.mxu0 0
        %2966 = vmatprep.subr.bf16.mxu0 0
        %2967 = vmatpush1.bf16.msra.mxu0 0
        %2968 = vmatprep.mubr.bf16.mxu0 0
        %2969 = vmatmul.mubr.bf16.gmra.mrb[0].mxu0 %v2889
        %v2970 = vpop.f32.mrb[0].mxu0
        %v2971 = vadd.f32 %v2880, %v2970
        %v2972 = vpop.f32.mrb[0].mxu0
        %v2973 = vpop.f32.mrb[0].mxu0
        %v2974 = vadd.f32 %v2880, %v2973
        %v2975 = vpop.f32.mrb[0].mxu0
        %2976 = vmatprep.mubr.bf16.mxu0 0
        %2977 = vmatmul.mubr.bf16.gmra.mrb[0].mxu0 %v2892
        %v2978 = vpop.f32.mrb[0].mxu0
        %v2979 = vadd.f32 %v2880, %v2978
        %v2980 = vpop.f32.mrb[0].mxu0
        %v2981 = vpop.f32.mrb[0].mxu0
        %v2982 = vadd.f32 %v2880, %v2981
        %v2983 = vpop.f32.mrb[0].mxu0
        %2984 = vmatprep.mubr.bf16.mxu0 0
        %2985 = vmatmul.mubr.bf16.gmra.mrb[0].mxu0 %v2895
        %v2986 = vpop.f32.mrb[0].mxu0
        %v2987 = vadd.f32 %v2880, %v2986
        %v2988 = vpop.f32.mrb[0].mxu0
        %v2989 = vpop.f32.mrb[0].mxu0
        %v2990 = vadd.f32 %v2880, %v2989
        %v2991 = vpop.f32.mrb[0].mxu0
        %2992 = vmatprep.mubr.bf16.mxu0 0
        %2993 = vmatmul.mubr.bf16.gmra.mrb[0].mxu0 %v2898
        %v2994 = vpop.f32.mrb[0].mxu0
        %v2995 = vadd.f32 %v2880, %v2994
        %v2996 = vpop.f32.mrb[0].mxu0
        %v2997 = vpop.f32.mrb[0].mxu0
        %v2998 = vadd.f32 %v2880, %v2997
        %v2999 = vpop.f32.mrb[0].mxu0
        %3000 = vmatprep.mubr.bf16.mxu0 0
        %3001 = vmatmul.mubr.bf16.gmra.mrb[0].mxu0 %v2901
        %v3002 = vpop.f32.mrb[0].mxu0
        %v3003 = vadd.f32 %v2880, %v3002
        %v3004 = vpop.f32.mrb[0].mxu0
        %v3005 = vpop.f32.mrb[0].mxu0
        %v3006 = vadd.f32 %v2880, %v3005
        %v3007 = vpop.f32.mrb[0].mxu0
        %3008 = vmatprep.mubr.bf16.mxu0 0
        %3009 = vmatmul.mubr.bf16.gmra.mrb[0].mxu0 %v2904
        %v3010 = vpop.f32.mrb[0].mxu0
        %v3011 = vadd.f32 %v2880, %v3010
        %v3012 = vpop.f32.mrb[0].mxu0
        %v3013 = vpop.f32.mrb[0].mxu0
        %v3014 = vadd.f32 %v2880, %v3013
        %v3015 = vpop.f32.mrb[0].mxu0
        %3016 = vmatprep.mubr.bf16.mxu0 0
        %3017 = vmatmul.mubr.bf16.gmra.mrb[0].mxu0 %v2907
        %v3018 = vpop.f32.mrb[0].mxu0
        %v3019 = vadd.f32 %v2880, %v3018
        %v3020 = vpop.f32.mrb[0].mxu0
        %v3021 = vpop.f32.mrb[0].mxu0
        %v3022 = vadd.f32 %v2880, %v3021
        %v3023 = vpop.f32.mrb[0].mxu0
        %3024 = vmatprep.mubr.bf16.mxu0 0
        %3025 = vmatmul.mubr.bf16.gmra.mrb[0].mxu0 %v2910
        %v3026 = vpop.f32.mrb[0].mxu0
        %v3027 = vadd.f32 %v2880, %v3026
        %v3028 = vpop.f32.mrb[0].mxu0
        %v3029 = vpop.f32.mrb[0].mxu0
        %v3030 = vadd.f32 %v2880, %v3029
        %v3031 = vpop.f32.mrb[0].mxu0
        %3032 = vmatprep.mubr.bf16.mxu0 0
        %3033 = vmatmul.mubr.bf16.gmra.mrb[0].mxu0 %v2913
        %v3034 = vpop.f32.mrb[0].mxu0
        %v3035 = vadd.f32 %v2880, %v3034
        %v3036 = vpop.f32.mrb[0].mxu0
        %v3037 = vpop.f32.mrb[0].mxu0
        %v3038 = vadd.f32 %v2880, %v3037
        %v3039 = vpop.f32.mrb[0].mxu0
        %3040 = vmatprep.mubr.bf16.mxu0 0
        %3041 = vmatmul.mubr.bf16.gmra.mrb[0].mxu0 %v2916
        %v3042 = vpop.f32.mrb[0].mxu0
        %v3043 = vadd.f32 %v2880, %v3042
        %v3044 = vpop.f32.mrb[0].mxu0
        %v3045 = vpop.f32.mrb[0].mxu0
        %v3046 = vadd.f32 %v2880, %v3045
        %v3047 = vpop.f32.mrb[0].mxu0
        %3048 = vmatprep.mubr.bf16.mxu0 0
        %3049 = vmatmul.mubr.bf16.gmra.mrb[0].mxu0 %v2919
        %v3050 = vpop.f32.mrb[0].mxu0
        %v3051 = vadd.f32 %v2880, %v3050
        %v3052 = vpop.f32.mrb[0].mxu0
        %v3053 = vpop.f32.mrb[0].mxu0
        %v3054 = vadd.f32 %v2880, %v3053
        %v3055 = vpop.f32.mrb[0].mxu0
        %3056 = vmatprep.mubr.bf16.mxu0 0
        %3057 = vmatmul.mubr.bf16.gmra.mrb[0].mxu0 %v2922
        %v3058 = vpop.f32.mrb[0].mxu0
        %v3059 = vadd.f32 %v2880, %v3058
        %v3060 = vpop.f32.mrb[0].mxu0
        %v3061 = vpop.f32.mrb[0].mxu0
        %v3062 = vadd.f32 %v2880, %v3061
        %v3063 = vpop.f32.mrb[0].mxu0
        %3064 = vmatprep.mubr.bf16.mxu0 0
        %3065 = vmatmul.mubr.bf16.gmra.mrb[0].mxu0 %v2925
        %v3066 = vpop.f32.mrb[0].mxu0
        %v3067 = vadd.f32 %v2880, %v3066
        %v3068 = vpop.f32.mrb[0].mxu0
        %v3069 = vpop.f32.mrb[0].mxu0
        %v3070 = vadd.f32 %v2880, %v3069
        %v3071 = vpop.f32.mrb[0].mxu0
        %3072 = vmatprep.mubr.bf16.mxu0 0
        %3073 = vmatmul.mubr.bf16.gmra.mrb[0].mxu0 %v2928
        %v3074 = vpop.f32.mrb[0].mxu0
        %v3075 = vadd.f32 %v2880, %v3074
        %v3076 = vpop.f32.mrb[0].mxu0
        %v3077 = vpop.f32.mrb[0].mxu0
        %v3078 = vadd.f32 %v2880, %v3077
        %v3079 = vpop.f32.mrb[0].mxu0
        %3080 = vmatprep.mubr.bf16.mxu0 0
        %3081 = vmatmul.mubr.bf16.gmra.mrb[0].mxu0 %v2931
        %v3082 = vpop.f32.mrb[0].mxu0
        %v3083 = vadd.f32 %v2880, %v3082
        %v3084 = vpop.f32.mrb[0].mxu0
        %v3085 = vpop.f32.mrb[0].mxu0
        %v3086 = vadd.f32 %v2880, %v3085
        %v3087 = vpop.f32.mrb[0].mxu0
        %3088 = vmatprep.mubr.bf16.mxu0 0
        %3089 = vmatmul.mubr.bf16.gmra.mrb[0].mxu0 %v2934
        %v3090 = vpop.f32.mrb[0].mxu0
        %v3091 = vadd.f32 %v2880, %v3090
        %v3092 = vpop.f32.mrb[0].mxu0
        %v3093 = vpop.f32.mrb[0].mxu0
        %v3094 = vadd.f32 %v2880, %v3093
        %v3095 = vpop.f32.mrb[0].mxu0
        %3096 = vdwg.mxu0
        %vm3097 = vcmask 31744
        %v3098 = vsel %vm3097, %v2971, -inf
        %3099 = vmax.xlane.f32.xlu0 %v3098
        %v3100 = vpop.xlane.xlu0 %3099
        %v3101 = vsel %vm3097, %v2974, -inf
        %3102 = vmax.xlane.f32.xlu0 %v3101
        %v3103 = vpop.xlane.xlu0 %3102
        %v3104 = vsel %vm3097, %v2979, -inf
        %3105 = vmax.xlane.f32.xlu0 %v3104
        %v3106 = vpop.xlane.xlu0 %3105
        %v3107 = vsel %vm3097, %v2982, -inf
        %3108 = vmax.xlane.f32.xlu0 %v3107
        %v3109 = vpop.xlane.xlu0 %3108
        %v3110 = vsel %vm3097, %v2987, -inf
        %3111 = vmax.xlane.f32.xlu0 %v3110
        %v3112 = vpop.xlane.xlu0 %3111
        %v3113 = vsel %vm3097, %v2990, -inf
        %3114 = vmax.xlane.f32.xlu0 %v3113
        %v3115 = vpop.xlane.xlu0 %3114
        %v3116 = vsel %vm3097, %v2995, -inf
        %3117 = vmax.xlane.f32.xlu0 %v3116
        %v3118 = vpop.xlane.xlu0 %3117
        %v3119 = vsel %vm3097, %v2998, -inf
        %3120 = vmax.xlane.f32.xlu0 %v3119
        %v3121 = vpop.xlane.xlu0 %3120
        %v3122 = vsel %vm3097, %v3003, -inf
        %3123 = vmax.xlane.f32.xlu0 %v3122
        %v3124 = vpop.xlane.xlu0 %3123
        %v3125 = vsel %vm3097, %v3006, -inf
        %3126 = vmax.xlane.f32.xlu0 %v3125
        %v3127 = vpop.xlane.xlu0 %3126
        %v3128 = vsel %vm3097, %v3011, -inf
        %3129 = vmax.xlane.f32.xlu0 %v3128
        %v3130 = vpop.xlane.xlu0 %3129
        %v3131 = vsel %vm3097, %v3014, -inf
        %3132 = vmax.xlane.f32.xlu0 %v3131
        %v3133 = vpop.xlane.xlu0 %3132
        %v3134 = vsel %vm3097, %v3019, -inf
        %3135 = vmax.xlane.f32.xlu0 %v3134
        %v3136 = vpop.xlane.xlu0 %3135
        %v3137 = vsel %vm3097, %v3022, -inf
        %3138 = vmax.xlane.f32.xlu0 %v3137
        %v3139 = vpop.xlane.xlu0 %3138
        %v3140 = vsel %vm3097, %v3027, -inf
        %3141 = vmax.xlane.f32.xlu0 %v3140
        %v3142 = vpop.xlane.xlu0 %3141
        %v3143 = vsel %vm3097, %v3030, -inf
        %3144 = vmax.xlane.f32.xlu0 %v3143
        %v3145 = vpop.xlane.xlu0 %3144
        %v3146 = vsel %vm3097, %v3035, -inf
        %3147 = vmax.xlane.f32.xlu0 %v3146
        %v3148 = vpop.xlane.xlu0 %3147
        %v3149 = vsel %vm3097, %v3038, -inf
        %3150 = vmax.xlane.f32.xlu0 %v3149
        %v3151 = vpop.xlane.xlu0 %3150
        %v3152 = vsel %vm3097, %v3043, -inf
        %3153 = vmax.xlane.f32.xlu0 %v3152
        %v3154 = vpop.xlane.xlu0 %3153
        %v3155 = vsel %vm3097, %v3046, -inf
        %3156 = vmax.xlane.f32.xlu0 %v3155
        %v3157 = vpop.xlane.xlu0 %3156
        %v3158 = vsel %vm3097, %v3051, -inf
        %3159 = vmax.xlane.f32.xlu0 %v3158
        %v3160 = vpop.xlane.xlu0 %3159
        %v3161 = vsel %vm3097, %v3054, -inf
        %3162 = vmax.xlane.f32.xlu0 %v3161
        %v3163 = vpop.xlane.xlu0 %3162
        %v3164 = vsel %vm3097, %v3059, -inf
        %3165 = vmax.xlane.f32.xlu0 %v3164
        %v3166 = vpop.xlane.xlu0 %3165
        %v3167 = vsel %vm3097, %v3062, -inf
        %3168 = vmax.xlane.f32.xlu0 %v3167
        %v3169 = vpop.xlane.xlu0 %3168
        %v3170 = vsel %vm3097, %v3067, -inf
        %3171 = vmax.xlane.f32.xlu0 %v3170
        %v3172 = vpop.xlane.xlu0 %3171
        %v3173 = vsel %vm3097, %v3070, -inf
        %3174 = vmax.xlane.f32.xlu0 %v3173
        %v3175 = vpop.xlane.xlu0 %3174
        %v3176 = vsel %vm3097, %v3075, -inf
        %3177 = vmax.xlane.f32.xlu0 %v3176
        %v3178 = vpop.xlane.xlu0 %3177
        %v3179 = vsel %vm3097, %v3078, -inf
        %3180 = vmax.xlane.f32.xlu0 %v3179
        %v3181 = vpop.xlane.xlu0 %3180
        %v3182 = vsel %vm3097, %v3083, -inf
        %3183 = vmax.xlane.f32.xlu0 %v3182
        %v3184 = vpop.xlane.xlu0 %3183
        %v3185 = vsel %vm3097, %v3086, -inf
        %3186 = vmax.xlane.f32.xlu0 %v3185
        %v3187 = vpop.xlane.xlu0 %3186
        %v3188 = vsel %vm3097, %v3091, -inf
        %3189 = vmax.xlane.f32.xlu0 %v3188
        %v3190 = vpop.xlane.xlu0 %3189
        %v3191 = vsel %vm3097, %v3094, -inf
        %3192 = vmax.xlane.f32.xlu0 %v3191
        %v3193 = vpop.xlane.xlu0 %3192
        %v3194 = vsub.f32 %v2971, %v3100
        %v3195 = vsub.f32 %v2974, %v3103
        %v3196 = vsub.f32 %v2979, %v3106
        %v3197 = vsub.f32 %v2982, %v3109
        %v3198 = vsub.f32 %v2987, %v3112
        %v3199 = vsub.f32 %v2990, %v3115
        %v3200 = vsub.f32 %v2995, %v3118
        %v3201 = vsub.f32 %v2998, %v3121
        %v3202 = vsub.f32 %v3003, %v3124
        %v3203 = vsub.f32 %v3006, %v3127
        %v3204 = vsub.f32 %v3011, %v3130
        %v3205 = vsub.f32 %v3014, %v3133
        %v3206 = vsub.f32 %v3019, %v3136
        %v3207 = vsub.f32 %v3022, %v3139
        %v3208 = vsub.f32 %v3027, %v3142
        %v3209 = vsub.f32 %v3030, %v3145
        %v3210 = vsub.f32 %v3035, %v3148
        %v3211 = vsub.f32 %v3038, %v3151
        %v3212 = vsub.f32 %v3043, %v3154
        %v3213 = vsub.f32 %v3046, %v3157
        %v3214 = vsub.f32 %v3051, %v3160
        %v3215 = vsub.f32 %v3054, %v3163
        %v3216 = vsub.f32 %v3059, %v3166
        %v3217 = vsub.f32 %v3062, %v3169
        %v3218 = vsub.f32 %v3067, %v3172
        %v3219 = vsub.f32 %v3070, %v3175
        %v3220 = vsub.f32 %v3075, %v3178
        %v3221 = vsub.f32 %v3078, %v3181
        %v3222 = vsub.f32 %v3083, %v3184
        %v3223 = vsub.f32 %v3086, %v3187
        %v3224 = vsub.f32 %v3091, %v3190
        %v3225 = vsub.f32 %v3094, %v3193
        %v3226 = vmul.f32 %v3194, 1.442695
        %v3227 = vpow.pop %v3226
        %v3228 = vmul.f32 %v3195, 1.442695
        %v3229 = vpow.pop %v3228
        %v3230 = vmul.f32 %v3196, 1.442695
        %v3231 = vpow.pop %v3230
        %v3232 = vmul.f32 %v3197, 1.442695
        %v3233 = vpow.pop %v3232
        %v3234 = vmul.f32 %v3198, 1.442695
        %v3235 = vpow.pop %v3234
        %v3236 = vmul.f32 %v3199, 1.442695
        %v3237 = vpow.pop %v3236
        %v3238 = vmul.f32 %v3200, 1.442695
        %v3239 = vpow.pop %v3238
        %v3240 = vmul.f32 %v3201, 1.442695
        %v3241 = vpow.pop %v3240
        %v3242 = vmul.f32 %v3202, 1.442695
        %v3243 = vpow.pop %v3242
        %v3244 = vmul.f32 %v3203, 1.442695
        %v3245 = vpow.pop %v3244
        %v3246 = vmul.f32 %v3204, 1.442695
        %v3247 = vpow.pop %v3246
        %v3248 = vmul.f32 %v3205, 1.442695
        %v3249 = vpow.pop %v3248
        %v3250 = vmul.f32 %v3206, 1.442695
        %v3251 = vpow.pop %v3250
        %v3252 = vmul.f32 %v3207, 1.442695
        %v3253 = vpow.pop %v3252
        %v3254 = vmul.f32 %v3208, 1.442695
        %v3255 = vpow.pop %v3254
        %v3256 = vmul.f32 %v3209, 1.442695
        %v3257 = vpow.pop %v3256
        %v3258 = vmul.f32 %v3210, 1.442695
        %v3259 = vpow.pop %v3258
        %v3260 = vmul.f32 %v3211, 1.442695
        %v3261 = vpow.pop %v3260
        %v3262 = vmul.f32 %v3212, 1.442695
        %v3263 = vpow.pop %v3262
        %v3264 = vmul.f32 %v3213, 1.442695
        %v3265 = vpow.pop %v3264
        %v3266 = vmul.f32 %v3214, 1.442695
        %v3267 = vpow.pop %v3266
        %v3268 = vmul.f32 %v3215, 1.442695
        %v3269 = vpow.pop %v3268
        %v3270 = vmul.f32 %v3216, 1.442695
        %v3271 = vpow.pop %v3270
        %v3272 = vmul.f32 %v3217, 1.442695
        %v3273 = vpow.pop %v3272
        %v3274 = vmul.f32 %v3218, 1.442695
        %v3275 = vpow.pop %v3274
        %v3276 = vmul.f32 %v3219, 1.442695
        %v3277 = vpow.pop %v3276
        %v3278 = vmul.f32 %v3220, 1.442695
        %v3279 = vpow.pop %v3278
        %v3280 = vmul.f32 %v3221, 1.442695
        %v3281 = vpow.pop %v3280
        %v3282 = vmul.f32 %v3222, 1.442695
        %v3283 = vpow.pop %v3282
        %v3284 = vmul.f32 %v3223, 1.442695
        %v3285 = vpow.pop %v3284
        %v3286 = vmul.f32 %v3224, 1.442695
        %v3287 = vpow.pop %v3286
        %v3288 = vmul.f32 %v3225, 1.442695
        %v3289 = vpow.pop %v3288
        %v3290 = vsel %vm3097, %v3227, 0.0
        %3291 = vadd.xlane.f32.xlu0 %v3290
        %v3292 = vpop.xlane.xlu0 %3291
        %v3293 = vsel %vm3097, %v3229, 0.0
        %3294 = vadd.xlane.f32.xlu0 %v3293
        %v3295 = vpop.xlane.xlu0 %3294
        %v3296 = vsel %vm3097, %v3231, 0.0
        %3297 = vadd.xlane.f32.xlu0 %v3296
        %v3298 = vpop.xlane.xlu0 %3297
        %v3299 = vsel %vm3097, %v3233, 0.0
        %3300 = vadd.xlane.f32.xlu0 %v3299
        %v3301 = vpop.xlane.xlu0 %3300
        %v3302 = vsel %vm3097, %v3235, 0.0
        %3303 = vadd.xlane.f32.xlu0 %v3302
        %v3304 = vpop.xlane.xlu0 %3303
        %v3305 = vsel %vm3097, %v3237, 0.0
        %3306 = vadd.xlane.f32.xlu0 %v3305
        %v3307 = vpop.xlane.xlu0 %3306
        %v3308 = vsel %vm3097, %v3239, 0.0
        %3309 = vadd.xlane.f32.xlu0 %v3308
        %v3310 = vpop.xlane.xlu0 %3309
        %v3311 = vsel %vm3097, %v3241, 0.0
        %3312 = vadd.xlane.f32.xlu0 %v3311
        %v3313 = vpop.xlane.xlu0 %3312
        %v3314 = vsel %vm3097, %v3243, 0.0
        %3315 = vadd.xlane.f32.xlu0 %v3314
        %v3316 = vpop.xlane.xlu0 %3315
        %v3317 = vsel %vm3097, %v3245, 0.0
        %3318 = vadd.xlane.f32.xlu0 %v3317
        %v3319 = vpop.xlane.xlu0 %3318
        %v3320 = vsel %vm3097, %v3247, 0.0
        %3321 = vadd.xlane.f32.xlu0 %v3320
        %v3322 = vpop.xlane.xlu0 %3321
        %v3323 = vsel %vm3097, %v3249, 0.0
        %3324 = vadd.xlane.f32.xlu0 %v3323
        %v3325 = vpop.xlane.xlu0 %3324
        %v3326 = vsel %vm3097, %v3251, 0.0
        %3327 = vadd.xlane.f32.xlu0 %v3326
        %v3328 = vpop.xlane.xlu0 %3327
        %v3329 = vsel %vm3097, %v3253, 0.0
        %3330 = vadd.xlane.f32.xlu0 %v3329
        %v3331 = vpop.xlane.xlu0 %3330
        %v3332 = vsel %vm3097, %v3255, 0.0
        %3333 = vadd.xlane.f32.xlu0 %v3332
        %v3334 = vpop.xlane.xlu0 %3333
        %v3335 = vsel %vm3097, %v3257, 0.0
        %3336 = vadd.xlane.f32.xlu0 %v3335
        %v3337 = vpop.xlane.xlu0 %3336
        %v3338 = vsel %vm3097, %v3259, 0.0
        %3339 = vadd.xlane.f32.xlu0 %v3338
        %v3340 = vpop.xlane.xlu0 %3339
        %v3341 = vsel %vm3097, %v3261, 0.0
        %3342 = vadd.xlane.f32.xlu0 %v3341
        %v3343 = vpop.xlane.xlu0 %3342
        %v3344 = vsel %vm3097, %v3263, 0.0
        %3345 = vadd.xlane.f32.xlu0 %v3344
        %v3346 = vpop.xlane.xlu0 %3345
        %v3347 = vsel %vm3097, %v3265, 0.0
        %3348 = vadd.xlane.f32.xlu0 %v3347
        %v3349 = vpop.xlane.xlu0 %3348
        %v3350 = vsel %vm3097, %v3267, 0.0
        %3351 = vadd.xlane.f32.xlu0 %v3350
        %v3352 = vpop.xlane.xlu0 %3351
        %v3353 = vsel %vm3097, %v3269, 0.0
        %3354 = vadd.xlane.f32.xlu0 %v3353
        %v3355 = vpop.xlane.xlu0 %3354
        %v3356 = vsel %vm3097, %v3271, 0.0
        %3357 = vadd.xlane.f32.xlu0 %v3356
        %v3358 = vpop.xlane.xlu0 %3357
        %v3359 = vsel %vm3097, %v3273, 0.0
        %3360 = vadd.xlane.f32.xlu0 %v3359
        %v3361 = vpop.xlane.xlu0 %3360
        %v3362 = vsel %vm3097, %v3275, 0.0
        %3363 = vadd.xlane.f32.xlu0 %v3362
        %v3364 = vpop.xlane.xlu0 %3363
        %v3365 = vsel %vm3097, %v3277, 0.0
        %3366 = vadd.xlane.f32.xlu0 %v3365
        %v3367 = vpop.xlane.xlu0 %3366
        %v3368 = vsel %vm3097, %v3279, 0.0
        %3369 = vadd.xlane.f32.xlu0 %v3368
        %v3370 = vpop.xlane.xlu0 %3369
        %v3371 = vsel %vm3097, %v3281, 0.0
        %3372 = vadd.xlane.f32.xlu0 %v3371
        %v3373 = vpop.xlane.xlu0 %3372
        %v3374 = vsel %vm3097, %v3283, 0.0
        %3375 = vadd.xlane.f32.xlu0 %v3374
        %v3376 = vpop.xlane.xlu0 %3375
        %v3377 = vsel %vm3097, %v3285, 0.0
        %3378 = vadd.xlane.f32.xlu0 %v3377
        %v3379 = vpop.xlane.xlu0 %3378
        %v3380 = vsel %vm3097, %v3287, 0.0
        %3381 = vadd.xlane.f32.xlu0 %v3380
        %v3382 = vpop.xlane.xlu0 %3381
        %v3383 = vsel %vm3097, %v3289, 0.0
        %3384 = vadd.xlane.f32.xlu0 %v3383
        %v3385 = vpop.xlane.xlu0 %3384
        %v3386 = vrcp.pop %v3292
        %v3387 = vrcp.pop %v3295
        %v3388 = vrcp.pop %v3298
        %v3389 = vrcp.pop %v3301
        %v3390 = vrcp.pop %v3304
        %v3391 = vrcp.pop %v3307
        %v3392 = vrcp.pop %v3310
        %v3393 = vrcp.pop %v3313
        %v3394 = vrcp.pop %v3316
        %v3395 = vrcp.pop %v3319
        %v3396 = vrcp.pop %v3322
        %v3397 = vrcp.pop %v3325
        %v3398 = vrcp.pop %v3328
        %v3399 = vrcp.pop %v3331
        %v3400 = vrcp.pop %v3334
        %v3401 = vrcp.pop %v3337
        %v3402 = vrcp.pop %v3340
        %v3403 = vrcp.pop %v3343
        %v3404 = vrcp.pop %v3346
        %v3405 = vrcp.pop %v3349
        %v3406 = vrcp.pop %v3352
        %v3407 = vrcp.pop %v3355
        %v3408 = vrcp.pop %v3358
        %v3409 = vrcp.pop %v3361
        %v3410 = vrcp.pop %v3364
        %v3411 = vrcp.pop %v3367
        %v3412 = vrcp.pop %v3370
        %v3413 = vrcp.pop %v3373
        %v3414 = vrcp.pop %v3376
        %v3415 = vrcp.pop %v3379
        %v3416 = vrcp.pop %v3382
        %v3417 = vrcp.pop %v3385
        %v3418 = vmul.f32 %v3227, %v3386
        %v3419 = vmul.f32 %v3229, %v3387
        %v3420 = vmul.f32 %v3231, %v3388
        %v3421 = vmul.f32 %v3233, %v3389
        %v3422 = vmul.f32 %v3235, %v3390
        %v3423 = vmul.f32 %v3237, %v3391
        %v3424 = vmul.f32 %v3239, %v3392
        %v3425 = vmul.f32 %v3241, %v3393
        %v3426 = vmul.f32 %v3243, %v3394
        %v3427 = vmul.f32 %v3245, %v3395
        %v3428 = vmul.f32 %v3247, %v3396
        %v3429 = vmul.f32 %v3249, %v3397
        %v3430 = vmul.f32 %v3251, %v3398
        %v3431 = vmul.f32 %v3253, %v3399
        %v3432 = vmul.f32 %v3255, %v3400
        %v3433 = vmul.f32 %v3257, %v3401
        %v3434 = vmul.f32 %v3259, %v3402
        %v3435 = vmul.f32 %v3261, %v3403
        %v3436 = vmul.f32 %v3263, %v3404
        %v3437 = vmul.f32 %v3265, %v3405
        %v3438 = vmul.f32 %v3267, %v3406
        %v3439 = vmul.f32 %v3269, %v3407
        %v3440 = vmul.f32 %v3271, %v3408
        %v3441 = vmul.f32 %v3273, %v3409
        %v3442 = vmul.f32 %v3275, %v3410
        %v3443 = vmul.f32 %v3277, %v3411
        %v3444 = vmul.f32 %v3279, %v3412
        %v3445 = vmul.f32 %v3281, %v3413
        %v3446 = vmul.f32 %v3283, %v3414
        %v3447 = vmul.f32 %v3285, %v3415
        %v3448 = vmul.f32 %v3287, %v3416
        %v3449 = vmul.f32 %v3289, %v3417
        %v3450 = vld [vmem:[%s796] sm:$0xff]
        %v3451 = vld [vmem:[%s796 + $0x8] sm:$0xff]
        %v3452 = vld [vmem:[%s796 + $0x10] sm:$0xff]
        %v3453 = vld [vmem:[%s796 + $0x18] sm:$0xff]
        %v3454 = vld [vmem:[%s796 + $0x20] sm:$0xff]
        %v3455 = vld [vmem:[%s796 + $0x28] sm:$0xff]
        %v3456 = vld [vmem:[%s796 + $0x30] sm:$0xff]
        %v3457 = vld [vmem:[%s796 + $0x38] sm:$0xff]
        %v3458 = vld [vmem:[%s796 + $0x40] sm:$0xff]
        %v3459 = vld [vmem:[%s796 + $0x48] sm:$0xff]
        %v3460 = vld [vmem:[%s796 + $0x50] sm:$0xff]
        %v3461 = vld [vmem:[%s796 + $0x58] sm:$0xff]
        %v3462 = vld [vmem:[%s796 + $0x60] sm:$0xff]
        %v3463 = vld [vmem:[%s796 + $0x68] sm:$0xff]
        %v3464 = vld [vmem:[%s796 + $0x70] sm:$0xff]
        %v3465 = vld [vmem:[%s796 + $0x78] sm:$0xff]
        %v3466 = vld [vmem:[%s796 + $0x80] sm:$0xff]
        %v3467 = vld [vmem:[%s796 + $0x88] sm:$0xff]
        %v3468 = vld [vmem:[%s796 + $0x90] sm:$0xff]
        %v3469 = vld [vmem:[%s796 + $0x98] sm:$0xff]
        %v3470 = vld [vmem:[%s796 + $0xa0] sm:$0xff]
        %v3471 = vld [vmem:[%s796 + $0xa8] sm:$0xff]
        %v3472 = vld [vmem:[%s796 + $0xb0] sm:$0xff]
        %v3473 = vld [vmem:[%s796 + $0xb8] sm:$0xff]
        %v3474 = vld [vmem:[%s796 + $0xc0] sm:$0xff]
        %v3475 = vld [vmem:[%s796 + $0xc8] sm:$0xff]
        %v3476 = vld [vmem:[%s796 + $0xd0] sm:$0xff]
        %v3477 = vld [vmem:[%s796 + $0xd8] sm:$0xff]
        %v3478 = vld [vmem:[%s796 + $0xe0] sm:$0xff]
        %v3479 = vld [vmem:[%s796 + $0xe8] sm:$0xff]
        %v3480 = vld [vmem:[%s796 + $0xf0] sm:$0xff]
        %v3481 = vld [vmem:[%s796 + $0xf8] sm:$0xff]
        %v3482 = vmul.f32 %v1883, 0.5
        %v3483 = vmul.f32 %v1886, 0.5
        %v3484 = vmul.f32 %v1891, 0.5
        %v3485 = vmul.f32 %v1894, 0.5
        %v3486 = vmul.f32 %v1899, 0.5
        %v3487 = vmul.f32 %v1902, 0.5
        %v3488 = vmul.f32 %v1907, 0.5
        %v3489 = vmul.f32 %v1910, 0.5
        %v3490 = vmul.f32 %v1915, 0.5
        %v3491 = vmul.f32 %v1918, 0.5
        %v3492 = vmul.f32 %v1923, 0.5
        %v3493 = vmul.f32 %v1926, 0.5
        %v3494 = vmul.f32 %v1931, 0.5
        %v3495 = vmul.f32 %v1934, 0.5
        %v3496 = vmul.f32 %v1939, 0.5
        %v3497 = vmul.f32 %v1942, 0.5
        %v3498 = vmul.f32 %v1947, 0.5
        %v3499 = vmul.f32 %v1950, 0.5
        %v3500 = vmul.f32 %v1955, 0.5
        %v3501 = vmul.f32 %v1958, 0.5
        %v3502 = vmul.f32 %v1963, 0.5
        %v3503 = vmul.f32 %v1966, 0.5
        %v3504 = vmul.f32 %v1971, 0.5
        %v3505 = vmul.f32 %v1974, 0.5
        %v3506 = vmul.f32 %v1979, 0.5
        %v3507 = vmul.f32 %v1982, 0.5
        %v3508 = vmul.f32 %v1987, 0.5
        %v3509 = vmul.f32 %v1990, 0.5
        %v3510 = vmul.f32 %v1995, 0.5
        %v3511 = vmul.f32 %v1998, 0.5
        %v3512 = vmul.f32 %v2003, 0.5
        %v3513 = vmul.f32 %v2006, 0.5
        %v3514 = vmul.f32 %v3482, 1.442695
        %v3515 = vpow.pop %v3514
        %v3516 = vmul.f32 %v3483, 1.442695
        %v3517 = vpow.pop %v3516
        %v3518 = vmul.f32 %v3484, 1.442695
        %v3519 = vpow.pop %v3518
        %v3520 = vmul.f32 %v3485, 1.442695
        %v3521 = vpow.pop %v3520
        %v3522 = vmul.f32 %v3486, 1.442695
        %v3523 = vpow.pop %v3522
        %v3524 = vmul.f32 %v3487, 1.442695
        %v3525 = vpow.pop %v3524
        %v3526 = vmul.f32 %v3488, 1.442695
        %v3527 = vpow.pop %v3526
        %v3528 = vmul.f32 %v3489, 1.442695
        %v3529 = vpow.pop %v3528
        %v3530 = vmul.f32 %v3490, 1.442695
        %v3531 = vpow.pop %v3530
        %v3532 = vmul.f32 %v3491, 1.442695
        %v3533 = vpow.pop %v3532
        %v3534 = vmul.f32 %v3492, 1.442695
        %v3535 = vpow.pop %v3534
        %v3536 = vmul.f32 %v3493, 1.442695
        %v3537 = vpow.pop %v3536
        %v3538 = vmul.f32 %v3494, 1.442695
        %v3539 = vpow.pop %v3538
        %v3540 = vmul.f32 %v3495, 1.442695
        %v3541 = vpow.pop %v3540
        %v3542 = vmul.f32 %v3496, 1.442695
        %v3543 = vpow.pop %v3542
        %v3544 = vmul.f32 %v3497, 1.442695
        %v3545 = vpow.pop %v3544
        %v3546 = vmul.f32 %v3498, 1.442695
        %v3547 = vpow.pop %v3546
        %v3548 = vmul.f32 %v3499, 1.442695
        %v3549 = vpow.pop %v3548
        %v3550 = vmul.f32 %v3500, 1.442695
        %v3551 = vpow.pop %v3550
        %v3552 = vmul.f32 %v3501, 1.442695
        %v3553 = vpow.pop %v3552
        %v3554 = vmul.f32 %v3502, 1.442695
        %v3555 = vpow.pop %v3554
        %v3556 = vmul.f32 %v3503, 1.442695
        %v3557 = vpow.pop %v3556
        %v3558 = vmul.f32 %v3504, 1.442695
        %v3559 = vpow.pop %v3558
        %v3560 = vmul.f32 %v3505, 1.442695
        %v3561 = vpow.pop %v3560
        %v3562 = vmul.f32 %v3506, 1.442695
        %v3563 = vpow.pop %v3562
        %v3564 = vmul.f32 %v3507, 1.442695
        %v3565 = vpow.pop %v3564
        %v3566 = vmul.f32 %v3508, 1.442695
        %v3567 = vpow.pop %v3566
        %v3568 = vmul.f32 %v3509, 1.442695
        %v3569 = vpow.pop %v3568
        %v3570 = vmul.f32 %v3510, 1.442695
        %v3571 = vpow.pop %v3570
        %v3572 = vmul.f32 %v3511, 1.442695
        %v3573 = vpow.pop %v3572
        %v3574 = vmul.f32 %v3512, 1.442695
        %v3575 = vpow.pop %v3574
        %v3576 = vmul.f32 %v3513, 1.442695
        %v3577 = vpow.pop %v3576
        %3610 = vrot.lane.b32.xlu0 %v3515, 124
        %v3611 = vpop.permute.xlu0 %3610
        %3612 = vrot.lane.b32.xlu0 %v3517, 124
        %v3613 = vpop.permute.xlu0 %3612
        %3614 = vrot.lane.b32.xlu0 %v3519, 124
        %v3615 = vpop.permute.xlu0 %3614
        %3616 = vrot.lane.b32.xlu0 %v3521, 124
        %v3617 = vpop.permute.xlu0 %3616
        %3618 = vrot.lane.b32.xlu0 %v3523, 124
        %v3619 = vpop.permute.xlu0 %3618
        %3620 = vrot.lane.b32.xlu0 %v3525, 124
        %v3621 = vpop.permute.xlu0 %3620
        %3622 = vrot.lane.b32.xlu0 %v3527, 124
        %v3623 = vpop.permute.xlu0 %3622
        %3624 = vrot.lane.b32.xlu0 %v3529, 124
        %v3625 = vpop.permute.xlu0 %3624
        %3626 = vrot.lane.b32.xlu0 %v3531, 124
        %v3627 = vpop.permute.xlu0 %3626
        %3628 = vrot.lane.b32.xlu0 %v3533, 124
        %v3629 = vpop.permute.xlu0 %3628
        %3630 = vrot.lane.b32.xlu0 %v3535, 124
        %v3631 = vpop.permute.xlu0 %3630
        %3632 = vrot.lane.b32.xlu0 %v3537, 124
        %v3633 = vpop.permute.xlu0 %3632
        %3634 = vrot.lane.b32.xlu0 %v3539, 124
        %v3635 = vpop.permute.xlu0 %3634
        %3636 = vrot.lane.b32.xlu0 %v3541, 124
        %v3637 = vpop.permute.xlu0 %3636
        %3638 = vrot.lane.b32.xlu0 %v3543, 124
        %v3639 = vpop.permute.xlu0 %3638
        %3640 = vrot.lane.b32.xlu0 %v3545, 124
        %v3641 = vpop.permute.xlu0 %3640
        %3642 = vrot.lane.b32.xlu0 %v3547, 124
        %v3643 = vpop.permute.xlu0 %3642
        %3644 = vrot.lane.b32.xlu0 %v3549, 124
        %v3645 = vpop.permute.xlu0 %3644
        %3646 = vrot.lane.b32.xlu0 %v3551, 124
        %v3647 = vpop.permute.xlu0 %3646
        %3648 = vrot.lane.b32.xlu0 %v3553, 124
        %v3649 = vpop.permute.xlu0 %3648
        %3650 = vrot.lane.b32.xlu0 %v3555, 124
        %v3651 = vpop.permute.xlu0 %3650
        %3652 = vrot.lane.b32.xlu0 %v3557, 124
        %v3653 = vpop.permute.xlu0 %3652
        %3654 = vrot.lane.b32.xlu0 %v3559, 124
        %v3655 = vpop.permute.xlu0 %3654
        %3656 = vrot.lane.b32.xlu0 %v3561, 124
        %v3657 = vpop.permute.xlu0 %3656
        %3658 = vrot.lane.b32.xlu0 %v3563, 124
        %v3659 = vpop.permute.xlu0 %3658
        %3660 = vrot.lane.b32.xlu0 %v3565, 124
        %v3661 = vpop.permute.xlu0 %3660
        %3662 = vrot.lane.b32.xlu0 %v3567, 124
        %v3663 = vpop.permute.xlu0 %3662
        %3664 = vrot.lane.b32.xlu0 %v3569, 124
        %v3665 = vpop.permute.xlu0 %3664
        %3666 = vrot.lane.b32.xlu0 %v3571, 124
        %v3667 = vpop.permute.xlu0 %3666
        %3668 = vrot.lane.b32.xlu0 %v3573, 124
        %v3669 = vpop.permute.xlu0 %3668
        %3670 = vrot.lane.b32.xlu0 %v3575, 124
        %v3671 = vpop.permute.xlu0 %3670
        %3672 = vrot.lane.b32.xlu0 %v3577, 124
        %v3673 = vpop.permute.xlu0 %3672
        %v3706 = vmul.f32 %v3450, %v3611
        %v3707 = vmul.f32 %v3451, %v3613
        %v3708 = vmul.f32 %v3452, %v3615
        %v3709 = vmul.f32 %v3453, %v3617
        %v3710 = vmul.f32 %v3454, %v3619
        %v3711 = vmul.f32 %v3455, %v3621
        %v3712 = vmul.f32 %v3456, %v3623
        %v3713 = vmul.f32 %v3457, %v3625
        %v3714 = vmul.f32 %v3458, %v3627
        %v3715 = vmul.f32 %v3459, %v3629
        %v3716 = vmul.f32 %v3460, %v3631
        %v3717 = vmul.f32 %v3461, %v3633
        %v3718 = vmul.f32 %v3462, %v3635
        %v3719 = vmul.f32 %v3463, %v3637
        %v3720 = vmul.f32 %v3464, %v3639
        %v3721 = vmul.f32 %v3465, %v3641
        %v3722 = vmul.f32 %v3466, %v3643
        %v3723 = vmul.f32 %v3467, %v3645
        %v3724 = vmul.f32 %v3468, %v3647
        %v3725 = vmul.f32 %v3469, %v3649
        %v3726 = vmul.f32 %v3470, %v3651
        %v3727 = vmul.f32 %v3471, %v3653
        %v3728 = vmul.f32 %v3472, %v3655
        %v3729 = vmul.f32 %v3473, %v3657
        %v3730 = vmul.f32 %v3474, %v3659
        %v3731 = vmul.f32 %v3475, %v3661
        %v3732 = vmul.f32 %v3476, %v3663
        %v3733 = vmul.f32 %v3477, %v3665
        %v3734 = vmul.f32 %v3478, %v3667
        %v3735 = vmul.f32 %v3479, %v3669
        %v3736 = vmul.f32 %v3480, %v3671
        %v3737 = vmul.f32 %v3481, %v3673
        %v3738 = vadd.f32 %v1883, %v3706
        %v3739 = vadd.f32 %v1886, %v3707
        %v3740 = vadd.f32 %v1891, %v3708
        %v3741 = vadd.f32 %v1894, %v3709
        %v3742 = vadd.f32 %v1899, %v3710
        %v3743 = vadd.f32 %v1902, %v3711
        %v3744 = vadd.f32 %v1907, %v3712
        %v3745 = vadd.f32 %v1910, %v3713
        %v3746 = vadd.f32 %v1915, %v3714
        %v3747 = vadd.f32 %v1918, %v3715
        %v3748 = vadd.f32 %v1923, %v3716
        %v3749 = vadd.f32 %v1926, %v3717
        %v3750 = vadd.f32 %v1931, %v3718
        %v3751 = vadd.f32 %v1934, %v3719
        %v3752 = vadd.f32 %v1939, %v3720
        %v3753 = vadd.f32 %v1942, %v3721
        %v3754 = vadd.f32 %v1947, %v3722
        %v3755 = vadd.f32 %v1950, %v3723
        %v3756 = vadd.f32 %v1955, %v3724
        %v3757 = vadd.f32 %v1958, %v3725
        %v3758 = vadd.f32 %v1963, %v3726
        %v3759 = vadd.f32 %v1966, %v3727
        %v3760 = vadd.f32 %v1971, %v3728
        %v3761 = vadd.f32 %v1974, %v3729
        %v3762 = vadd.f32 %v1979, %v3730
        %v3763 = vadd.f32 %v1982, %v3731
        %v3764 = vadd.f32 %v1987, %v3732
        %v3765 = vadd.f32 %v1990, %v3733
        %v3766 = vadd.f32 %v1995, %v3734
        %v3767 = vadd.f32 %v1998, %v3735
        %v3768 = vadd.f32 %v2003, %v3736
        %v3769 = vadd.f32 %v2006, %v3737
        %v3770 = vpack.c.bf16 %v3739, %v3738
        %v3771 = vpack.c.bf16 %v3741, %v3740
        %v3772 = vpack.c.bf16 %v3743, %v3742
        %v3773 = vpack.c.bf16 %v3745, %v3744
        %v3774 = vpack.c.bf16 %v3747, %v3746
        %v3775 = vpack.c.bf16 %v3749, %v3748
        %v3776 = vpack.c.bf16 %v3751, %v3750
        %v3777 = vpack.c.bf16 %v3753, %v3752
        %v3778 = vpack.c.bf16 %v3755, %v3754
        %v3779 = vpack.c.bf16 %v3757, %v3756
        %v3780 = vpack.c.bf16 %v3759, %v3758
        %v3781 = vpack.c.bf16 %v3761, %v3760
        %v3782 = vpack.c.bf16 %v3763, %v3762
        %v3783 = vpack.c.bf16 %v3765, %v3764
        %v3784 = vpack.c.bf16 %v3767, %v3766
        %v3785 = vpack.c.bf16 %v3769, %v3768
        %v3786 = vld [vmem:[%s18] sm:$0x3]
        %v3787 = vld [vmem:[%s19] sm:$0x1]
        %v3789 = vlaneseq
        %v3790 = vshrl.u32 %v3789, 7
        %v3791 = vsub.s32 0, %v3790
        %v3792 = vrot.slane %v3787, %v3791
        %v3795 = vsel %vm3097, %v3770, 0
        %v3798 = vsel %vm3097, %v3771, 0
        %v3801 = vsel %vm3097, %v3772, 0
        %v3804 = vsel %vm3097, %v3773, 0
        %v3807 = vsel %vm3097, %v3774, 0
        %v3810 = vsel %vm3097, %v3775, 0
        %v3813 = vsel %vm3097, %v3776, 0
        %v3816 = vsel %vm3097, %v3777, 0
        %v3819 = vsel %vm3097, %v3778, 0
        %v3822 = vsel %vm3097, %v3779, 0
        %v3825 = vsel %vm3097, %v3780, 0
        %v3828 = vsel %vm3097, %v3781, 0
        %v3831 = vsel %vm3097, %v3782, 0
        %v3834 = vsel %vm3097, %v3783, 0
        %v3837 = vsel %vm3097, %v3784, 0
        %v3840 = vsel %vm3097, %v3785, 0
        %vm3842 = vcmask 1041408
        %v3844 = vsel %vm3842, %v3786, 0
        %3846 = vmatprep.subr.bf16.mxu0 0
        %3847 = vmatpush1.bf16.msra.mxu0 %v3844
        %3848 = vmatprep.subr.bf16.mxu0 0
        %3849 = vmatpush1.bf16.msra.mxu0 0
        %3850 = vmatprep.subr.bf16.mxu0 0
        %3851 = vmatpush1.bf16.msra.mxu0 0
        %3852 = vmatprep.subr.bf16.mxu0 0
        %3853 = vmatpush1.bf16.msra.mxu0 0
        %3854 = vmatprep.subr.bf16.mxu0 0
        %3855 = vmatpush1.bf16.msra.mxu0 0
        %3856 = vmatprep.subr.bf16.mxu0 0
        %3857 = vmatpush1.bf16.msra.mxu0 0
        %3858 = vmatprep.subr.bf16.mxu0 0
        %3859 = vmatpush1.bf16.msra.mxu0 0
        %3860 = vmatprep.subr.bf16.mxu0 0
        %3861 = vmatpush1.bf16.msra.mxu0 0
        %3862 = vmatprep.subr.bf16.mxu0 0
        %3863 = vmatpush1.bf16.msra.mxu0 0
        %3864 = vmatprep.subr.bf16.mxu0 0
        %3865 = vmatpush1.bf16.msra.mxu0 0
        %3866 = vmatprep.subr.bf16.mxu0 0
        %3867 = vmatpush1.bf16.msra.mxu0 0
        %3868 = vmatprep.subr.bf16.mxu0 0
        %3869 = vmatpush1.bf16.msra.mxu0 0
        %3870 = vmatprep.subr.bf16.mxu0 0
        %3871 = vmatpush1.bf16.msra.mxu0 0
        %3872 = vmatprep.subr.bf16.mxu0 0
        %3873 = vmatpush1.bf16.msra.mxu0 0
        %3874 = vmatprep.subr.bf16.mxu0 0
        %3875 = vmatpush1.bf16.msra.mxu0 0
        %3876 = vmatprep.subr.bf16.mxu0 0
        %3877 = vmatpush1.bf16.msra.mxu0 0
        %3878 = vmatprep.mubr.bf16.mxu0 0
        %3879 = vmatmul.mubr.bf16.gmra.mrb[0].mxu0 %v3795
        %v3880 = vpop.f32.mrb[0].mxu0
        %v3881 = vadd.f32 %v3792, %v3880
        %v3882 = vpop.f32.mrb[0].mxu0
        %v3883 = vpop.f32.mrb[0].mxu0
        %v3884 = vadd.f32 %v3792, %v3883
        %v3885 = vpop.f32.mrb[0].mxu0
        %3886 = vmatprep.mubr.bf16.mxu0 0
        %3887 = vmatmul.mubr.bf16.gmra.mrb[0].mxu0 %v3798
        %v3888 = vpop.f32.mrb[0].mxu0
        %v3889 = vadd.f32 %v3792, %v3888
        %v3890 = vpop.f32.mrb[0].mxu0
        %v3891 = vpop.f32.mrb[0].mxu0
        %v3892 = vadd.f32 %v3792, %v3891
        %v3893 = vpop.f32.mrb[0].mxu0
        %3894 = vmatprep.mubr.bf16.mxu0 0
        %3895 = vmatmul.mubr.bf16.gmra.mrb[0].mxu0 %v3801
        %v3896 = vpop.f32.mrb[0].mxu0
        %v3897 = vadd.f32 %v3792, %v3896
        %v3898 = vpop.f32.mrb[0].mxu0
        %v3899 = vpop.f32.mrb[0].mxu0
        %v3900 = vadd.f32 %v3792, %v3899
        %v3901 = vpop.f32.mrb[0].mxu0
        %3902 = vmatprep.mubr.bf16.mxu0 0
        %3903 = vmatmul.mubr.bf16.gmra.mrb[0].mxu0 %v3804
        %v3904 = vpop.f32.mrb[0].mxu0
        %v3905 = vadd.f32 %v3792, %v3904
        %v3906 = vpop.f32.mrb[0].mxu0
        %v3907 = vpop.f32.mrb[0].mxu0
        %v3908 = vadd.f32 %v3792, %v3907
        %v3909 = vpop.f32.mrb[0].mxu0
        %3910 = vmatprep.mubr.bf16.mxu0 0
        %3911 = vmatmul.mubr.bf16.gmra.mrb[0].mxu0 %v3807
        %v3912 = vpop.f32.mrb[0].mxu0
        %v3913 = vadd.f32 %v3792, %v3912
        %v3914 = vpop.f32.mrb[0].mxu0
        %v3915 = vpop.f32.mrb[0].mxu0
        %v3916 = vadd.f32 %v3792, %v3915
        %v3917 = vpop.f32.mrb[0].mxu0
        %3918 = vmatprep.mubr.bf16.mxu0 0
        %3919 = vmatmul.mubr.bf16.gmra.mrb[0].mxu0 %v3810
        %v3920 = vpop.f32.mrb[0].mxu0
        %v3921 = vadd.f32 %v3792, %v3920
        %v3922 = vpop.f32.mrb[0].mxu0
        %v3923 = vpop.f32.mrb[0].mxu0
        %v3924 = vadd.f32 %v3792, %v3923
        %v3925 = vpop.f32.mrb[0].mxu0
        %3926 = vmatprep.mubr.bf16.mxu0 0
        %3927 = vmatmul.mubr.bf16.gmra.mrb[0].mxu0 %v3813
        %v3928 = vpop.f32.mrb[0].mxu0
        %v3929 = vadd.f32 %v3792, %v3928
        %v3930 = vpop.f32.mrb[0].mxu0
        %v3931 = vpop.f32.mrb[0].mxu0
        %v3932 = vadd.f32 %v3792, %v3931
        %v3933 = vpop.f32.mrb[0].mxu0
        %3934 = vmatprep.mubr.bf16.mxu0 0
        %3935 = vmatmul.mubr.bf16.gmra.mrb[0].mxu0 %v3816
        %v3936 = vpop.f32.mrb[0].mxu0
        %v3937 = vadd.f32 %v3792, %v3936
        %v3938 = vpop.f32.mrb[0].mxu0
        %v3939 = vpop.f32.mrb[0].mxu0
        %v3940 = vadd.f32 %v3792, %v3939
        %v3941 = vpop.f32.mrb[0].mxu0
        %3942 = vmatprep.mubr.bf16.mxu0 0
        %3943 = vmatmul.mubr.bf16.gmra.mrb[0].mxu0 %v3819
        %v3944 = vpop.f32.mrb[0].mxu0
        %v3945 = vadd.f32 %v3792, %v3944
        %v3946 = vpop.f32.mrb[0].mxu0
        %v3947 = vpop.f32.mrb[0].mxu0
        %v3948 = vadd.f32 %v3792, %v3947
        %v3949 = vpop.f32.mrb[0].mxu0
        %3950 = vmatprep.mubr.bf16.mxu0 0
        %3951 = vmatmul.mubr.bf16.gmra.mrb[0].mxu0 %v3822
        %v3952 = vpop.f32.mrb[0].mxu0
        %v3953 = vadd.f32 %v3792, %v3952
        %v3954 = vpop.f32.mrb[0].mxu0
        %v3955 = vpop.f32.mrb[0].mxu0
        %v3956 = vadd.f32 %v3792, %v3955
        %v3957 = vpop.f32.mrb[0].mxu0
        %3958 = vmatprep.mubr.bf16.mxu0 0
        %3959 = vmatmul.mubr.bf16.gmra.mrb[0].mxu0 %v3825
        %v3960 = vpop.f32.mrb[0].mxu0
        %v3961 = vadd.f32 %v3792, %v3960
        %v3962 = vpop.f32.mrb[0].mxu0
        %v3963 = vpop.f32.mrb[0].mxu0
        %v3964 = vadd.f32 %v3792, %v3963
        %v3965 = vpop.f32.mrb[0].mxu0
        %3966 = vmatprep.mubr.bf16.mxu0 0
        %3967 = vmatmul.mubr.bf16.gmra.mrb[0].mxu0 %v3828
        %v3968 = vpop.f32.mrb[0].mxu0
        %v3969 = vadd.f32 %v3792, %v3968
        %v3970 = vpop.f32.mrb[0].mxu0
        %v3971 = vpop.f32.mrb[0].mxu0
        %v3972 = vadd.f32 %v3792, %v3971
        %v3973 = vpop.f32.mrb[0].mxu0
        %3974 = vmatprep.mubr.bf16.mxu0 0
        %3975 = vmatmul.mubr.bf16.gmra.mrb[0].mxu0 %v3831
        %v3976 = vpop.f32.mrb[0].mxu0
        %v3977 = vadd.f32 %v3792, %v3976
        %v3978 = vpop.f32.mrb[0].mxu0
        %v3979 = vpop.f32.mrb[0].mxu0
        %v3980 = vadd.f32 %v3792, %v3979
        %v3981 = vpop.f32.mrb[0].mxu0
        %3982 = vmatprep.mubr.bf16.mxu0 0
        %3983 = vmatmul.mubr.bf16.gmra.mrb[0].mxu0 %v3834
        %v3984 = vpop.f32.mrb[0].mxu0
        %v3985 = vadd.f32 %v3792, %v3984
        %v3986 = vpop.f32.mrb[0].mxu0
        %v3987 = vpop.f32.mrb[0].mxu0
        %v3988 = vadd.f32 %v3792, %v3987
        %v3989 = vpop.f32.mrb[0].mxu0
        %3990 = vmatprep.mubr.bf16.mxu0 0
        %3991 = vmatmul.mubr.bf16.gmra.mrb[0].mxu0 %v3837
        %v3992 = vpop.f32.mrb[0].mxu0
        %v3993 = vadd.f32 %v3792, %v3992
        %v3994 = vpop.f32.mrb[0].mxu0
        %v3995 = vpop.f32.mrb[0].mxu0
        %v3996 = vadd.f32 %v3792, %v3995
        %v3997 = vpop.f32.mrb[0].mxu0
        %3998 = vmatprep.mubr.bf16.mxu0 0
        %3999 = vmatmul.mubr.bf16.gmra.mrb[0].mxu0 %v3840
        %v4000 = vpop.f32.mrb[0].mxu0
        %v4001 = vadd.f32 %v3792, %v4000
        %v4002 = vpop.f32.mrb[0].mxu0
        %v4003 = vpop.f32.mrb[0].mxu0
        %v4004 = vadd.f32 %v3792, %v4003
        %v4005 = vpop.f32.mrb[0].mxu0
        %4006 = vdwg.mxu0
        %v4007 = vmax.f32 %v3881, 0.0
        %v4008 = vmax.f32 %v3884, 0.0
        %v4009 = vmax.f32 %v3889, 0.0
        %v4010 = vmax.f32 %v3892, 0.0
        %v4011 = vmax.f32 %v3897, 0.0
        %v4012 = vmax.f32 %v3900, 0.0
        %v4013 = vmax.f32 %v3905, 0.0
        %v4014 = vmax.f32 %v3908, 0.0
        %v4015 = vmax.f32 %v3913, 0.0
        %v4016 = vmax.f32 %v3916, 0.0
        %v4017 = vmax.f32 %v3921, 0.0
        %v4018 = vmax.f32 %v3924, 0.0
        %v4019 = vmax.f32 %v3929, 0.0
        %v4020 = vmax.f32 %v3932, 0.0
        %v4021 = vmax.f32 %v3937, 0.0
        %v4022 = vmax.f32 %v3940, 0.0
        %v4023 = vmax.f32 %v3945, 0.0
        %v4024 = vmax.f32 %v3948, 0.0
        %v4025 = vmax.f32 %v3953, 0.0
        %v4026 = vmax.f32 %v3956, 0.0
        %v4027 = vmax.f32 %v3961, 0.0
        %v4028 = vmax.f32 %v3964, 0.0
        %v4029 = vmax.f32 %v3969, 0.0
        %v4030 = vmax.f32 %v3972, 0.0
        %v4031 = vmax.f32 %v3977, 0.0
        %v4032 = vmax.f32 %v3980, 0.0
        %v4033 = vmax.f32 %v3985, 0.0
        %v4034 = vmax.f32 %v3988, 0.0
        %v4035 = vmax.f32 %v3993, 0.0
        %v4036 = vmax.f32 %v3996, 0.0
        %v4037 = vmax.f32 %v4001, 0.0
        %v4038 = vmax.f32 %v4004, 0.0
        %v4039 = vpack.c.bf16 %v4008, %v4007
        %v4040 = vpack.c.bf16 %v4010, %v4009
        %v4041 = vpack.c.bf16 %v4012, %v4011
        %v4042 = vpack.c.bf16 %v4014, %v4013
        %v4043 = vpack.c.bf16 %v4016, %v4015
        %v4044 = vpack.c.bf16 %v4018, %v4017
        %v4045 = vpack.c.bf16 %v4020, %v4019
        %v4046 = vpack.c.bf16 %v4022, %v4021
        %v4047 = vpack.c.bf16 %v4024, %v4023
        %v4048 = vpack.c.bf16 %v4026, %v4025
        %v4049 = vpack.c.bf16 %v4028, %v4027
        %v4050 = vpack.c.bf16 %v4030, %v4029
        %v4051 = vpack.c.bf16 %v4032, %v4031
        %v4052 = vpack.c.bf16 %v4034, %v4033
        %v4053 = vpack.c.bf16 %v4036, %v4035
        %v4054 = vpack.c.bf16 %v4038, %v4037
        %v4055 = vld [vmem:[%s20] sm:$0xff]
        %v4056 = vld [vmem:[%s20 + $0x8] sm:$0xff]
        %v4057 = vld [vmem:[%s21] sm:$0x3]
        %v4059 = vlaneseq
        %v4060 = vshrl.u32 %v4059, 7
        %v4061 = vsub.s32 0, %v4060
        %v4062 = vrot.slane %v4057, %v4061
        %v4063 = vlaneseq
        %v4064 = vshrl.u32 %v4063, 7
        %v4065 = vsub.s32 1, %v4064
        %v4066 = vrot.slane %v4057, %v4065
        %v4071 = vunpack.c.l.b16 %v4055
        %v4072 = vunpack.c.h.b16 %v4055
        %v4073 = vunpack.c.l.b16 %v4056
        %v4074 = vunpack.c.h.b16 %v4056
        %v4075 = vpack.c.b16 %v4073, %v4071
        %v4076 = vpack.c.b16 %v4074, %v4072
        %v4080 = vsel %vm1799, %v4039, 0
        %v4083 = vsel %vm1799, %v4040, 0
        %v4086 = vsel %vm1799, %v4041, 0
        %v4089 = vsel %vm1799, %v4042, 0
        %v4092 = vsel %vm1799, %v4043, 0
        %v4095 = vsel %vm1799, %v4044, 0
        %v4098 = vsel %vm1799, %v4045, 0
        %v4101 = vsel %vm1799, %v4046, 0
        %v4104 = vsel %vm1799, %v4047, 0
        %v4107 = vsel %vm1799, %v4048, 0
        %v4110 = vsel %vm1799, %v4049, 0
        %v4113 = vsel %vm1799, %v4050, 0
        %v4116 = vsel %vm1799, %v4051, 0
        %v4119 = vsel %vm1799, %v4052, 0
        %v4122 = vsel %vm1799, %v4053, 0
        %v4125 = vsel %vm1799, %v4054, 0
        %4127 = vmatprep.subr.bf16.mxu0 %v4076
        %4128 = vmatpush1.bf16.msra.mxu0 %v4075
        %4129 = vmatprep.subr.bf16.mxu0 0
        %4130 = vmatpush1.bf16.msra.mxu0 0
        %4131 = vmatprep.subr.bf16.mxu0 0
        %4132 = vmatpush1.bf16.msra.mxu0 0
        %4133 = vmatprep.subr.bf16.mxu0 0
        %4134 = vmatpush1.bf16.msra.mxu0 0
        %4135 = vmatprep.subr.bf16.mxu0 0
        %4136 = vmatpush1.bf16.msra.mxu0 0
        %4137 = vmatprep.subr.bf16.mxu0 0
        %4138 = vmatpush1.bf16.msra.mxu0 0
        %4139 = vmatprep.subr.bf16.mxu0 0
        %4140 = vmatpush1.bf16.msra.mxu0 0
        %4141 = vmatprep.subr.bf16.mxu0 0
        %4142 = vmatpush1.bf16.msra.mxu0 0
        %4143 = vmatprep.subr.bf16.mxu0 0
        %4144 = vmatpush1.bf16.msra.mxu0 0
        %4145 = vmatprep.subr.bf16.mxu0 0
        %4146 = vmatpush1.bf16.msra.mxu0 0
        %4147 = vmatprep.subr.bf16.mxu0 0
        %4148 = vmatpush1.bf16.msra.mxu0 0
        %4149 = vmatprep.subr.bf16.mxu0 0
        %4150 = vmatpush1.bf16.msra.mxu0 0
        %4151 = vmatprep.subr.bf16.mxu0 0
        %4152 = vmatpush1.bf16.msra.mxu0 0
        %4153 = vmatprep.subr.bf16.mxu0 0
        %4154 = vmatpush1.bf16.msra.mxu0 0
        %4155 = vmatprep.subr.bf16.mxu0 0
        %4156 = vmatpush1.bf16.msra.mxu0 0
        %4157 = vmatprep.subr.bf16.mxu0 0
        %4158 = vmatpush1.bf16.msra.mxu0 0
        %4159 = vmatprep.mubr.bf16.mxu0 0
        %4160 = vmatmul.mubr.bf16.gmra.mrb[0].mxu0 %v4080
        %v4161 = vpop.f32.mrb[0].mxu0
        %v4162 = vadd.f32 %v4062, %v4161
        %v4163 = vpop.f32.mrb[0].mxu0
        %v4164 = vadd.f32 %v4066, %v4163
        %v4165 = vpop.f32.mrb[0].mxu0
        %v4166 = vadd.f32 %v4062, %v4165
        %v4167 = vpop.f32.mrb[0].mxu0
        %v4168 = vadd.f32 %v4066, %v4167
        %4169 = vmatprep.mubr.bf16.mxu0 0
        %4170 = vmatmul.mubr.bf16.gmra.mrb[0].mxu0 %v4083
        %v4171 = vpop.f32.mrb[0].mxu0
        %v4172 = vadd.f32 %v4062, %v4171
        %v4173 = vpop.f32.mrb[0].mxu0
        %v4174 = vadd.f32 %v4066, %v4173
        %v4175 = vpop.f32.mrb[0].mxu0
        %v4176 = vadd.f32 %v4062, %v4175
        %v4177 = vpop.f32.mrb[0].mxu0
        %v4178 = vadd.f32 %v4066, %v4177
        %4179 = vmatprep.mubr.bf16.mxu0 0
        %4180 = vmatmul.mubr.bf16.gmra.mrb[0].mxu0 %v4086
        %v4181 = vpop.f32.mrb[0].mxu0
        %v4182 = vadd.f32 %v4062, %v4181
        %v4183 = vpop.f32.mrb[0].mxu0
        %v4184 = vadd.f32 %v4066, %v4183
        %v4185 = vpop.f32.mrb[0].mxu0
        %v4186 = vadd.f32 %v4062, %v4185
        %v4187 = vpop.f32.mrb[0].mxu0
        %v4188 = vadd.f32 %v4066, %v4187
        %4189 = vmatprep.mubr.bf16.mxu0 0
        %4190 = vmatmul.mubr.bf16.gmra.mrb[0].mxu0 %v4089
        %v4191 = vpop.f32.mrb[0].mxu0
        %v4192 = vadd.f32 %v4062, %v4191
        %v4193 = vpop.f32.mrb[0].mxu0
        %v4194 = vadd.f32 %v4066, %v4193
        %v4195 = vpop.f32.mrb[0].mxu0
        %v4196 = vadd.f32 %v4062, %v4195
        %v4197 = vpop.f32.mrb[0].mxu0
        %v4198 = vadd.f32 %v4066, %v4197
        %4199 = vmatprep.mubr.bf16.mxu0 0
        %4200 = vmatmul.mubr.bf16.gmra.mrb[0].mxu0 %v4092
        %v4201 = vpop.f32.mrb[0].mxu0
        %v4202 = vadd.f32 %v4062, %v4201
        %v4203 = vpop.f32.mrb[0].mxu0
        %v4204 = vadd.f32 %v4066, %v4203
        %v4205 = vpop.f32.mrb[0].mxu0
        %v4206 = vadd.f32 %v4062, %v4205
        %v4207 = vpop.f32.mrb[0].mxu0
        %v4208 = vadd.f32 %v4066, %v4207
        %4209 = vmatprep.mubr.bf16.mxu0 0
        %4210 = vmatmul.mubr.bf16.gmra.mrb[0].mxu0 %v4095
        %v4211 = vpop.f32.mrb[0].mxu0
        %v4212 = vadd.f32 %v4062, %v4211
        %v4213 = vpop.f32.mrb[0].mxu0
        %v4214 = vadd.f32 %v4066, %v4213
        %v4215 = vpop.f32.mrb[0].mxu0
        %v4216 = vadd.f32 %v4062, %v4215
        %v4217 = vpop.f32.mrb[0].mxu0
        %v4218 = vadd.f32 %v4066, %v4217
        %4219 = vmatprep.mubr.bf16.mxu0 0
        %4220 = vmatmul.mubr.bf16.gmra.mrb[0].mxu0 %v4098
        %v4221 = vpop.f32.mrb[0].mxu0
        %v4222 = vadd.f32 %v4062, %v4221
        %v4223 = vpop.f32.mrb[0].mxu0
        %v4224 = vadd.f32 %v4066, %v4223
        %v4225 = vpop.f32.mrb[0].mxu0
        %v4226 = vadd.f32 %v4062, %v4225
        %v4227 = vpop.f32.mrb[0].mxu0
        %v4228 = vadd.f32 %v4066, %v4227
        %4229 = vmatprep.mubr.bf16.mxu0 0
        %4230 = vmatmul.mubr.bf16.gmra.mrb[0].mxu0 %v4101
        %v4231 = vpop.f32.mrb[0].mxu0
        %v4232 = vadd.f32 %v4062, %v4231
        %v4233 = vpop.f32.mrb[0].mxu0
        %v4234 = vadd.f32 %v4066, %v4233
        %v4235 = vpop.f32.mrb[0].mxu0
        %v4236 = vadd.f32 %v4062, %v4235
        %v4237 = vpop.f32.mrb[0].mxu0
        %v4238 = vadd.f32 %v4066, %v4237
        %4239 = vmatprep.mubr.bf16.mxu0 0
        %4240 = vmatmul.mubr.bf16.gmra.mrb[0].mxu0 %v4104
        %v4241 = vpop.f32.mrb[0].mxu0
        %v4242 = vadd.f32 %v4062, %v4241
        %v4243 = vpop.f32.mrb[0].mxu0
        %v4244 = vadd.f32 %v4066, %v4243
        %v4245 = vpop.f32.mrb[0].mxu0
        %v4246 = vadd.f32 %v4062, %v4245
        %v4247 = vpop.f32.mrb[0].mxu0
        %v4248 = vadd.f32 %v4066, %v4247
        %4249 = vmatprep.mubr.bf16.mxu0 0
        %4250 = vmatmul.mubr.bf16.gmra.mrb[0].mxu0 %v4107
        %v4251 = vpop.f32.mrb[0].mxu0
        %v4252 = vadd.f32 %v4062, %v4251
        %v4253 = vpop.f32.mrb[0].mxu0
        %v4254 = vadd.f32 %v4066, %v4253
        %v4255 = vpop.f32.mrb[0].mxu0
        %v4256 = vadd.f32 %v4062, %v4255
        %v4257 = vpop.f32.mrb[0].mxu0
        %v4258 = vadd.f32 %v4066, %v4257
        %4259 = vmatprep.mubr.bf16.mxu0 0
        %4260 = vmatmul.mubr.bf16.gmra.mrb[0].mxu0 %v4110
        %v4261 = vpop.f32.mrb[0].mxu0
        %v4262 = vadd.f32 %v4062, %v4261
        %v4263 = vpop.f32.mrb[0].mxu0
        %v4264 = vadd.f32 %v4066, %v4263
        %v4265 = vpop.f32.mrb[0].mxu0
        %v4266 = vadd.f32 %v4062, %v4265
        %v4267 = vpop.f32.mrb[0].mxu0
        %v4268 = vadd.f32 %v4066, %v4267
        %4269 = vmatprep.mubr.bf16.mxu0 0
        %4270 = vmatmul.mubr.bf16.gmra.mrb[0].mxu0 %v4113
        %v4271 = vpop.f32.mrb[0].mxu0
        %v4272 = vadd.f32 %v4062, %v4271
        %v4273 = vpop.f32.mrb[0].mxu0
        %v4274 = vadd.f32 %v4066, %v4273
        %v4275 = vpop.f32.mrb[0].mxu0
        %v4276 = vadd.f32 %v4062, %v4275
        %v4277 = vpop.f32.mrb[0].mxu0
        %v4278 = vadd.f32 %v4066, %v4277
        %4279 = vmatprep.mubr.bf16.mxu0 0
        %4280 = vmatmul.mubr.bf16.gmra.mrb[0].mxu0 %v4116
        %v4281 = vpop.f32.mrb[0].mxu0
        %v4282 = vadd.f32 %v4062, %v4281
        %v4283 = vpop.f32.mrb[0].mxu0
        %v4284 = vadd.f32 %v4066, %v4283
        %v4285 = vpop.f32.mrb[0].mxu0
        %v4286 = vadd.f32 %v4062, %v4285
        %v4287 = vpop.f32.mrb[0].mxu0
        %v4288 = vadd.f32 %v4066, %v4287
        %4289 = vmatprep.mubr.bf16.mxu0 0
        %4290 = vmatmul.mubr.bf16.gmra.mrb[0].mxu0 %v4119
        %v4291 = vpop.f32.mrb[0].mxu0
        %v4292 = vadd.f32 %v4062, %v4291
        %v4293 = vpop.f32.mrb[0].mxu0
        %v4294 = vadd.f32 %v4066, %v4293
        %v4295 = vpop.f32.mrb[0].mxu0
        %v4296 = vadd.f32 %v4062, %v4295
        %v4297 = vpop.f32.mrb[0].mxu0
        %v4298 = vadd.f32 %v4066, %v4297
        %4299 = vmatprep.mubr.bf16.mxu0 0
        %4300 = vmatmul.mubr.bf16.gmra.mrb[0].mxu0 %v4122
        %v4301 = vpop.f32.mrb[0].mxu0
        %v4302 = vadd.f32 %v4062, %v4301
        %v4303 = vpop.f32.mrb[0].mxu0
        %v4304 = vadd.f32 %v4066, %v4303
        %v4305 = vpop.f32.mrb[0].mxu0
        %v4306 = vadd.f32 %v4062, %v4305
        %v4307 = vpop.f32.mrb[0].mxu0
        %v4308 = vadd.f32 %v4066, %v4307
        %4309 = vmatprep.mubr.bf16.mxu0 0
        %4310 = vmatmul.mubr.bf16.gmra.mrb[0].mxu0 %v4125
        %v4311 = vpop.f32.mrb[0].mxu0
        %v4312 = vadd.f32 %v4062, %v4311
        %v4313 = vpop.f32.mrb[0].mxu0
        %v4314 = vadd.f32 %v4066, %v4313
        %v4315 = vpop.f32.mrb[0].mxu0
        %v4316 = vadd.f32 %v4062, %v4315
        %v4317 = vpop.f32.mrb[0].mxu0
        %v4318 = vadd.f32 %v4066, %v4317
        %4319 = vdwg.mxu0
        %v4320 = vmax.f32 %v4162, 0.0
        %v4321 = vmax.f32 %v4164, 0.0
        %v4322 = vmax.f32 %v4166, 0.0
        %v4323 = vmax.f32 %v4168, 0.0
        %v4324 = vmax.f32 %v4172, 0.0
        %v4325 = vmax.f32 %v4174, 0.0
        %v4326 = vmax.f32 %v4176, 0.0
        %v4327 = vmax.f32 %v4178, 0.0
        %v4328 = vmax.f32 %v4182, 0.0
        %v4329 = vmax.f32 %v4184, 0.0
        %v4330 = vmax.f32 %v4186, 0.0
        %v4331 = vmax.f32 %v4188, 0.0
        %v4332 = vmax.f32 %v4192, 0.0
        %v4333 = vmax.f32 %v4194, 0.0
        %v4334 = vmax.f32 %v4196, 0.0
        %v4335 = vmax.f32 %v4198, 0.0
        %v4336 = vmax.f32 %v4202, 0.0
        %v4337 = vmax.f32 %v4204, 0.0
        %v4338 = vmax.f32 %v4206, 0.0
        %v4339 = vmax.f32 %v4208, 0.0
        %v4340 = vmax.f32 %v4212, 0.0
        %v4341 = vmax.f32 %v4214, 0.0
        %v4342 = vmax.f32 %v4216, 0.0
        %v4343 = vmax.f32 %v4218, 0.0
        %v4344 = vmax.f32 %v4222, 0.0
        %v4345 = vmax.f32 %v4224, 0.0
        %v4346 = vmax.f32 %v4226, 0.0
        %v4347 = vmax.f32 %v4228, 0.0
        %v4348 = vmax.f32 %v4232, 0.0
        %v4349 = vmax.f32 %v4234, 0.0
        %v4350 = vmax.f32 %v4236, 0.0
        %v4351 = vmax.f32 %v4238, 0.0
        %v4352 = vmax.f32 %v4242, 0.0
        %v4353 = vmax.f32 %v4244, 0.0
        %v4354 = vmax.f32 %v4246, 0.0
        %v4355 = vmax.f32 %v4248, 0.0
        %v4356 = vmax.f32 %v4252, 0.0
        %v4357 = vmax.f32 %v4254, 0.0
        %v4358 = vmax.f32 %v4256, 0.0
        %v4359 = vmax.f32 %v4258, 0.0
        %v4360 = vmax.f32 %v4262, 0.0
        %v4361 = vmax.f32 %v4264, 0.0
        %v4362 = vmax.f32 %v4266, 0.0
        %v4363 = vmax.f32 %v4268, 0.0
        %v4364 = vmax.f32 %v4272, 0.0
        %v4365 = vmax.f32 %v4274, 0.0
        %v4366 = vmax.f32 %v4276, 0.0
        %v4367 = vmax.f32 %v4278, 0.0
        %v4368 = vmax.f32 %v4282, 0.0
        %v4369 = vmax.f32 %v4284, 0.0
        %v4370 = vmax.f32 %v4286, 0.0
        %v4371 = vmax.f32 %v4288, 0.0
        %v4372 = vmax.f32 %v4292, 0.0
        %v4373 = vmax.f32 %v4294, 0.0
        %v4374 = vmax.f32 %v4296, 0.0
        %v4375 = vmax.f32 %v4298, 0.0
        %v4376 = vmax.f32 %v4302, 0.0
        %v4377 = vmax.f32 %v4304, 0.0
        %v4378 = vmax.f32 %v4306, 0.0
        %v4379 = vmax.f32 %v4308, 0.0
        %v4380 = vmax.f32 %v4312, 0.0
        %v4381 = vmax.f32 %v4314, 0.0
        %v4382 = vmax.f32 %v4316, 0.0
        %v4383 = vmax.f32 %v4318, 0.0
        %v4384 = vpack.c.bf16 %v4322, %v4320
        %v4385 = vpack.c.bf16 %v4323, %v4321
        %v4386 = vpack.c.bf16 %v4326, %v4324
        %v4387 = vpack.c.bf16 %v4327, %v4325
        %v4388 = vpack.c.bf16 %v4330, %v4328
        %v4389 = vpack.c.bf16 %v4331, %v4329
        %v4390 = vpack.c.bf16 %v4334, %v4332
        %v4391 = vpack.c.bf16 %v4335, %v4333
        %v4392 = vpack.c.bf16 %v4338, %v4336
        %v4393 = vpack.c.bf16 %v4339, %v4337
        %v4394 = vpack.c.bf16 %v4342, %v4340
        %v4395 = vpack.c.bf16 %v4343, %v4341
        %v4396 = vpack.c.bf16 %v4346, %v4344
        %v4397 = vpack.c.bf16 %v4347, %v4345
        %v4398 = vpack.c.bf16 %v4350, %v4348
        %v4399 = vpack.c.bf16 %v4351, %v4349
        %v4400 = vpack.c.bf16 %v4354, %v4352
        %v4401 = vpack.c.bf16 %v4355, %v4353
        %v4402 = vpack.c.bf16 %v4358, %v4356
        %v4403 = vpack.c.bf16 %v4359, %v4357
        %v4404 = vpack.c.bf16 %v4362, %v4360
        %v4405 = vpack.c.bf16 %v4363, %v4361
        %v4406 = vpack.c.bf16 %v4366, %v4364
        %v4407 = vpack.c.bf16 %v4367, %v4365
        %v4408 = vpack.c.bf16 %v4370, %v4368
        %v4409 = vpack.c.bf16 %v4371, %v4369
        %v4410 = vpack.c.bf16 %v4374, %v4372
        %v4411 = vpack.c.bf16 %v4375, %v4373
        %v4412 = vpack.c.bf16 %v4378, %v4376
        %v4413 = vpack.c.bf16 %v4379, %v4377
        %v4414 = vpack.c.bf16 %v4382, %v4380
        %v4415 = vpack.c.bf16 %v4383, %v4381
        %v4416 = vld [vmem:[%s22] sm:$0xf]
        %v4417 = vld [vmem:[%s22 + $0x4] sm:$0xf]
        %v4418 = vld [vmem:[%s22 + $0x8] sm:$0xf]
        %v4419 = vld [vmem:[%s22 + $0xc] sm:$0xf]
        %v4420 = vld [vmem:[%s22 + $0x10] sm:$0xf]
        %v4421 = vld [vmem:[%s22 + $0x14] sm:$0xf]
        %v4422 = vld [vmem:[%s22 + $0x18] sm:$0xf]
        %v4423 = vld [vmem:[%s22 + $0x1c] sm:$0xf]
        %v4424 = vld [vmem:[%s22 + $0x20] sm:$0xf]
        %v4425 = vld [vmem:[%s22 + $0x24] sm:$0xf]
        %v4426 = vld [vmem:[%s22 + $0x28] sm:$0xf]
        %v4427 = vld [vmem:[%s22 + $0x2c] sm:$0xf]
        %v4428 = vld [vmem:[%s22 + $0x30] sm:$0xf]
        %v4429 = vld [vmem:[%s22 + $0x34] sm:$0xf]
        %v4430 = vld [vmem:[%s22 + $0x38] sm:$0xf]
        %v4431 = vld [vmem:[%s22 + $0x3c] sm:$0xf]
        %v4432 = vld [vmem:[%s22 + $0x40] sm:$0xf]
        %v4433 = vld [vmem:[%s22 + $0x44] sm:$0xf]
        %v4434 = vld [vmem:[%s22 + $0x48] sm:$0xf]
        %v4435 = vld [vmem:[%s22 + $0x4c] sm:$0xf]
        %v4436 = vld [vmem:[%s22 + $0x50] sm:$0xf]
        %v4437 = vld [vmem:[%s22 + $0x54] sm:$0xf]
        %v4438 = vld [vmem:[%s22 + $0x58] sm:$0xf]
        %v4439 = vld [vmem:[%s22 + $0x5c] sm:$0xf]
        %v4440 = vld [vmem:[%s22 + $0x60] sm:$0xf]
        %v4441 = vld [vmem:[%s22 + $0x64] sm:$0xf]
        %v4442 = vld [vmem:[%s22 + $0x68] sm:$0xf]
        %v4443 = vld [vmem:[%s22 + $0x6c] sm:$0xf]
        %v4444 = vld [vmem:[%s22 + $0x70] sm:$0xf]
        %v4445 = vld [vmem:[%s22 + $0x74] sm:$0xf]
        %v4446 = vld [vmem:[%s22 + $0x78] sm:$0xf]
        %v4447 = vld [vmem:[%s22 + $0x7c] sm:$0xf]
        %v4448 = vld [vmem:[%s23] sm:$0x1]
        %v4450 = vlaneseq
        %v4451 = vshrl.u32 %v4450, 7
        %v4452 = vsub.s32 0, %v4451
        %v4453 = vrot.slane %v4448, %v4452
        %v4487 = vunpack.c.l.b16 %v4416
        %v4488 = vunpack.c.l.b16 %v4417
        %v4489 = vunpack.c.l.b16 %v4418
        %v4490 = vunpack.c.l.b16 %v4419
        %v4491 = vunpack.c.l.b16 %v4420
        %v4492 = vunpack.c.l.b16 %v4421
        %v4493 = vunpack.c.l.b16 %v4422
        %v4494 = vunpack.c.l.b16 %v4423
        %v4495 = vunpack.c.l.b16 %v4424
        %v4496 = vunpack.c.l.b16 %v4425
        %v4497 = vunpack.c.l.b16 %v4426
        %v4498 = vunpack.c.l.b16 %v4427
        %v4499 = vunpack.c.l.b16 %v4428
        %v4500 = vunpack.c.l.b16 %v4429
        %v4501 = vunpack.c.l.b16 %v4430
        %v4502 = vunpack.c.l.b16 %v4431
        %v4503 = vunpack.c.l.b16 %v4432
        %v4504 = vunpack.c.l.b16 %v4433
        %v4505 = vunpack.c.l.b16 %v4434
        %v4506 = vunpack.c.l.b16 %v4435
        %v4507 = vunpack.c.l.b16 %v4436
        %v4508 = vunpack.c.l.b16 %v4437
        %v4509 = vunpack.c.l.b16 %v4438
        %v4510 = vunpack.c.l.b16 %v4439
        %v4511 = vunpack.c.l.b16 %v4440
        %v4512 = vunpack.c.l.b16 %v4441
        %v4513 = vunpack.c.l.b16 %v4442
        %v4514 = vunpack.c.l.b16 %v4443
        %v4515 = vunpack.c.l.b16 %v4444
        %v4516 = vunpack.c.l.b16 %v4445
        %v4517 = vunpack.c.l.b16 %v4446
        %v4518 = vunpack.c.l.b16 %v4447
        %v4519 = vpack.c.b16 %v4488, %v4487
        %v4520 = vpack.c.b16 %v4490, %v4489
        %v4521 = vpack.c.b16 %v4492, %v4491
        %v4522 = vpack.c.b16 %v4494, %v4493
        %v4523 = vpack.c.b16 %v4496, %v4495
        %v4524 = vpack.c.b16 %v4498, %v4497
        %v4525 = vpack.c.b16 %v4500, %v4499
        %v4526 = vpack.c.b16 %v4502, %v4501
        %v4527 = vpack.c.b16 %v4504, %v4503
        %v4528 = vpack.c.b16 %v4506, %v4505
        %v4529 = vpack.c.b16 %v4508, %v4507
        %v4530 = vpack.c.b16 %v4510, %v4509
        %v4531 = vpack.c.b16 %v4512, %v4511
        %v4532 = vpack.c.b16 %v4514, %v4513
        %v4533 = vpack.c.b16 %v4516, %v4515
        %v4534 = vpack.c.b16 %v4518, %v4517
        %4551 = vmatprep.subr.bf16.mxu0 0
        %4552 = vmatpush1.bf16.msra.mxu0 %v4519
        %4553 = vmatprep.subr.bf16.mxu0 0
        %4554 = vmatpush1.bf16.msra.mxu0 %v4520
        %4555 = vmatprep.subr.bf16.mxu0 0
        %4556 = vmatpush1.bf16.msra.mxu0 %v4521
        %4557 = vmatprep.subr.bf16.mxu0 0
        %4558 = vmatpush1.bf16.msra.mxu0 %v4522
        %4559 = vmatprep.subr.bf16.mxu0 0
        %4560 = vmatpush1.bf16.msra.mxu0 %v4523
        %4561 = vmatprep.subr.bf16.mxu0 0
        %4562 = vmatpush1.bf16.msra.mxu0 %v4524
        %4563 = vmatprep.subr.bf16.mxu0 0
        %4564 = vmatpush1.bf16.msra.mxu0 %v4525
        %4565 = vmatprep.subr.bf16.mxu0 0
        %4566 = vmatpush1.bf16.msra.mxu0 %v4526
        %4567 = vmatprep.subr.bf16.mxu0 0
        %4568 = vmatpush1.bf16.msra.mxu0 %v4527
        %4569 = vmatprep.subr.bf16.mxu0 0
        %4570 = vmatpush1.bf16.msra.mxu0 %v4528
        %4571 = vmatprep.subr.bf16.mxu0 0
        %4572 = vmatpush1.bf16.msra.mxu0 %v4529
        %4573 = vmatprep.subr.bf16.mxu0 0
        %4574 = vmatpush1.bf16.msra.mxu0 %v4530
        %4575 = vmatprep.subr.bf16.mxu0 0
        %4576 = vmatpush1.bf16.msra.mxu0 %v4531
        %4577 = vmatprep.subr.bf16.mxu0 0
        %4578 = vmatpush1.bf16.msra.mxu0 %v4532
        %4579 = vmatprep.subr.bf16.mxu0 0
        %4580 = vmatpush1.bf16.msra.mxu0 %v4533
        %4581 = vmatprep.subr.bf16.mxu0 0
        %4582 = vmatpush1.bf16.msra.mxu0 %v4534
        %4583 = vmatprep.mubr.bf16.mxu0 %v4385
        %4584 = vmatmul.mubr.bf16.gmra.mrb[0].mxu0 %v4384
        %v4585 = vpop.f32.mrb[0].mxu0
        %v4586 = vadd.f32 %v4453, %v4585
        %v4587 = vpop.f32.mrb[0].mxu0
        %v4588 = vpop.f32.mrb[0].mxu0
        %v4589 = vadd.f32 %v4453, %v4588
        %v4590 = vpop.f32.mrb[0].mxu0
        %4591 = vmatprep.mubr.bf16.mxu0 %v4387
        %4592 = vmatmul.mubr.bf16.gmra.mrb[0].mxu0 %v4386
        %v4593 = vpop.f32.mrb[0].mxu0
        %v4594 = vadd.f32 %v4453, %v4593
        %v4595 = vpop.f32.mrb[0].mxu0
        %v4596 = vpop.f32.mrb[0].mxu0
        %v4597 = vadd.f32 %v4453, %v4596
        %v4598 = vpop.f32.mrb[0].mxu0
        %4599 = vmatprep.mubr.bf16.mxu0 %v4389
        %4600 = vmatmul.mubr.bf16.gmra.mrb[0].mxu0 %v4388
        %v4601 = vpop.f32.mrb[0].mxu0
        %v4602 = vadd.f32 %v4453, %v4601
        %v4603 = vpop.f32.mrb[0].mxu0
        %v4604 = vpop.f32.mrb[0].mxu0
        %v4605 = vadd.f32 %v4453, %v4604
        %v4606 = vpop.f32.mrb[0].mxu0
        %4607 = vmatprep.mubr.bf16.mxu0 %v4391
        %4608 = vmatmul.mubr.bf16.gmra.mrb[0].mxu0 %v4390
        %v4609 = vpop.f32.mrb[0].mxu0
        %v4610 = vadd.f32 %v4453, %v4609
        %v4611 = vpop.f32.mrb[0].mxu0
        %v4612 = vpop.f32.mrb[0].mxu0
        %v4613 = vadd.f32 %v4453, %v4612
        %v4614 = vpop.f32.mrb[0].mxu0
        %4615 = vmatprep.mubr.bf16.mxu0 %v4393
        %4616 = vmatmul.mubr.bf16.gmra.mrb[0].mxu0 %v4392
        %v4617 = vpop.f32.mrb[0].mxu0
        %v4618 = vadd.f32 %v4453, %v4617
        %v4619 = vpop.f32.mrb[0].mxu0
        %v4620 = vpop.f32.mrb[0].mxu0
        %v4621 = vadd.f32 %v4453, %v4620
        %v4622 = vpop.f32.mrb[0].mxu0
        %4623 = vmatprep.mubr.bf16.mxu0 %v4395
        %4624 = vmatmul.mubr.bf16.gmra.mrb[0].mxu0 %v4394
        %v4625 = vpop.f32.mrb[0].mxu0
        %v4626 = vadd.f32 %v4453, %v4625
        %v4627 = vpop.f32.mrb[0].mxu0
        %v4628 = vpop.f32.mrb[0].mxu0
        %v4629 = vadd.f32 %v4453, %v4628
        %v4630 = vpop.f32.mrb[0].mxu0
        %4631 = vmatprep.mubr.bf16.mxu0 %v4397
        %4632 = vmatmul.mubr.bf16.gmra.mrb[0].mxu0 %v4396
        %v4633 = vpop.f32.mrb[0].mxu0
        %v4634 = vadd.f32 %v4453, %v4633
        %v4635 = vpop.f32.mrb[0].mxu0
        %v4636 = vpop.f32.mrb[0].mxu0
        %v4637 = vadd.f32 %v4453, %v4636
        %v4638 = vpop.f32.mrb[0].mxu0
        %4639 = vmatprep.mubr.bf16.mxu0 %v4399
        %4640 = vmatmul.mubr.bf16.gmra.mrb[0].mxu0 %v4398
        %v4641 = vpop.f32.mrb[0].mxu0
        %v4642 = vadd.f32 %v4453, %v4641
        %v4643 = vpop.f32.mrb[0].mxu0
        %v4644 = vpop.f32.mrb[0].mxu0
        %v4645 = vadd.f32 %v4453, %v4644
        %v4646 = vpop.f32.mrb[0].mxu0
        %4647 = vmatprep.mubr.bf16.mxu0 %v4401
        %4648 = vmatmul.mubr.bf16.gmra.mrb[0].mxu0 %v4400
        %v4649 = vpop.f32.mrb[0].mxu0
        %v4650 = vadd.f32 %v4453, %v4649
        %v4651 = vpop.f32.mrb[0].mxu0
        %v4652 = vpop.f32.mrb[0].mxu0
        %v4653 = vadd.f32 %v4453, %v4652
        %v4654 = vpop.f32.mrb[0].mxu0
        %4655 = vmatprep.mubr.bf16.mxu0 %v4403
        %4656 = vmatmul.mubr.bf16.gmra.mrb[0].mxu0 %v4402
        %v4657 = vpop.f32.mrb[0].mxu0
        %v4658 = vadd.f32 %v4453, %v4657
        %v4659 = vpop.f32.mrb[0].mxu0
        %v4660 = vpop.f32.mrb[0].mxu0
        %v4661 = vadd.f32 %v4453, %v4660
        %v4662 = vpop.f32.mrb[0].mxu0
        %4663 = vmatprep.mubr.bf16.mxu0 %v4405
        %4664 = vmatmul.mubr.bf16.gmra.mrb[0].mxu0 %v4404
        %v4665 = vpop.f32.mrb[0].mxu0
        %v4666 = vadd.f32 %v4453, %v4665
        %v4667 = vpop.f32.mrb[0].mxu0
        %v4668 = vpop.f32.mrb[0].mxu0
        %v4669 = vadd.f32 %v4453, %v4668
        %v4670 = vpop.f32.mrb[0].mxu0
        %4671 = vmatprep.mubr.bf16.mxu0 %v4407
        %4672 = vmatmul.mubr.bf16.gmra.mrb[0].mxu0 %v4406
        %v4673 = vpop.f32.mrb[0].mxu0
        %v4674 = vadd.f32 %v4453, %v4673
        %v4675 = vpop.f32.mrb[0].mxu0
        %v4676 = vpop.f32.mrb[0].mxu0
        %v4677 = vadd.f32 %v4453, %v4676
        %v4678 = vpop.f32.mrb[0].mxu0
        %4679 = vmatprep.mubr.bf16.mxu0 %v4409
        %4680 = vmatmul.mubr.bf16.gmra.mrb[0].mxu0 %v4408
        %v4681 = vpop.f32.mrb[0].mxu0
        %v4682 = vadd.f32 %v4453, %v4681
        %v4683 = vpop.f32.mrb[0].mxu0
        %v4684 = vpop.f32.mrb[0].mxu0
        %v4685 = vadd.f32 %v4453, %v4684
        %v4686 = vpop.f32.mrb[0].mxu0
        %4687 = vmatprep.mubr.bf16.mxu0 %v4411
        %4688 = vmatmul.mubr.bf16.gmra.mrb[0].mxu0 %v4410
        %v4689 = vpop.f32.mrb[0].mxu0
        %v4690 = vadd.f32 %v4453, %v4689
        %v4691 = vpop.f32.mrb[0].mxu0
        %v4692 = vpop.f32.mrb[0].mxu0
        %v4693 = vadd.f32 %v4453, %v4692
        %v4694 = vpop.f32.mrb[0].mxu0
        %4695 = vmatprep.mubr.bf16.mxu0 %v4413
        %4696 = vmatmul.mubr.bf16.gmra.mrb[0].mxu0 %v4412
        %v4697 = vpop.f32.mrb[0].mxu0
        %v4698 = vadd.f32 %v4453, %v4697
        %v4699 = vpop.f32.mrb[0].mxu0
        %v4700 = vpop.f32.mrb[0].mxu0
        %v4701 = vadd.f32 %v4453, %v4700
        %v4702 = vpop.f32.mrb[0].mxu0
        %4703 = vmatprep.mubr.bf16.mxu0 %v4415
        %4704 = vmatmul.mubr.bf16.gmra.mrb[0].mxu0 %v4414
        %v4705 = vpop.f32.mrb[0].mxu0
        %v4706 = vadd.f32 %v4453, %v4705
        %v4707 = vpop.f32.mrb[0].mxu0
        %v4708 = vpop.f32.mrb[0].mxu0
        %v4709 = vadd.f32 %v4453, %v4708
        %v4710 = vpop.f32.mrb[0].mxu0
        %4711 = vdwg.mxu0
        %v4712 = vsub.f32 0.0, %v4586
        %v4713 = vsub.f32 0.0, %v4589
        %v4714 = vsub.f32 0.0, %v4594
        %v4715 = vsub.f32 0.0, %v4597
        %v4716 = vsub.f32 0.0, %v4602
        %v4717 = vsub.f32 0.0, %v4605
        %v4718 = vsub.f32 0.0, %v4610
        %v4719 = vsub.f32 0.0, %v4613
        %v4720 = vsub.f32 0.0, %v4618
        %v4721 = vsub.f32 0.0, %v4621
        %v4722 = vsub.f32 0.0, %v4626
        %v4723 = vsub.f32 0.0, %v4629
        %v4724 = vsub.f32 0.0, %v4634
        %v4725 = vsub.f32 0.0, %v4637
        %v4726 = vsub.f32 0.0, %v4642
        %v4727 = vsub.f32 0.0, %v4645
        %v4728 = vsub.f32 0.0, %v4650
        %v4729 = vsub.f32 0.0, %v4653
        %v4730 = vsub.f32 0.0, %v4658
        %v4731 = vsub.f32 0.0, %v4661
        %v4732 = vsub.f32 0.0, %v4666
        %v4733 = vsub.f32 0.0, %v4669
        %v4734 = vsub.f32 0.0, %v4674
        %v4735 = vsub.f32 0.0, %v4677
        %v4736 = vsub.f32 0.0, %v4682
        %v4737 = vsub.f32 0.0, %v4685
        %v4738 = vsub.f32 0.0, %v4690
        %v4739 = vsub.f32 0.0, %v4693
        %v4740 = vsub.f32 0.0, %v4698
        %v4741 = vsub.f32 0.0, %v4701
        %v4742 = vsub.f32 0.0, %v4706
        %v4743 = vsub.f32 0.0, %v4709
        %v4744 = vmul.f32 %v4712, 1.442695
        %v4745 = vpow.pop %v4744
        %v4746 = vmul.f32 %v4713, 1.442695
        %v4747 = vpow.pop %v4746
        %v4748 = vmul.f32 %v4714, 1.442695
        %v4749 = vpow.pop %v4748
        %v4750 = vmul.f32 %v4715, 1.442695
        %v4751 = vpow.pop %v4750
        %v4752 = vmul.f32 %v4716, 1.442695
        %v4753 = vpow.pop %v4752
        %v4754 = vmul.f32 %v4717, 1.442695
        %v4755 = vpow.pop %v4754
        %v4756 = vmul.f32 %v4718, 1.442695
        %v4757 = vpow.pop %v4756
        %v4758 = vmul.f32 %v4719, 1.442695
        %v4759 = vpow.pop %v4758
        %v4760 = vmul.f32 %v4720, 1.442695
        %v4761 = vpow.pop %v4760
        %v4762 = vmul.f32 %v4721, 1.442695
        %v4763 = vpow.pop %v4762
        %v4764 = vmul.f32 %v4722, 1.442695
        %v4765 = vpow.pop %v4764
        %v4766 = vmul.f32 %v4723, 1.442695
        %v4767 = vpow.pop %v4766
        %v4768 = vmul.f32 %v4724, 1.442695
        %v4769 = vpow.pop %v4768
        %v4770 = vmul.f32 %v4725, 1.442695
        %v4771 = vpow.pop %v4770
        %v4772 = vmul.f32 %v4726, 1.442695
        %v4773 = vpow.pop %v4772
        %v4774 = vmul.f32 %v4727, 1.442695
        %v4775 = vpow.pop %v4774
        %v4776 = vmul.f32 %v4728, 1.442695
        %v4777 = vpow.pop %v4776
        %v4778 = vmul.f32 %v4729, 1.442695
        %v4779 = vpow.pop %v4778
        %v4780 = vmul.f32 %v4730, 1.442695
        %v4781 = vpow.pop %v4780
        %v4782 = vmul.f32 %v4731, 1.442695
        %v4783 = vpow.pop %v4782
        %v4784 = vmul.f32 %v4732, 1.442695
        %v4785 = vpow.pop %v4784
        %v4786 = vmul.f32 %v4733, 1.442695
        %v4787 = vpow.pop %v4786
        %v4788 = vmul.f32 %v4734, 1.442695
        %v4789 = vpow.pop %v4788
        %v4790 = vmul.f32 %v4735, 1.442695
        %v4791 = vpow.pop %v4790
        %v4792 = vmul.f32 %v4736, 1.442695
        %v4793 = vpow.pop %v4792
        %v4794 = vmul.f32 %v4737, 1.442695
        %v4795 = vpow.pop %v4794
        %v4796 = vmul.f32 %v4738, 1.442695
        %v4797 = vpow.pop %v4796
        %v4798 = vmul.f32 %v4739, 1.442695
        %v4799 = vpow.pop %v4798
        %v4800 = vmul.f32 %v4740, 1.442695
        %v4801 = vpow.pop %v4800
        %v4802 = vmul.f32 %v4741, 1.442695
        %v4803 = vpow.pop %v4802
        %v4804 = vmul.f32 %v4742, 1.442695
        %v4805 = vpow.pop %v4804
        %v4806 = vmul.f32 %v4743, 1.442695
        %v4807 = vpow.pop %v4806
        %v4808 = vadd.f32 %v4745, 1.0
        %v4809 = vadd.f32 %v4747, 1.0
        %v4810 = vadd.f32 %v4749, 1.0
        %v4811 = vadd.f32 %v4751, 1.0
        %v4812 = vadd.f32 %v4753, 1.0
        %v4813 = vadd.f32 %v4755, 1.0
        %v4814 = vadd.f32 %v4757, 1.0
        %v4815 = vadd.f32 %v4759, 1.0
        %v4816 = vadd.f32 %v4761, 1.0
        %v4817 = vadd.f32 %v4763, 1.0
        %v4818 = vadd.f32 %v4765, 1.0
        %v4819 = vadd.f32 %v4767, 1.0
        %v4820 = vadd.f32 %v4769, 1.0
        %v4821 = vadd.f32 %v4771, 1.0
        %v4822 = vadd.f32 %v4773, 1.0
        %v4823 = vadd.f32 %v4775, 1.0
        %v4824 = vadd.f32 %v4777, 1.0
        %v4825 = vadd.f32 %v4779, 1.0
        %v4826 = vadd.f32 %v4781, 1.0
        %v4827 = vadd.f32 %v4783, 1.0
        %v4828 = vadd.f32 %v4785, 1.0
        %v4829 = vadd.f32 %v4787, 1.0
        %v4830 = vadd.f32 %v4789, 1.0
        %v4831 = vadd.f32 %v4791, 1.0
        %v4832 = vadd.f32 %v4793, 1.0
        %v4833 = vadd.f32 %v4795, 1.0
        %v4834 = vadd.f32 %v4797, 1.0
        %v4835 = vadd.f32 %v4799, 1.0
        %v4836 = vadd.f32 %v4801, 1.0
        %v4837 = vadd.f32 %v4803, 1.0
        %v4838 = vadd.f32 %v4805, 1.0
        %v4839 = vadd.f32 %v4807, 1.0
        %v4840 = vrcp.pop %v4808
        %v4841 = vrcp.pop %v4809
        %v4842 = vrcp.pop %v4810
        %v4843 = vrcp.pop %v4811
        %v4844 = vrcp.pop %v4812
        %v4845 = vrcp.pop %v4813
        %v4846 = vrcp.pop %v4814
        %v4847 = vrcp.pop %v4815
        %v4848 = vrcp.pop %v4816
        %v4849 = vrcp.pop %v4817
        %v4850 = vrcp.pop %v4818
        %v4851 = vrcp.pop %v4819
        %v4852 = vrcp.pop %v4820
        %v4853 = vrcp.pop %v4821
        %v4854 = vrcp.pop %v4822
        %v4855 = vrcp.pop %v4823
        %v4856 = vrcp.pop %v4824
        %v4857 = vrcp.pop %v4825
        %v4858 = vrcp.pop %v4826
        %v4859 = vrcp.pop %v4827
        %v4860 = vrcp.pop %v4828
        %v4861 = vrcp.pop %v4829
        %v4862 = vrcp.pop %v4830
        %v4863 = vrcp.pop %v4831
        %v4864 = vrcp.pop %v4832
        %v4865 = vrcp.pop %v4833
        %v4866 = vrcp.pop %v4834
        %v4867 = vrcp.pop %v4835
        %v4868 = vrcp.pop %v4836
        %v4869 = vrcp.pop %v4837
        %v4870 = vrcp.pop %v4838
        %v4871 = vrcp.pop %v4839
        %4872 = vst [vmem:[%s785] sm:$0xff] %v4840
        %4873 = vst [vmem:[%s785 + $0x8] sm:$0xff] %v4841
        %4874 = vst [vmem:[%s785 + $0x10] sm:$0xff] %v4842
        %4875 = vst [vmem:[%s785 + $0x18] sm:$0xff] %v4843
        %4876 = vst [vmem:[%s785 + $0x20] sm:$0xff] %v4844
        %4877 = vst [vmem:[%s785 + $0x28] sm:$0xff] %v4845
        %4878 = vst [vmem:[%s785 + $0x30] sm:$0xff] %v4846
        %4879 = vst [vmem:[%s785 + $0x38] sm:$0xff] %v4847
        %4880 = vst [vmem:[%s785 + $0x40] sm:$0xff] %v4848
        %4881 = vst [vmem:[%s785 + $0x48] sm:$0xff] %v4849
        %4882 = vst [vmem:[%s785 + $0x50] sm:$0xff] %v4850
        %4883 = vst [vmem:[%s785 + $0x58] sm:$0xff] %v4851
        %4884 = vst [vmem:[%s785 + $0x60] sm:$0xff] %v4852
        %4885 = vst [vmem:[%s785 + $0x68] sm:$0xff] %v4853
        %4886 = vst [vmem:[%s785 + $0x70] sm:$0xff] %v4854
        %4887 = vst [vmem:[%s785 + $0x78] sm:$0xff] %v4855
        %4888 = vst [vmem:[%s785 + $0x80] sm:$0xff] %v4856
        %4889 = vst [vmem:[%s785 + $0x88] sm:$0xff] %v4857
        %4890 = vst [vmem:[%s785 + $0x90] sm:$0xff] %v4858
        %4891 = vst [vmem:[%s785 + $0x98] sm:$0xff] %v4859
        %4892 = vst [vmem:[%s785 + $0xa0] sm:$0xff] %v4860
        %4893 = vst [vmem:[%s785 + $0xa8] sm:$0xff] %v4861
        %4894 = vst [vmem:[%s785 + $0xb0] sm:$0xff] %v4862
        %4895 = vst [vmem:[%s785 + $0xb8] sm:$0xff] %v4863
        %4896 = vst [vmem:[%s785 + $0xc0] sm:$0xff] %v4864
        %4897 = vst [vmem:[%s785 + $0xc8] sm:$0xff] %v4865
        %4898 = vst [vmem:[%s785 + $0xd0] sm:$0xff] %v4866
        %4899 = vst [vmem:[%s785 + $0xd8] sm:$0xff] %v4867
        %4900 = vst [vmem:[%s785 + $0xe0] sm:$0xff] %v4868
        %4901 = vst [vmem:[%s785 + $0xe8] sm:$0xff] %v4869
        %4902 = vst [vmem:[%s785 + $0xf0] sm:$0xff] %v4870
        %4903 = vst [vmem:[%s785 + $0xf8] sm:$0xff] %v4871
        %4905 = vset.pattern.permute.xlu0 0
        %4906 = vperm.xlu0 %4905, %v3418
        %v4907 = vpop.permute.xlu0 %4906
        %4910 = vset.pattern.permute.xlu0 0
        %4911 = vperm.xlu0 %4910, %v3419
        %v4912 = vpop.permute.xlu0 %4911
        %4915 = vset.pattern.permute.xlu0 0
        %4916 = vperm.xlu0 %4915, %v3420
        %v4917 = vpop.permute.xlu0 %4916
        %4920 = vset.pattern.permute.xlu0 0
        %4921 = vperm.xlu0 %4920, %v3421
        %v4922 = vpop.permute.xlu0 %4921
        %4925 = vset.pattern.permute.xlu0 0
        %4926 = vperm.xlu0 %4925, %v3422
        %v4927 = vpop.permute.xlu0 %4926
        %4930 = vset.pattern.permute.xlu0 0
        %4931 = vperm.xlu0 %4930, %v3423
        %v4932 = vpop.permute.xlu0 %4931
        %4935 = vset.pattern.permute.xlu0 0
        %4936 = vperm.xlu0 %4935, %v3424
        %v4937 = vpop.permute.xlu0 %4936
        %4940 = vset.pattern.permute.xlu0 0
        %4941 = vperm.xlu0 %4940, %v3425
        %v4942 = vpop.permute.xlu0 %4941
        %4945 = vset.pattern.permute.xlu0 0
        %4946 = vperm.xlu0 %4945, %v3426
        %v4947 = vpop.permute.xlu0 %4946
        %4950 = vset.pattern.permute.xlu0 0
        %4951 = vperm.xlu0 %4950, %v3427
        %v4952 = vpop.permute.xlu0 %4951
        %4955 = vset.pattern.permute.xlu0 0
        %4956 = vperm.xlu0 %4955, %v3428
        %v4957 = vpop.permute.xlu0 %4956
        %4960 = vset.pattern.permute.xlu0 0
        %4961 = vperm.xlu0 %4960, %v3429
        %v4962 = vpop.permute.xlu0 %4961
        %4965 = vset.pattern.permute.xlu0 0
        %4966 = vperm.xlu0 %4965, %v3430
        %v4967 = vpop.permute.xlu0 %4966
        %4970 = vset.pattern.permute.xlu0 0
        %4971 = vperm.xlu0 %4970, %v3431
        %v4972 = vpop.permute.xlu0 %4971
        %4975 = vset.pattern.permute.xlu0 0
        %4976 = vperm.xlu0 %4975, %v3432
        %v4977 = vpop.permute.xlu0 %4976
        %4980 = vset.pattern.permute.xlu0 0
        %4981 = vperm.xlu0 %4980, %v3433
        %v4982 = vpop.permute.xlu0 %4981
        %4985 = vset.pattern.permute.xlu0 0
        %4986 = vperm.xlu0 %4985, %v3434
        %v4987 = vpop.permute.xlu0 %4986
        %4990 = vset.pattern.permute.xlu0 0
        %4991 = vperm.xlu0 %4990, %v3435
        %v4992 = vpop.permute.xlu0 %4991
        %4995 = vset.pattern.permute.xlu0 0
        %4996 = vperm.xlu0 %4995, %v3436
        %v4997 = vpop.permute.xlu0 %4996
        %5000 = vset.pattern.permute.xlu0 0
        %5001 = vperm.xlu0 %5000, %v3437
        %v5002 = vpop.permute.xlu0 %5001
        %5005 = vset.pattern.permute.xlu0 0
        %5006 = vperm.xlu0 %5005, %v3438
        %v5007 = vpop.permute.xlu0 %5006
        %5010 = vset.pattern.permute.xlu0 0
        %5011 = vperm.xlu0 %5010, %v3439
        %v5012 = vpop.permute.xlu0 %5011
        %5015 = vset.pattern.permute.xlu0 0
        %5016 = vperm.xlu0 %5015, %v3440
        %v5017 = vpop.permute.xlu0 %5016
        %5020 = vset.pattern.permute.xlu0 0
        %5021 = vperm.xlu0 %5020, %v3441
        %v5022 = vpop.permute.xlu0 %5021
        %5025 = vset.pattern.permute.xlu0 0
        %5026 = vperm.xlu0 %5025, %v3442
        %v5027 = vpop.permute.xlu0 %5026
        %5030 = vset.pattern.permute.xlu0 0
        %5031 = vperm.xlu0 %5030, %v3443
        %v5032 = vpop.permute.xlu0 %5031
        %5035 = vset.pattern.permute.xlu0 0
        %5036 = vperm.xlu0 %5035, %v3444
        %v5037 = vpop.permute.xlu0 %5036
        %5040 = vset.pattern.permute.xlu0 0
        %5041 = vperm.xlu0 %5040, %v3445
        %v5042 = vpop.permute.xlu0 %5041
        %5045 = vset.pattern.permute.xlu0 0
        %5046 = vperm.xlu0 %5045, %v3446
        %v5047 = vpop.permute.xlu0 %5046
        %5050 = vset.pattern.permute.xlu0 0
        %5051 = vperm.xlu0 %5050, %v3447
        %v5052 = vpop.permute.xlu0 %5051
        %5055 = vset.pattern.permute.xlu0 0
        %5056 = vperm.xlu0 %5055, %v3448
        %v5057 = vpop.permute.xlu0 %5056
        %5060 = vset.pattern.permute.xlu0 0
        %5061 = vperm.xlu0 %5060, %v3449
        %v5062 = vpop.permute.xlu0 %5061
        %v5064 = vmul.f32 %v4907, %v4840
        %v5065 = vmul.f32 %v4912, %v4841
        %v5066 = vmul.f32 %v4917, %v4842
        %v5067 = vmul.f32 %v4922, %v4843
        %v5068 = vmul.f32 %v4927, %v4844
        %v5069 = vmul.f32 %v4932, %v4845
        %v5070 = vmul.f32 %v4937, %v4846
        %v5071 = vmul.f32 %v4942, %v4847
        %v5072 = vmul.f32 %v4947, %v4848
        %v5073 = vmul.f32 %v4952, %v4849
        %v5074 = vmul.f32 %v4957, %v4850
        %v5075 = vmul.f32 %v4962, %v4851
        %v5076 = vmul.f32 %v4967, %v4852
        %v5077 = vmul.f32 %v4972, %v4853
        %v5078 = vmul.f32 %v4977, %v4854
        %v5079 = vmul.f32 %v4982, %v4855
        %v5080 = vmul.f32 %v4987, %v4856
        %v5081 = vmul.f32 %v4992, %v4857
        %v5082 = vmul.f32 %v4997, %v4858
        %v5083 = vmul.f32 %v5002, %v4859
        %v5084 = vmul.f32 %v5007, %v4860
        %v5085 = vmul.f32 %v5012, %v4861
        %v5086 = vmul.f32 %v5017, %v4862
        %v5087 = vmul.f32 %v5022, %v4863
        %v5088 = vmul.f32 %v5027, %v4864
        %v5089 = vmul.f32 %v5032, %v4865
        %v5090 = vmul.f32 %v5037, %v4866
        %v5091 = vmul.f32 %v5042, %v4867
        %v5092 = vmul.f32 %v5047, %v4868
        %v5093 = vmul.f32 %v5052, %v4869
        %v5094 = vmul.f32 %v5057, %v4870
        %v5095 = vmul.f32 %v5062, %v4871
        %5096 = vset.pattern.permute.xlu0 1
        %5097 = vperm.xlu0 %5096, %v3418
        %v5098 = vpop.permute.xlu0 %5097
        %5100 = vset.pattern.permute.xlu0 1
        %5101 = vperm.xlu0 %5100, %v3419
        %v5102 = vpop.permute.xlu0 %5101
        %5104 = vset.pattern.permute.xlu0 1
        %5105 = vperm.xlu0 %5104, %v3420
        %v5106 = vpop.permute.xlu0 %5105
        %5108 = vset.pattern.permute.xlu0 1
        %5109 = vperm.xlu0 %5108, %v3421
        %v5110 = vpop.permute.xlu0 %5109
        %5112 = vset.pattern.permute.xlu0 1
        %5113 = vperm.xlu0 %5112, %v3422
        %v5114 = vpop.permute.xlu0 %5113
        %5116 = vset.pattern.permute.xlu0 1
        %5117 = vperm.xlu0 %5116, %v3423
        %v5118 = vpop.permute.xlu0 %5117
        %5120 = vset.pattern.permute.xlu0 1
        %5121 = vperm.xlu0 %5120, %v3424
        %v5122 = vpop.permute.xlu0 %5121
        %5124 = vset.pattern.permute.xlu0 1
        %5125 = vperm.xlu0 %5124, %v3425
        %v5126 = vpop.permute.xlu0 %5125
        %5128 = vset.pattern.permute.xlu0 1
        %5129 = vperm.xlu0 %5128, %v3426
        %v5130 = vpop.permute.xlu0 %5129
        %5132 = vset.pattern.permute.xlu0 1
        %5133 = vperm.xlu0 %5132, %v3427
        %v5134 = vpop.permute.xlu0 %5133
        %5136 = vset.pattern.permute.xlu0 1
        %5137 = vperm.xlu0 %5136, %v3428
        %v5138 = vpop.permute.xlu0 %5137
        %5140 = vset.pattern.permute.xlu0 1
        %5141 = vperm.xlu0 %5140, %v3429
        %v5142 = vpop.permute.xlu0 %5141
        %5144 = vset.pattern.permute.xlu0 1
        %5145 = vperm.xlu0 %5144, %v3430
        %v5146 = vpop.permute.xlu0 %5145
        %5148 = vset.pattern.permute.xlu0 1
        %5149 = vperm.xlu0 %5148, %v3431
        %v5150 = vpop.permute.xlu0 %5149
        %5152 = vset.pattern.permute.xlu0 1
        %5153 = vperm.xlu0 %5152, %v3432
        %v5154 = vpop.permute.xlu0 %5153
        %5156 = vset.pattern.permute.xlu0 1
        %5157 = vperm.xlu0 %5156, %v3433
        %v5158 = vpop.permute.xlu0 %5157
        %5160 = vset.pattern.permute.xlu0 1
        %5161 = vperm.xlu0 %5160, %v3434
        %v5162 = vpop.permute.xlu0 %5161
        %5164 = vset.pattern.permute.xlu0 1
        %5165 = vperm.xlu0 %5164, %v3435
        %v5166 = vpop.permute.xlu0 %5165
        %5168 = vset.pattern.permute.xlu0 1
        %5169 = vperm.xlu0 %5168, %v3436
        %v5170 = vpop.permute.xlu0 %5169
        %5172 = vset.pattern.permute.xlu0 1
        %5173 = vperm.xlu0 %5172, %v3437
        %v5174 = vpop.permute.xlu0 %5173
        %5176 = vset.pattern.permute.xlu0 1
        %5177 = vperm.xlu0 %5176, %v3438
        %v5178 = vpop.permute.xlu0 %5177
        %5180 = vset.pattern.permute.xlu0 1
        %5181 = vperm.xlu0 %5180, %v3439
        %v5182 = vpop.permute.xlu0 %5181
        %5184 = vset.pattern.permute.xlu0 1
        %5185 = vperm.xlu0 %5184, %v3440
        %v5186 = vpop.permute.xlu0 %5185
        %5188 = vset.pattern.permute.xlu0 1
        %5189 = vperm.xlu0 %5188, %v3441
        %v5190 = vpop.permute.xlu0 %5189
        %5192 = vset.pattern.permute.xlu0 1
        %5193 = vperm.xlu0 %5192, %v3442
        %v5194 = vpop.permute.xlu0 %5193
        %5196 = vset.pattern.permute.xlu0 1
        %5197 = vperm.xlu0 %5196, %v3443
        %v5198 = vpop.permute.xlu0 %5197
        %5200 = vset.pattern.permute.xlu0 1
        %5201 = vperm.xlu0 %5200, %v3444
        %v5202 = vpop.permute.xlu0 %5201
        %5204 = vset.pattern.permute.xlu0 1
        %5205 = vperm.xlu0 %5204, %v3445
        %v5206 = vpop.permute.xlu0 %5205
        %5208 = vset.pattern.permute.xlu0 1
        %5209 = vperm.xlu0 %5208, %v3446
        %v5210 = vpop.permute.xlu0 %5209
        %5212 = vset.pattern.permute.xlu0 1
        %5213 = vperm.xlu0 %5212, %v3447
        %v5214 = vpop.permute.xlu0 %5213
        %5216 = vset.pattern.permute.xlu0 1
        %5217 = vperm.xlu0 %5216, %v3448
        %v5218 = vpop.permute.xlu0 %5217
        %5220 = vset.pattern.permute.xlu0 1
        %5221 = vperm.xlu0 %5220, %v3449
        %v5222 = vpop.permute.xlu0 %5221
        %v5224 = vmul.f32 %v5098, %v4840
        %v5225 = vmul.f32 %v5102, %v4841
        %v5226 = vmul.f32 %v5106, %v4842
        %v5227 = vmul.f32 %v5110, %v4843
        %v5228 = vmul.f32 %v5114, %v4844
        %v5229 = vmul.f32 %v5118, %v4845
        %v5230 = vmul.f32 %v5122, %v4846
        %v5231 = vmul.f32 %v5126, %v4847
        %v5232 = vmul.f32 %v5130, %v4848
        %v5233 = vmul.f32 %v5134, %v4849
        %v5234 = vmul.f32 %v5138, %v4850
        %v5235 = vmul.f32 %v5142, %v4851
        %v5236 = vmul.f32 %v5146, %v4852
        %v5237 = vmul.f32 %v5150, %v4853
        %v5238 = vmul.f32 %v5154, %v4854
        %v5239 = vmul.f32 %v5158, %v4855
        %v5240 = vmul.f32 %v5162, %v4856
        %v5241 = vmul.f32 %v5166, %v4857
        %v5242 = vmul.f32 %v5170, %v4858
        %v5243 = vmul.f32 %v5174, %v4859
        %v5244 = vmul.f32 %v5178, %v4860
        %v5245 = vmul.f32 %v5182, %v4861
        %v5246 = vmul.f32 %v5186, %v4862
        %v5247 = vmul.f32 %v5190, %v4863
        %v5248 = vmul.f32 %v5194, %v4864
        %v5249 = vmul.f32 %v5198, %v4865
        %v5250 = vmul.f32 %v5202, %v4866
        %v5251 = vmul.f32 %v5206, %v4867
        %v5252 = vmul.f32 %v5210, %v4868
        %v5253 = vmul.f32 %v5214, %v4869
        %v5254 = vmul.f32 %v5218, %v4870
        %v5255 = vmul.f32 %v5222, %v4871
        %5288 = vrot.lane.b32.xlu0 %v5224, 96
        %v5289 = vpop.permute.xlu0 %5288
        %5290 = vrot.lane.b32.xlu0 %v5225, 96
        %v5291 = vpop.permute.xlu0 %5290
        %5292 = vrot.lane.b32.xlu0 %v5226, 96
        %v5293 = vpop.permute.xlu0 %5292
        %5294 = vrot.lane.b32.xlu0 %v5227, 96
        %v5295 = vpop.permute.xlu0 %5294
        %5296 = vrot.lane.b32.xlu0 %v5228, 96
        %v5297 = vpop.permute.xlu0 %5296
        %5298 = vrot.lane.b32.xlu0 %v5229, 96
        %v5299 = vpop.permute.xlu0 %5298
        %5300 = vrot.lane.b32.xlu0 %v5230, 96
        %v5301 = vpop.permute.xlu0 %5300
        %5302 = vrot.lane.b32.xlu0 %v5231, 96
        %v5303 = vpop.permute.xlu0 %5302
        %5304 = vrot.lane.b32.xlu0 %v5232, 96
        %v5305 = vpop.permute.xlu0 %5304
        %5306 = vrot.lane.b32.xlu0 %v5233, 96
        %v5307 = vpop.permute.xlu0 %5306
        %5308 = vrot.lane.b32.xlu0 %v5234, 96
        %v5309 = vpop.permute.xlu0 %5308
        %5310 = vrot.lane.b32.xlu0 %v5235, 96
        %v5311 = vpop.permute.xlu0 %5310
        %5312 = vrot.lane.b32.xlu0 %v5236, 96
        %v5313 = vpop.permute.xlu0 %5312
        %5314 = vrot.lane.b32.xlu0 %v5237, 96
        %v5315 = vpop.permute.xlu0 %5314
        %5316 = vrot.lane.b32.xlu0 %v5238, 96
        %v5317 = vpop.permute.xlu0 %5316
        %5318 = vrot.lane.b32.xlu0 %v5239, 96
        %v5319 = vpop.permute.xlu0 %5318
        %5320 = vrot.lane.b32.xlu0 %v5240, 96
        %v5321 = vpop.permute.xlu0 %5320
        %5322 = vrot.lane.b32.xlu0 %v5241, 96
        %v5323 = vpop.permute.xlu0 %5322
        %5324 = vrot.lane.b32.xlu0 %v5242, 96
        %v5325 = vpop.permute.xlu0 %5324
        %5326 = vrot.lane.b32.xlu0 %v5243, 96
        %v5327 = vpop.permute.xlu0 %5326
        %5328 = vrot.lane.b32.xlu0 %v5244, 96
        %v5329 = vpop.permute.xlu0 %5328
        %5330 = vrot.lane.b32.xlu0 %v5245, 96
        %v5331 = vpop.permute.xlu0 %5330
        %5332 = vrot.lane.b32.xlu0 %v5246, 96
        %v5333 = vpop.permute.xlu0 %5332
        %5334 = vrot.lane.b32.xlu0 %v5247, 96
        %v5335 = vpop.permute.xlu0 %5334
        %5336 = vrot.lane.b32.xlu0 %v5248, 96
        %v5337 = vpop.permute.xlu0 %5336
        %5338 = vrot.lane.b32.xlu0 %v5249, 96
        %v5339 = vpop.permute.xlu0 %5338
        %5340 = vrot.lane.b32.xlu0 %v5250, 96
        %v5341 = vpop.permute.xlu0 %5340
        %5342 = vrot.lane.b32.xlu0 %v5251, 96
        %v5343 = vpop.permute.xlu0 %5342
        %5344 = vrot.lane.b32.xlu0 %v5252, 96
        %v5345 = vpop.permute.xlu0 %5344
        %5346 = vrot.lane.b32.xlu0 %v5253, 96
        %v5347 = vpop.permute.xlu0 %5346
        %5348 = vrot.lane.b32.xlu0 %v5254, 96
        %v5349 = vpop.permute.xlu0 %5348
        %5350 = vrot.lane.b32.xlu0 %v5255, 96
        %v5351 = vpop.permute.xlu0 %5350
        %v5384 = vadd.f32 %v5064, %v5289
        %v5385 = vadd.f32 %v5065, %v5291
        %v5386 = vadd.f32 %v5066, %v5293
        %v5387 = vadd.f32 %v5067, %v5295
        %v5388 = vadd.f32 %v5068, %v5297
        %v5389 = vadd.f32 %v5069, %v5299
        %v5390 = vadd.f32 %v5070, %v5301
        %v5391 = vadd.f32 %v5071, %v5303
        %v5392 = vadd.f32 %v5072, %v5305
        %v5393 = vadd.f32 %v5073, %v5307
        %v5394 = vadd.f32 %v5074, %v5309
        %v5395 = vadd.f32 %v5075, %v5311
        %v5396 = vadd.f32 %v5076, %v5313
        %v5397 = vadd.f32 %v5077, %v5315
        %v5398 = vadd.f32 %v5078, %v5317
        %v5399 = vadd.f32 %v5079, %v5319
        %v5400 = vadd.f32 %v5080, %v5321
        %v5401 = vadd.f32 %v5081, %v5323
        %v5402 = vadd.f32 %v5082, %v5325
        %v5403 = vadd.f32 %v5083, %v5327
        %v5404 = vadd.f32 %v5084, %v5329
        %v5405 = vadd.f32 %v5085, %v5331
        %v5406 = vadd.f32 %v5086, %v5333
        %v5407 = vadd.f32 %v5087, %v5335
        %v5408 = vadd.f32 %v5088, %v5337
        %v5409 = vadd.f32 %v5089, %v5339
        %v5410 = vadd.f32 %v5090, %v5341
        %v5411 = vadd.f32 %v5091, %v5343
        %v5412 = vadd.f32 %v5092, %v5345
        %v5413 = vadd.f32 %v5093, %v5347
        %v5414 = vadd.f32 %v5094, %v5349
        %v5415 = vadd.f32 %v5095, %v5351
        %5416 = vset.pattern.permute.xlu0 2
        %5417 = vperm.xlu0 %5416, %v3418
        %v5418 = vpop.permute.xlu0 %5417
        %5420 = vset.pattern.permute.xlu0 2
        %5421 = vperm.xlu0 %5420, %v3419
        %v5422 = vpop.permute.xlu0 %5421
        %5424 = vset.pattern.permute.xlu0 2
        %5425 = vperm.xlu0 %5424, %v3420
        %v5426 = vpop.permute.xlu0 %5425
        %5428 = vset.pattern.permute.xlu0 2
        %5429 = vperm.xlu0 %5428, %v3421
        %v5430 = vpop.permute.xlu0 %5429
        %5432 = vset.pattern.permute.xlu0 2
        %5433 = vperm.xlu0 %5432, %v3422
        %v5434 = vpop.permute.xlu0 %5433
        %5436 = vset.pattern.permute.xlu0 2
        %5437 = vperm.xlu0 %5436, %v3423
        %v5438 = vpop.permute.xlu0 %5437
        %5440 = vset.pattern.permute.xlu0 2
        %5441 = vperm.xlu0 %5440, %v3424
        %v5442 = vpop.permute.xlu0 %5441
        %5444 = vset.pattern.permute.xlu0 2
        %5445 = vperm.xlu0 %5444, %v3425
        %v5446 = vpop.permute.xlu0 %5445
        %5448 = vset.pattern.permute.xlu0 2
        %5449 = vperm.xlu0 %5448, %v3426
        %v5450 = vpop.permute.xlu0 %5449
        %5452 = vset.pattern.permute.xlu0 2
        %5453 = vperm.xlu0 %5452, %v3427
        %v5454 = vpop.permute.xlu0 %5453
        %5456 = vset.pattern.permute.xlu0 2
        %5457 = vperm.xlu0 %5456, %v3428
        %v5458 = vpop.permute.xlu0 %5457
        %5460 = vset.pattern.permute.xlu0 2
        %5461 = vperm.xlu0 %5460, %v3429
        %v5462 = vpop.permute.xlu0 %5461
        %5464 = vset.pattern.permute.xlu0 2
        %5465 = vperm.xlu0 %5464, %v3430
        %v5466 = vpop.permute.xlu0 %5465
        %5468 = vset.pattern.permute.xlu0 2
        %5469 = vperm.xlu0 %5468, %v3431
        %v5470 = vpop.permute.xlu0 %5469
        %5472 = vset.pattern.permute.xlu0 2
        %5473 = vperm.xlu0 %5472, %v3432
        %v5474 = vpop.permute.xlu0 %5473
        %5476 = vset.pattern.permute.xlu0 2
        %5477 = vperm.xlu0 %5476, %v3433
        %v5478 = vpop.permute.xlu0 %5477
        %5480 = vset.pattern.permute.xlu0 2
        %5481 = vperm.xlu0 %5480, %v3434
        %v5482 = vpop.permute.xlu0 %5481
        %5484 = vset.pattern.permute.xlu0 2
        %5485 = vperm.xlu0 %5484, %v3435
        %v5486 = vpop.permute.xlu0 %5485
        %5488 = vset.pattern.permute.xlu0 2
        %5489 = vperm.xlu0 %5488, %v3436
        %v5490 = vpop.permute.xlu0 %5489
        %5492 = vset.pattern.permute.xlu0 2
        %5493 = vperm.xlu0 %5492, %v3437
        %v5494 = vpop.permute.xlu0 %5493
        %5496 = vset.pattern.permute.xlu0 2
        %5497 = vperm.xlu0 %5496, %v3438
        %v5498 = vpop.permute.xlu0 %5497
        %5500 = vset.pattern.permute.xlu0 2
        %5501 = vperm.xlu0 %5500, %v3439
        %v5502 = vpop.permute.xlu0 %5501
        %5504 = vset.pattern.permute.xlu0 2
        %5505 = vperm.xlu0 %5504, %v3440
        %v5506 = vpop.permute.xlu0 %5505
        %5508 = vset.pattern.permute.xlu0 2
        %5509 = vperm.xlu0 %5508, %v3441
        %v5510 = vpop.permute.xlu0 %5509
        %5512 = vset.pattern.permute.xlu0 2
        %5513 = vperm.xlu0 %5512, %v3442
        %v5514 = vpop.permute.xlu0 %5513
        %5516 = vset.pattern.permute.xlu0 2
        %5517 = vperm.xlu0 %5516, %v3443
        %v5518 = vpop.permute.xlu0 %5517
        %5520 = vset.pattern.permute.xlu0 2
        %5521 = vperm.xlu0 %5520, %v3444
        %v5522 = vpop.permute.xlu0 %5521
        %5524 = vset.pattern.permute.xlu0 2
        %5525 = vperm.xlu0 %5524, %v3445
        %v5526 = vpop.permute.xlu0 %5525
        %5528 = vset.pattern.permute.xlu0 2
        %5529 = vperm.xlu0 %5528, %v3446
        %v5530 = vpop.permute.xlu0 %5529
        %5532 = vset.pattern.permute.xlu0 2
        %5533 = vperm.xlu0 %5532, %v3447
        %v5534 = vpop.permute.xlu0 %5533
        %5536 = vset.pattern.permute.xlu0 2
        %5537 = vperm.xlu0 %5536, %v3448
        %v5538 = vpop.permute.xlu0 %5537
        %5540 = vset.pattern.permute.xlu0 2
        %5541 = vperm.xlu0 %5540, %v3449
        %v5542 = vpop.permute.xlu0 %5541
        %v5544 = vmul.f32 %v5418, %v4840
        %v5545 = vmul.f32 %v5422, %v4841
        %v5546 = vmul.f32 %v5426, %v4842
        %v5547 = vmul.f32 %v5430, %v4843
        %v5548 = vmul.f32 %v5434, %v4844
        %v5549 = vmul.f32 %v5438, %v4845
        %v5550 = vmul.f32 %v5442, %v4846
        %v5551 = vmul.f32 %v5446, %v4847
        %v5552 = vmul.f32 %v5450, %v4848
        %v5553 = vmul.f32 %v5454, %v4849
        %v5554 = vmul.f32 %v5458, %v4850
        %v5555 = vmul.f32 %v5462, %v4851
        %v5556 = vmul.f32 %v5466, %v4852
        %v5557 = vmul.f32 %v5470, %v4853
        %v5558 = vmul.f32 %v5474, %v4854
        %v5559 = vmul.f32 %v5478, %v4855
        %v5560 = vmul.f32 %v5482, %v4856
        %v5561 = vmul.f32 %v5486, %v4857
        %v5562 = vmul.f32 %v5490, %v4858
        %v5563 = vmul.f32 %v5494, %v4859
        %v5564 = vmul.f32 %v5498, %v4860
        %v5565 = vmul.f32 %v5502, %v4861
        %v5566 = vmul.f32 %v5506, %v4862
        %v5567 = vmul.f32 %v5510, %v4863
        %v5568 = vmul.f32 %v5514, %v4864
        %v5569 = vmul.f32 %v5518, %v4865
        %v5570 = vmul.f32 %v5522, %v4866
        %v5571 = vmul.f32 %v5526, %v4867
        %v5572 = vmul.f32 %v5530, %v4868
        %v5573 = vmul.f32 %v5534, %v4869
        %v5574 = vmul.f32 %v5538, %v4870
        %v5575 = vmul.f32 %v5542, %v4871
        %5608 = vrot.lane.b32.xlu0 %v5544, 64
        %v5609 = vpop.permute.xlu0 %5608
        %5610 = vrot.lane.b32.xlu0 %v5545, 64
        %v5611 = vpop.permute.xlu0 %5610
        %5612 = vrot.lane.b32.xlu0 %v5546, 64
        %v5613 = vpop.permute.xlu0 %5612
        %5614 = vrot.lane.b32.xlu0 %v5547, 64
        %v5615 = vpop.permute.xlu0 %5614
        %5616 = vrot.lane.b32.xlu0 %v5548, 64
        %v5617 = vpop.permute.xlu0 %5616
        %5618 = vrot.lane.b32.xlu0 %v5549, 64
        %v5619 = vpop.permute.xlu0 %5618
        %5620 = vrot.lane.b32.xlu0 %v5550, 64
        %v5621 = vpop.permute.xlu0 %5620
        %5622 = vrot.lane.b32.xlu0 %v5551, 64
        %v5623 = vpop.permute.xlu0 %5622
        %5624 = vrot.lane.b32.xlu0 %v5552, 64
        %v5625 = vpop.permute.xlu0 %5624
        %5626 = vrot.lane.b32.xlu0 %v5553, 64
        %v5627 = vpop.permute.xlu0 %5626
        %5628 = vrot.lane.b32.xlu0 %v5554, 64
        %v5629 = vpop.permute.xlu0 %5628
        %5630 = vrot.lane.b32.xlu0 %v5555, 64
        %v5631 = vpop.permute.xlu0 %5630
        %5632 = vrot.lane.b32.xlu0 %v5556, 64
        %v5633 = vpop.permute.xlu0 %5632
        %5634 = vrot.lane.b32.xlu0 %v5557, 64
        %v5635 = vpop.permute.xlu0 %5634
        %5636 = vrot.lane.b32.xlu0 %v5558, 64
        %v5637 = vpop.permute.xlu0 %5636
        %5638 = vrot.lane.b32.xlu0 %v5559, 64
        %v5639 = vpop.permute.xlu0 %5638
        %5640 = vrot.lane.b32.xlu0 %v5560, 64
        %v5641 = vpop.permute.xlu0 %5640
        %5642 = vrot.lane.b32.xlu0 %v5561, 64
        %v5643 = vpop.permute.xlu0 %5642
        %5644 = vrot.lane.b32.xlu0 %v5562, 64
        %v5645 = vpop.permute.xlu0 %5644
        %5646 = vrot.lane.b32.xlu0 %v5563, 64
        %v5647 = vpop.permute.xlu0 %5646
        %5648 = vrot.lane.b32.xlu0 %v5564, 64
        %v5649 = vpop.permute.xlu0 %5648
        %5650 = vrot.lane.b32.xlu0 %v5565, 64
        %v5651 = vpop.permute.xlu0 %5650
        %5652 = vrot.lane.b32.xlu0 %v5566, 64
        %v5653 = vpop.permute.xlu0 %5652
        %5654 = vrot.lane.b32.xlu0 %v5567, 64
        %v5655 = vpop.permute.xlu0 %5654
        %5656 = vrot.lane.b32.xlu0 %v5568, 64
        %v5657 = vpop.permute.xlu0 %5656
        %5658 = vrot.lane.b32.xlu0 %v5569, 64
        %v5659 = vpop.permute.xlu0 %5658
        %5660 = vrot.lane.b32.xlu0 %v5570, 64
        %v5661 = vpop.permute.xlu0 %5660
        %5662 = vrot.lane.b32.xlu0 %v5571, 64
        %v5663 = vpop.permute.xlu0 %5662
        %5664 = vrot.lane.b32.xlu0 %v5572, 64
        %v5665 = vpop.permute.xlu0 %5664
        %5666 = vrot.lane.b32.xlu0 %v5573, 64
        %v5667 = vpop.permute.xlu0 %5666
        %5668 = vrot.lane.b32.xlu0 %v5574, 64
        %v5669 = vpop.permute.xlu0 %5668
        %5670 = vrot.lane.b32.xlu0 %v5575, 64
        %v5671 = vpop.permute.xlu0 %5670
        %v5704 = vadd.f32 %v5384, %v5609
        %v5705 = vadd.f32 %v5385, %v5611
        %v5706 = vadd.f32 %v5386, %v5613
        %v5707 = vadd.f32 %v5387, %v5615
        %v5708 = vadd.f32 %v5388, %v5617
        %v5709 = vadd.f32 %v5389, %v5619
        %v5710 = vadd.f32 %v5390, %v5621
        %v5711 = vadd.f32 %v5391, %v5623
        %v5712 = vadd.f32 %v5392, %v5625
        %v5713 = vadd.f32 %v5393, %v5627
        %v5714 = vadd.f32 %v5394, %v5629
        %v5715 = vadd.f32 %v5395, %v5631
        %v5716 = vadd.f32 %v5396, %v5633
        %v5717 = vadd.f32 %v5397, %v5635
        %v5718 = vadd.f32 %v5398, %v5637
        %v5719 = vadd.f32 %v5399, %v5639
        %v5720 = vadd.f32 %v5400, %v5641
        %v5721 = vadd.f32 %v5401, %v5643
        %v5722 = vadd.f32 %v5402, %v5645
        %v5723 = vadd.f32 %v5403, %v5647
        %v5724 = vadd.f32 %v5404, %v5649
        %v5725 = vadd.f32 %v5405, %v5651
        %v5726 = vadd.f32 %v5406, %v5653
        %v5727 = vadd.f32 %v5407, %v5655
        %v5728 = vadd.f32 %v5408, %v5657
        %v5729 = vadd.f32 %v5409, %v5659
        %v5730 = vadd.f32 %v5410, %v5661
        %v5731 = vadd.f32 %v5411, %v5663
        %v5732 = vadd.f32 %v5412, %v5665
        %v5733 = vadd.f32 %v5413, %v5667
        %v5734 = vadd.f32 %v5414, %v5669
        %v5735 = vadd.f32 %v5415, %v5671
        %5736 = vset.pattern.permute.xlu0 3
        %5737 = vperm.xlu0 %5736, %v3418
        %v5738 = vpop.permute.xlu0 %5737
        %5740 = vset.pattern.permute.xlu0 3
        %5741 = vperm.xlu0 %5740, %v3419
        %v5742 = vpop.permute.xlu0 %5741
        %5744 = vset.pattern.permute.xlu0 3
        %5745 = vperm.xlu0 %5744, %v3420
        %v5746 = vpop.permute.xlu0 %5745
        %5748 = vset.pattern.permute.xlu0 3
        %5749 = vperm.xlu0 %5748, %v3421
        %v5750 = vpop.permute.xlu0 %5749
        %5752 = vset.pattern.permute.xlu0 3
        %5753 = vperm.xlu0 %5752, %v3422
        %v5754 = vpop.permute.xlu0 %5753
        %5756 = vset.pattern.permute.xlu0 3
        %5757 = vperm.xlu0 %5756, %v3423
        %v5758 = vpop.permute.xlu0 %5757
        %5760 = vset.pattern.permute.xlu0 3
        %5761 = vperm.xlu0 %5760, %v3424
        %v5762 = vpop.permute.xlu0 %5761
        %5764 = vset.pattern.permute.xlu0 3
        %5765 = vperm.xlu0 %5764, %v3425
        %v5766 = vpop.permute.xlu0 %5765
        %5768 = vset.pattern.permute.xlu0 3
        %5769 = vperm.xlu0 %5768, %v3426
        %v5770 = vpop.permute.xlu0 %5769
        %5772 = vset.pattern.permute.xlu0 3
        %5773 = vperm.xlu0 %5772, %v3427
        %v5774 = vpop.permute.xlu0 %5773
        %5776 = vset.pattern.permute.xlu0 3
        %5777 = vperm.xlu0 %5776, %v3428
        %v5778 = vpop.permute.xlu0 %5777
        %5780 = vset.pattern.permute.xlu0 3
        %5781 = vperm.xlu0 %5780, %v3429
        %v5782 = vpop.permute.xlu0 %5781
        %5784 = vset.pattern.permute.xlu0 3
        %5785 = vperm.xlu0 %5784, %v3430
        %v5786 = vpop.permute.xlu0 %5785
        %5788 = vset.pattern.permute.xlu0 3
        %5789 = vperm.xlu0 %5788, %v3431
        %v5790 = vpop.permute.xlu0 %5789
        %5792 = vset.pattern.permute.xlu0 3
        %5793 = vperm.xlu0 %5792, %v3432
        %v5794 = vpop.permute.xlu0 %5793
        %5796 = vset.pattern.permute.xlu0 3
        %5797 = vperm.xlu0 %5796, %v3433
        %v5798 = vpop.permute.xlu0 %5797
        %5800 = vset.pattern.permute.xlu0 3
        %5801 = vperm.xlu0 %5800, %v3434
        %v5802 = vpop.permute.xlu0 %5801
        %5804 = vset.pattern.permute.xlu0 3
        %5805 = vperm.xlu0 %5804, %v3435
        %v5806 = vpop.permute.xlu0 %5805
        %5808 = vset.pattern.permute.xlu0 3
        %5809 = vperm.xlu0 %5808, %v3436
        %v5810 = vpop.permute.xlu0 %5809
        %5812 = vset.pattern.permute.xlu0 3
        %5813 = vperm.xlu0 %5812, %v3437
        %v5814 = vpop.permute.xlu0 %5813
        %5816 = vset.pattern.permute.xlu0 3
        %5817 = vperm.xlu0 %5816, %v3438
        %v5818 = vpop.permute.xlu0 %5817
        %5820 = vset.pattern.permute.xlu0 3
        %5821 = vperm.xlu0 %5820, %v3439
        %v5822 = vpop.permute.xlu0 %5821
        %5824 = vset.pattern.permute.xlu0 3
        %5825 = vperm.xlu0 %5824, %v3440
        %v5826 = vpop.permute.xlu0 %5825
        %5828 = vset.pattern.permute.xlu0 3
        %5829 = vperm.xlu0 %5828, %v3441
        %v5830 = vpop.permute.xlu0 %5829
        %5832 = vset.pattern.permute.xlu0 3
        %5833 = vperm.xlu0 %5832, %v3442
        %v5834 = vpop.permute.xlu0 %5833
        %5836 = vset.pattern.permute.xlu0 3
        %5837 = vperm.xlu0 %5836, %v3443
        %v5838 = vpop.permute.xlu0 %5837
        %5840 = vset.pattern.permute.xlu0 3
        %5841 = vperm.xlu0 %5840, %v3444
        %v5842 = vpop.permute.xlu0 %5841
        %5844 = vset.pattern.permute.xlu0 3
        %5845 = vperm.xlu0 %5844, %v3445
        %v5846 = vpop.permute.xlu0 %5845
        %5848 = vset.pattern.permute.xlu0 3
        %5849 = vperm.xlu0 %5848, %v3446
        %v5850 = vpop.permute.xlu0 %5849
        %5852 = vset.pattern.permute.xlu0 3
        %5853 = vperm.xlu0 %5852, %v3447
        %v5854 = vpop.permute.xlu0 %5853
        %5856 = vset.pattern.permute.xlu0 3
        %5857 = vperm.xlu0 %5856, %v3448
        %v5858 = vpop.permute.xlu0 %5857
        %5860 = vset.pattern.permute.xlu0 3
        %5861 = vperm.xlu0 %5860, %v3449
        %v5862 = vpop.permute.xlu0 %5861
        %v5864 = vmul.f32 %v5738, %v4840
        %v5865 = vmul.f32 %v5742, %v4841
        %v5866 = vmul.f32 %v5746, %v4842
        %v5867 = vmul.f32 %v5750, %v4843
        %v5868 = vmul.f32 %v5754, %v4844
        %v5869 = vmul.f32 %v5758, %v4845
        %v5870 = vmul.f32 %v5762, %v4846
        %v5871 = vmul.f32 %v5766, %v4847
        %v5872 = vmul.f32 %v5770, %v4848
        %v5873 = vmul.f32 %v5774, %v4849
        %v5874 = vmul.f32 %v5778, %v4850
        %v5875 = vmul.f32 %v5782, %v4851
        %v5876 = vmul.f32 %v5786, %v4852
        %v5877 = vmul.f32 %v5790, %v4853
        %v5878 = vmul.f32 %v5794, %v4854
        %v5879 = vmul.f32 %v5798, %v4855
        %v5880 = vmul.f32 %v5802, %v4856
        %v5881 = vmul.f32 %v5806, %v4857
        %v5882 = vmul.f32 %v5810, %v4858
        %v5883 = vmul.f32 %v5814, %v4859
        %v5884 = vmul.f32 %v5818, %v4860
        %v5885 = vmul.f32 %v5822, %v4861
        %v5886 = vmul.f32 %v5826, %v4862
        %v5887 = vmul.f32 %v5830, %v4863
        %v5888 = vmul.f32 %v5834, %v4864
        %v5889 = vmul.f32 %v5838, %v4865
        %v5890 = vmul.f32 %v5842, %v4866
        %v5891 = vmul.f32 %v5846, %v4867
        %v5892 = vmul.f32 %v5850, %v4868
        %v5893 = vmul.f32 %v5854, %v4869
        %v5894 = vmul.f32 %v5858, %v4870
        %v5895 = vmul.f32 %v5862, %v4871
        %5928 = vrot.lane.b32.xlu0 %v5864, 32
        %v5929 = vpop.permute.xlu0 %5928
        %5930 = vrot.lane.b32.xlu0 %v5865, 32
        %v5931 = vpop.permute.xlu0 %5930
        %5932 = vrot.lane.b32.xlu0 %v5866, 32
        %v5933 = vpop.permute.xlu0 %5932
        %5934 = vrot.lane.b32.xlu0 %v5867, 32
        %v5935 = vpop.permute.xlu0 %5934
        %5936 = vrot.lane.b32.xlu0 %v5868, 32
        %v5937 = vpop.permute.xlu0 %5936
        %5938 = vrot.lane.b32.xlu0 %v5869, 32
        %v5939 = vpop.permute.xlu0 %5938
        %5940 = vrot.lane.b32.xlu0 %v5870, 32
        %v5941 = vpop.permute.xlu0 %5940
        %5942 = vrot.lane.b32.xlu0 %v5871, 32
        %v5943 = vpop.permute.xlu0 %5942
        %5944 = vrot.lane.b32.xlu0 %v5872, 32
        %v5945 = vpop.permute.xlu0 %5944
        %5946 = vrot.lane.b32.xlu0 %v5873, 32
        %v5947 = vpop.permute.xlu0 %5946
        %5948 = vrot.lane.b32.xlu0 %v5874, 32
        %v5949 = vpop.permute.xlu0 %5948
        %5950 = vrot.lane.b32.xlu0 %v5875, 32
        %v5951 = vpop.permute.xlu0 %5950
        %5952 = vrot.lane.b32.xlu0 %v5876, 32
        %v5953 = vpop.permute.xlu0 %5952
        %5954 = vrot.lane.b32.xlu0 %v5877, 32
        %v5955 = vpop.permute.xlu0 %5954
        %5956 = vrot.lane.b32.xlu0 %v5878, 32
        %v5957 = vpop.permute.xlu0 %5956
        %5958 = vrot.lane.b32.xlu0 %v5879, 32
        %v5959 = vpop.permute.xlu0 %5958
        %5960 = vrot.lane.b32.xlu0 %v5880, 32
        %v5961 = vpop.permute.xlu0 %5960
        %5962 = vrot.lane.b32.xlu0 %v5881, 32
        %v5963 = vpop.permute.xlu0 %5962
        %5964 = vrot.lane.b32.xlu0 %v5882, 32
        %v5965 = vpop.permute.xlu0 %5964
        %5966 = vrot.lane.b32.xlu0 %v5883, 32
        %v5967 = vpop.permute.xlu0 %5966
        %5968 = vrot.lane.b32.xlu0 %v5884, 32
        %v5969 = vpop.permute.xlu0 %5968
        %5970 = vrot.lane.b32.xlu0 %v5885, 32
        %v5971 = vpop.permute.xlu0 %5970
        %5972 = vrot.lane.b32.xlu0 %v5886, 32
        %v5973 = vpop.permute.xlu0 %5972
        %5974 = vrot.lane.b32.xlu0 %v5887, 32
        %v5975 = vpop.permute.xlu0 %5974
        %5976 = vrot.lane.b32.xlu0 %v5888, 32
        %v5977 = vpop.permute.xlu0 %5976
        %5978 = vrot.lane.b32.xlu0 %v5889, 32
        %v5979 = vpop.permute.xlu0 %5978
        %5980 = vrot.lane.b32.xlu0 %v5890, 32
        %v5981 = vpop.permute.xlu0 %5980
        %5982 = vrot.lane.b32.xlu0 %v5891, 32
        %v5983 = vpop.permute.xlu0 %5982
        %5984 = vrot.lane.b32.xlu0 %v5892, 32
        %v5985 = vpop.permute.xlu0 %5984
        %5986 = vrot.lane.b32.xlu0 %v5893, 32
        %v5987 = vpop.permute.xlu0 %5986
        %5988 = vrot.lane.b32.xlu0 %v5894, 32
        %v5989 = vpop.permute.xlu0 %5988
        %5990 = vrot.lane.b32.xlu0 %v5895, 32
        %v5991 = vpop.permute.xlu0 %5990
        %v6024 = vadd.f32 %v5704, %v5929
        %v6025 = vadd.f32 %v5705, %v5931
        %v6026 = vadd.f32 %v5706, %v5933
        %v6027 = vadd.f32 %v5707, %v5935
        %v6028 = vadd.f32 %v5708, %v5937
        %v6029 = vadd.f32 %v5709, %v5939
        %v6030 = vadd.f32 %v5710, %v5941
        %v6031 = vadd.f32 %v5711, %v5943
        %v6032 = vadd.f32 %v5712, %v5945
        %v6033 = vadd.f32 %v5713, %v5947
        %v6034 = vadd.f32 %v5714, %v5949
        %v6035 = vadd.f32 %v5715, %v5951
        %v6036 = vadd.f32 %v5716, %v5953
        %v6037 = vadd.f32 %v5717, %v5955
        %v6038 = vadd.f32 %v5718, %v5957
        %v6039 = vadd.f32 %v5719, %v5959
        %v6040 = vadd.f32 %v5720, %v5961
        %v6041 = vadd.f32 %v5721, %v5963
        %v6042 = vadd.f32 %v5722, %v5965
        %v6043 = vadd.f32 %v5723, %v5967
        %v6044 = vadd.f32 %v5724, %v5969
        %v6045 = vadd.f32 %v5725, %v5971
        %v6046 = vadd.f32 %v5726, %v5973
        %v6047 = vadd.f32 %v5727, %v5975
        %v6048 = vadd.f32 %v5728, %v5977
        %v6049 = vadd.f32 %v5729, %v5979
        %v6050 = vadd.f32 %v5730, %v5981
        %v6051 = vadd.f32 %v5731, %v5983
        %v6052 = vadd.f32 %v5732, %v5985
        %v6053 = vadd.f32 %v5733, %v5987
        %v6054 = vadd.f32 %v5734, %v5989
        %v6055 = vadd.f32 %v5735, %v5991
        %6088 = vrot.lane.b32.xlu0 %v1883, 32
        %v6089 = vpop.permute.xlu0 %6088
        %6090 = vrot.lane.b32.xlu0 %v1886, 32
        %v6091 = vpop.permute.xlu0 %6090
        %6092 = vrot.lane.b32.xlu0 %v1891, 32
        %v6093 = vpop.permute.xlu0 %6092
        %6094 = vrot.lane.b32.xlu0 %v1894, 32
        %v6095 = vpop.permute.xlu0 %6094
        %6096 = vrot.lane.b32.xlu0 %v1899, 32
        %v6097 = vpop.permute.xlu0 %6096
        %6098 = vrot.lane.b32.xlu0 %v1902, 32
        %v6099 = vpop.permute.xlu0 %6098
        %6100 = vrot.lane.b32.xlu0 %v1907, 32
        %v6101 = vpop.permute.xlu0 %6100
        %6102 = vrot.lane.b32.xlu0 %v1910, 32
        %v6103 = vpop.permute.xlu0 %6102
        %6104 = vrot.lane.b32.xlu0 %v1915, 32
        %v6105 = vpop.permute.xlu0 %6104
        %6106 = vrot.lane.b32.xlu0 %v1918, 32
        %v6107 = vpop.permute.xlu0 %6106
        %6108 = vrot.lane.b32.xlu0 %v1923, 32
        %v6109 = vpop.permute.xlu0 %6108
        %6110 = vrot.lane.b32.xlu0 %v1926, 32
        %v6111 = vpop.permute.xlu0 %6110
        %6112 = vrot.lane.b32.xlu0 %v1931, 32
        %v6113 = vpop.permute.xlu0 %6112
        %6114 = vrot.lane.b32.xlu0 %v1934, 32
        %v6115 = vpop.permute.xlu0 %6114
        %6116 = vrot.lane.b32.xlu0 %v1939, 32
        %v6117 = vpop.permute.xlu0 %6116
        %6118 = vrot.lane.b32.xlu0 %v1942, 32
        %v6119 = vpop.permute.xlu0 %6118
        %6120 = vrot.lane.b32.xlu0 %v1947, 32
        %v6121 = vpop.permute.xlu0 %6120
        %6122 = vrot.lane.b32.xlu0 %v1950, 32
        %v6123 = vpop.permute.xlu0 %6122
        %6124 = vrot.lane.b32.xlu0 %v1955, 32
        %v6125 = vpop.permute.xlu0 %6124
        %6126 = vrot.lane.b32.xlu0 %v1958, 32
        %v6127 = vpop.permute.xlu0 %6126
        %6128 = vrot.lane.b32.xlu0 %v1963, 32
        %v6129 = vpop.permute.xlu0 %6128
        %6130 = vrot.lane.b32.xlu0 %v1966, 32
        %v6131 = vpop.permute.xlu0 %6130
        %6132 = vrot.lane.b32.xlu0 %v1971, 32
        %v6133 = vpop.permute.xlu0 %6132
        %6134 = vrot.lane.b32.xlu0 %v1974, 32
        %v6135 = vpop.permute.xlu0 %6134
        %6136 = vrot.lane.b32.xlu0 %v1979, 32
        %v6137 = vpop.permute.xlu0 %6136
        %6138 = vrot.lane.b32.xlu0 %v1982, 32
        %v6139 = vpop.permute.xlu0 %6138
        %6140 = vrot.lane.b32.xlu0 %v1987, 32
        %v6141 = vpop.permute.xlu0 %6140
        %6142 = vrot.lane.b32.xlu0 %v1990, 32
        %v6143 = vpop.permute.xlu0 %6142
        %6144 = vrot.lane.b32.xlu0 %v1995, 32
        %v6145 = vpop.permute.xlu0 %6144
        %6146 = vrot.lane.b32.xlu0 %v1998, 32
        %v6147 = vpop.permute.xlu0 %6146
        %6148 = vrot.lane.b32.xlu0 %v2003, 32
        %v6149 = vpop.permute.xlu0 %6148
        %6150 = vrot.lane.b32.xlu0 %v2006, 32
        %v6151 = vpop.permute.xlu0 %6150
        %6184 = vrot.lane.b32.xlu0 %v3418, 40
        %v6185 = vpop.permute.xlu0 %6184
        %6186 = vrot.lane.b32.xlu0 %v3419, 40
        %v6187 = vpop.permute.xlu0 %6186
        %6188 = vrot.lane.b32.xlu0 %v3420, 40
        %v6189 = vpop.permute.xlu0 %6188
        %6190 = vrot.lane.b32.xlu0 %v3421, 40
        %v6191 = vpop.permute.xlu0 %6190
        %6192 = vrot.lane.b32.xlu0 %v3422, 40
        %v6193 = vpop.permute.xlu0 %6192
        %6194 = vrot.lane.b32.xlu0 %v3423, 40
        %v6195 = vpop.permute.xlu0 %6194
        %6196 = vrot.lane.b32.xlu0 %v3424, 40
        %v6197 = vpop.permute.xlu0 %6196
        %6198 = vrot.lane.b32.xlu0 %v3425, 40
        %v6199 = vpop.permute.xlu0 %6198
        %6200 = vrot.lane.b32.xlu0 %v3426, 40
        %v6201 = vpop.permute.xlu0 %6200
        %6202 = vrot.lane.b32.xlu0 %v3427, 40
        %v6203 = vpop.permute.xlu0 %6202
        %6204 = vrot.lane.b32.xlu0 %v3428, 40
        %v6205 = vpop.permute.xlu0 %6204
        %6206 = vrot.lane.b32.xlu0 %v3429, 40
        %v6207 = vpop.permute.xlu0 %6206
        %6208 = vrot.lane.b32.xlu0 %v3430, 40
        %v6209 = vpop.permute.xlu0 %6208
        %6210 = vrot.lane.b32.xlu0 %v3431, 40
        %v6211 = vpop.permute.xlu0 %6210
        %6212 = vrot.lane.b32.xlu0 %v3432, 40
        %v6213 = vpop.permute.xlu0 %6212
        %6214 = vrot.lane.b32.xlu0 %v3433, 40
        %v6215 = vpop.permute.xlu0 %6214
        %6216 = vrot.lane.b32.xlu0 %v3434, 40
        %v6217 = vpop.permute.xlu0 %6216
        %6218 = vrot.lane.b32.xlu0 %v3435, 40
        %v6219 = vpop.permute.xlu0 %6218
        %6220 = vrot.lane.b32.xlu0 %v3436, 40
        %v6221 = vpop.permute.xlu0 %6220
        %6222 = vrot.lane.b32.xlu0 %v3437, 40
        %v6223 = vpop.permute.xlu0 %6222
        %6224 = vrot.lane.b32.xlu0 %v3438, 40
        %v6225 = vpop.permute.xlu0 %6224
        %6226 = vrot.lane.b32.xlu0 %v3439, 40
        %v6227 = vpop.permute.xlu0 %6226
        %6228 = vrot.lane.b32.xlu0 %v3440, 40
        %v6229 = vpop.permute.xlu0 %6228
        %6230 = vrot.lane.b32.xlu0 %v3441, 40
        %v6231 = vpop.permute.xlu0 %6230
        %6232 = vrot.lane.b32.xlu0 %v3442, 40
        %v6233 = vpop.permute.xlu0 %6232
        %6234 = vrot.lane.b32.xlu0 %v3443, 40
        %v6235 = vpop.permute.xlu0 %6234
        %6236 = vrot.lane.b32.xlu0 %v3444, 40
        %v6237 = vpop.permute.xlu0 %6236
        %6238 = vrot.lane.b32.xlu0 %v3445, 40
        %v6239 = vpop.permute.xlu0 %6238
        %6240 = vrot.lane.b32.xlu0 %v3446, 40
        %v6241 = vpop.permute.xlu0 %6240
        %6242 = vrot.lane.b32.xlu0 %v3447, 40
        %v6243 = vpop.permute.xlu0 %6242
        %6244 = vrot.lane.b32.xlu0 %v3448, 40
        %v6245 = vpop.permute.xlu0 %6244
        %6246 = vrot.lane.b32.xlu0 %v3449, 40
        %v6247 = vpop.permute.xlu0 %6246
        %v6280 = vsel %vm885, %v6024, %v6089
        %v6281 = vsel %vm885, %v6025, %v6091
        %v6282 = vsel %vm885, %v6026, %v6093
        %v6283 = vsel %vm885, %v6027, %v6095
        %v6284 = vsel %vm885, %v6028, %v6097
        %v6285 = vsel %vm885, %v6029, %v6099
        %v6286 = vsel %vm885, %v6030, %v6101
        %v6287 = vsel %vm885, %v6031, %v6103
        %v6288 = vsel %vm885, %v6032, %v6105
        %v6289 = vsel %vm885, %v6033, %v6107
        %v6290 = vsel %vm885, %v6034, %v6109
        %v6291 = vsel %vm885, %v6035, %v6111
        %v6292 = vsel %vm885, %v6036, %v6113
        %v6293 = vsel %vm885, %v6037, %v6115
        %v6294 = vsel %vm885, %v6038, %v6117
        %v6295 = vsel %vm885, %v6039, %v6119
        %v6296 = vsel %vm885, %v6040, %v6121
        %v6297 = vsel %vm885, %v6041, %v6123
        %v6298 = vsel %vm885, %v6042, %v6125
        %v6299 = vsel %vm885, %v6043, %v6127
        %v6300 = vsel %vm885, %v6044, %v6129
        %v6301 = vsel %vm885, %v6045, %v6131
        %v6302 = vsel %vm885, %v6046, %v6133
        %v6303 = vsel %vm885, %v6047, %v6135
        %v6304 = vsel %vm885, %v6048, %v6137
        %v6305 = vsel %vm885, %v6049, %v6139
        %v6306 = vsel %vm885, %v6050, %v6141
        %v6307 = vsel %vm885, %v6051, %v6143
        %v6308 = vsel %vm885, %v6052, %v6145
        %v6309 = vsel %vm885, %v6053, %v6147
        %v6310 = vsel %vm885, %v6054, %v6149
        %v6311 = vsel %vm885, %v6055, %v6151
        %vm6312 = vcmask 293888
        %v6313 = vsel %vm6312, %v6280, %v6089
        %v6314 = vsel %vm6312, %v6281, %v6091
        %v6315 = vsel %vm6312, %v6282, %v6093
        %v6316 = vsel %vm6312, %v6283, %v6095
        %v6317 = vsel %vm6312, %v6284, %v6097
        %v6318 = vsel %vm6312, %v6285, %v6099
        %v6319 = vsel %vm6312, %v6286, %v6101
        %v6320 = vsel %vm6312, %v6287, %v6103
        %v6321 = vsel %vm6312, %v6288, %v6105
        %v6322 = vsel %vm6312, %v6289, %v6107
        %v6323 = vsel %vm6312, %v6290, %v6109
        %v6324 = vsel %vm6312, %v6291, %v6111
        %v6325 = vsel %vm6312, %v6292, %v6113
        %v6326 = vsel %vm6312, %v6293, %v6115
        %v6327 = vsel %vm6312, %v6294, %v6117
        %v6328 = vsel %vm6312, %v6295, %v6119
        %v6329 = vsel %vm6312, %v6296, %v6121
        %v6330 = vsel %vm6312, %v6297, %v6123
        %v6331 = vsel %vm6312, %v6298, %v6125
        %v6332 = vsel %vm6312, %v6299, %v6127
        %v6333 = vsel %vm6312, %v6300, %v6129
        %v6334 = vsel %vm6312, %v6301, %v6131
        %v6335 = vsel %vm6312, %v6302, %v6133
        %v6336 = vsel %vm6312, %v6303, %v6135
        %v6337 = vsel %vm6312, %v6304, %v6137
        %v6338 = vsel %vm6312, %v6305, %v6139
        %v6339 = vsel %vm6312, %v6306, %v6141
        %v6340 = vsel %vm6312, %v6307, %v6143
        %v6341 = vsel %vm6312, %v6308, %v6145
        %v6342 = vsel %vm6312, %v6309, %v6147
        %v6343 = vsel %vm6312, %v6310, %v6149
        %v6344 = vsel %vm6312, %v6311, %v6151
        %vm6345 = vcmask 326656
        %v6346 = vsel %vm6345, %v6313, %v6185
        %v6347 = vsel %vm6345, %v6314, %v6187
        %v6348 = vsel %vm6345, %v6315, %v6189
        %v6349 = vsel %vm6345, %v6316, %v6191
        %v6350 = vsel %vm6345, %v6317, %v6193
        %v6351 = vsel %vm6345, %v6318, %v6195
        %v6352 = vsel %vm6345, %v6319, %v6197
        %v6353 = vsel %vm6345, %v6320, %v6199
        %v6354 = vsel %vm6345, %v6321, %v6201
        %v6355 = vsel %vm6345, %v6322, %v6203
        %v6356 = vsel %vm6345, %v6323, %v6205
        %v6357 = vsel %vm6345, %v6324, %v6207
        %v6358 = vsel %vm6345, %v6325, %v6209
        %v6359 = vsel %vm6345, %v6326, %v6211
        %v6360 = vsel %vm6345, %v6327, %v6213
        %v6361 = vsel %vm6345, %v6328, %v6215
        %v6362 = vsel %vm6345, %v6329, %v6217
        %v6363 = vsel %vm6345, %v6330, %v6219
        %v6364 = vsel %vm6345, %v6331, %v6221
        %v6365 = vsel %vm6345, %v6332, %v6223
        %v6366 = vsel %vm6345, %v6333, %v6225
        %v6367 = vsel %vm6345, %v6334, %v6227
        %v6368 = vsel %vm6345, %v6335, %v6229
        %v6369 = vsel %vm6345, %v6336, %v6231
        %v6370 = vsel %vm6345, %v6337, %v6233
        %v6371 = vsel %vm6345, %v6338, %v6235
        %v6372 = vsel %vm6345, %v6339, %v6237
        %v6373 = vsel %vm6345, %v6340, %v6239
        %v6374 = vsel %vm6345, %v6341, %v6241
        %v6375 = vsel %vm6345, %v6342, %v6243
        %v6376 = vsel %vm6345, %v6343, %v6245
        %v6377 = vsel %vm6345, %v6344, %v6247
        %vm6378 = vcmask 359424
        %v6379 = vsel %vm6378, %v6346, 0.0
        %v6380 = vsel %vm6378, %v6347, 0.0
        %v6381 = vsel %vm6378, %v6348, 0.0
        %v6382 = vsel %vm6378, %v6349, 0.0
        %v6383 = vsel %vm6378, %v6350, 0.0
        %v6384 = vsel %vm6378, %v6351, 0.0
        %v6385 = vsel %vm6378, %v6352, 0.0
        %v6386 = vsel %vm6378, %v6353, 0.0
        %v6387 = vsel %vm6378, %v6354, 0.0
        %v6388 = vsel %vm6378, %v6355, 0.0
        %v6389 = vsel %vm6378, %v6356, 0.0
        %v6390 = vsel %vm6378, %v6357, 0.0
        %v6391 = vsel %vm6378, %v6358, 0.0
        %v6392 = vsel %vm6378, %v6359, 0.0
        %v6393 = vsel %vm6378, %v6360, 0.0
        %v6394 = vsel %vm6378, %v6361, 0.0
        %v6395 = vsel %vm6378, %v6362, 0.0
        %v6396 = vsel %vm6378, %v6363, 0.0
        %v6397 = vsel %vm6378, %v6364, 0.0
        %v6398 = vsel %vm6378, %v6365, 0.0
        %v6399 = vsel %vm6378, %v6366, 0.0
        %v6400 = vsel %vm6378, %v6367, 0.0
        %v6401 = vsel %vm6378, %v6368, 0.0
        %v6402 = vsel %vm6378, %v6369, 0.0
        %v6403 = vsel %vm6378, %v6370, 0.0
        %v6404 = vsel %vm6378, %v6371, 0.0
        %v6405 = vsel %vm6378, %v6372, 0.0
        %v6406 = vsel %vm6378, %v6373, 0.0
        %v6407 = vsel %vm6378, %v6374, 0.0
        %v6408 = vsel %vm6378, %v6375, 0.0
        %v6409 = vsel %vm6378, %v6376, 0.0
        %v6410 = vsel %vm6378, %v6377, 0.0
        %6411 = vst [vmem:[%s778] sm:$0xff] %v6379
        %6412 = vst [vmem:[%s778 + $0x8] sm:$0xff] %v6380
        %6413 = vst [vmem:[%s778 + $0x10] sm:$0xff] %v6381
        %6414 = vst [vmem:[%s778 + $0x18] sm:$0xff] %v6382
        %6415 = vst [vmem:[%s778 + $0x20] sm:$0xff] %v6383
        %6416 = vst [vmem:[%s778 + $0x28] sm:$0xff] %v6384
        %6417 = vst [vmem:[%s778 + $0x30] sm:$0xff] %v6385
        %6418 = vst [vmem:[%s778 + $0x38] sm:$0xff] %v6386
        %6419 = vst [vmem:[%s778 + $0x40] sm:$0xff] %v6387
        %6420 = vst [vmem:[%s778 + $0x48] sm:$0xff] %v6388
        %6421 = vst [vmem:[%s778 + $0x50] sm:$0xff] %v6389
        %6422 = vst [vmem:[%s778 + $0x58] sm:$0xff] %v6390
        %6423 = vst [vmem:[%s778 + $0x60] sm:$0xff] %v6391
        %6424 = vst [vmem:[%s778 + $0x68] sm:$0xff] %v6392
        %6425 = vst [vmem:[%s778 + $0x70] sm:$0xff] %v6393
        %6426 = vst [vmem:[%s778 + $0x78] sm:$0xff] %v6394
        %6427 = vst [vmem:[%s778 + $0x80] sm:$0xff] %v6395
        %6428 = vst [vmem:[%s778 + $0x88] sm:$0xff] %v6396
        %6429 = vst [vmem:[%s778 + $0x90] sm:$0xff] %v6397
        %6430 = vst [vmem:[%s778 + $0x98] sm:$0xff] %v6398
        %6431 = vst [vmem:[%s778 + $0xa0] sm:$0xff] %v6399
        %6432 = vst [vmem:[%s778 + $0xa8] sm:$0xff] %v6400
        %6433 = vst [vmem:[%s778 + $0xb0] sm:$0xff] %v6401
        %6434 = vst [vmem:[%s778 + $0xb8] sm:$0xff] %v6402
        %6435 = vst [vmem:[%s778 + $0xc0] sm:$0xff] %v6403
        %6436 = vst [vmem:[%s778 + $0xc8] sm:$0xff] %v6404
        %6437 = vst [vmem:[%s778 + $0xd0] sm:$0xff] %v6405
        %6438 = vst [vmem:[%s778 + $0xd8] sm:$0xff] %v6406
        %6439 = vst [vmem:[%s778 + $0xe0] sm:$0xff] %v6407
        %6440 = vst [vmem:[%s778 + $0xe8] sm:$0xff] %v6408
        %6441 = vst [vmem:[%s778 + $0xf0] sm:$0xff] %v6409
        %6442 = vst [vmem:[%s778 + $0xf8] sm:$0xff] %v6410
        %s6443 = sand.u32 %s565, 1
        %s6444 = scalar_lea.sflag [#allocation3], %s6443
        %s6445 = sand.u32 %s565, 1
        %s6446 = smul.addr %s6445, 256
        %s6447 = scalar_lea.vmem [#allocation2], %s6446
        %s6448 = sand.u32 %s591, 1
        %s6449 = scalar_lea.sflag [#allocation5], %s6448
        %s6450 = sand.u32 %s591, 1
        %s6451 = smul.addr %s6450, 256
        %s6452 = scalar_lea.vmem [#allocation4], %s6451
        // Predicated region
        $region117: #{tpu_custom_call.1} parent=115 // pred_check
          %p6453 = pneg %p575
        $region118: #{tpu_custom_call.1} parent=115 // pred_check_branch
          %6455 = sbr.rel (%p6453) target = $region120
        $region119: #{tpu_custom_call.1} parent=115 // pred_region
          %s6456 = smul.u32 32, %s43
          %s6458 = ssub.s32 4096, 4096
          %6459 = vsyncadd %s6444, %s6458
          %s6460 = smul.addr %s6456, 128
          %s6461 = scalar_lea.hbm %s24, %s6460
          %s6462 = sshll.u32 %s6447, 4
          %s6463 = int_to_ptr.vmem [resolvable:$true] %s6462
          %6468 = dma.vmem_to_hbm [thread:$0]  %s6463, 4096, %s6461, %s6444, 128, 128, 8
        $region120: #{tpu_custom_call.1} parent=115 // pred_fallthru
          _
        // Predicated region
        $region121: #{tpu_custom_call.1} parent=115 // pred_check
          %p6469 = pneg %p601
        $region122: #{tpu_custom_call.1} parent=115 // pred_check_branch
          %6471 = sbr.rel (%p6469) target = $region124
        $region123: #{tpu_custom_call.1} parent=115 // pred_region
          %s6472 = smul.u32 32, %s43
          %s6474 = ssub.s32 4096, 4096
          %6475 = vsyncadd %s6449, %s6474
          %s6476 = smul.addr %s6472, 128
          %s6477 = scalar_lea.hbm %s25, %s6476
          %s6478 = sshll.u32 %s6452, 4
          %s6479 = int_to_ptr.vmem [resolvable:$true] %s6478
          %6484 = dma.vmem_to_hbm [thread:$0]  %s6479, 4096, %s6477, %s6449, 128, 128, 8
        $region124: #{tpu_custom_call.1} parent=115 // pred_fallthru
          _
      $region116: #{tpu_custom_call.1} parent=5 // pred_fallthru
        _
      %p6485 = scmp.le.s32.totalorder 2, %s38
      // Predicated region
      $region125: #{tpu_custom_call.1} parent=5 // pred_check
        %p6486 = pneg %p6485
      $region126: #{tpu_custom_call.1} parent=5 // pred_check_branch
        %6488 = sbr.rel (%p6486) target = $region128
      $region127: #{tpu_custom_call.1} parent=5 // pred_region
        %s6489 = ssub.s32 %s38, 2
        // Predicated region
        $region129: #{tpu_custom_call.1} parent=127 // pred_check
          %p6490 = pneg %p581
        $region130: #{tpu_custom_call.1} parent=127 // pred_check_branch
          %6492 = sbr.rel (%p6490) target = $region132
        $region131: #{tpu_custom_call.1} parent=127 // pred_region
          %s6493 = sand.u32 %s566, 1
          %s6494 = scalar_lea.sflag [#allocation3], %s6493
          %s6495 = sand.u32 %s566, 1
          %s6496 = smul.addr %s6495, 256
          %s6497 = scalar_lea.vmem [#allocation2], %s6496
          %6498 = dma.done %s6494, 4096
        $region132: #{tpu_custom_call.1} parent=127 // pred_fallthru
          _
        // Predicated region
        $region133: #{tpu_custom_call.1} parent=127 // pred_check
          %p6499 = pneg %p607
        $region134: #{tpu_custom_call.1} parent=127 // pred_check_branch
          %6501 = sbr.rel (%p6499) target = $region136
        $region135: #{tpu_custom_call.1} parent=127 // pred_region
          %s6502 = sand.u32 %s592, 1
          %s6503 = scalar_lea.sflag [#allocation5], %s6502
          %s6504 = sand.u32 %s592, 1
          %s6505 = smul.addr %s6504, 256
          %s6506 = scalar_lea.vmem [#allocation4], %s6505
          %6507 = dma.done %s6503, 4096
        $region136: #{tpu_custom_call.1} parent=127 // pred_fallthru
          _
      $region128: #{tpu_custom_call.1} parent=5 // pred_fallthru
        _
    $region6: #{tpu_custom_call.1} parent=1 // loop_footer
      %s42 = sadd.s32 1, %s38
    $region7: #{tpu_custom_call.1} parent=1 // loop_footer_branch
      %37 = sbr.rel target = $region3
    $region8: #{tpu_custom_call.1} parent=1 // loop_exit
      _
    %6508 = vsyncpa [#allocation3], 1
    %s6509 = scalar_lea.sflag [#allocation3], 1
    %6510 = vsyncpa %s6509, 1
    %6511 = vsyncpa [#allocation5], 1
    %s6512 = scalar_lea.sflag [#allocation5], 1
    %6513 = vsyncpa %s6512, 1

</llo_original>
